<compile_context>
chip_gen: v5e
topology: v5e:2x2
jax: 0.10.0
libtpu: 0.0.40
codegen_flags: <defaults>
</compile_context>

<pallas_src>
from functools import partial

import numpy as np
import jax
import jax.numpy as jnp
from jax.experimental import pallas as pl
from jax.experimental.pallas import tpu as pltpu

VAL_HIDDEN = 64  # val_fc1 output width (fixed by the module definition)


# ----------------------------------------------------------------------------
# Fused Pallas kernel (whole forward pass, one grid step)
# ----------------------------------------------------------------------------
def _fused_forward_kernel(xpad_ref, w1_ref, b1_ref, w2_ref, b2_ref, w3_ref, b3_ref,
                          wavT_ref, bav_ref, wfa_ref, bfa_ref, wf1_ref, bf1_ref,
                          wf2_ref, bf2_ref,
                          pol_ref, val_ref,
                          pad2_ref, pad3_ref, *, N, H, W):
    hw = H * W
    M = N * hw

    def conv3x3_relu(xpad, w_ref, b_ref):
        """xpad: (N, H+2, W+2, Cin) value; w: (9*Cin, Cout); b: (1, Cout)."""
        cin = xpad.shape[-1]
        taps = [xpad[:, dy:dy + H, dx:dx + W, :].reshape(M, cin)
                for dy in range(3) for dx in range(3)]
        patches = jnp.concatenate(taps, axis=-1)                 # (M, 9*Cin)
        y = jnp.dot(patches, w_ref[...], preferred_element_type=jnp.float32)
        return jnp.maximum(y + b_ref[...], 0.0)                  # (M, Cout)

    # --- conv stack, all VMEM resident -------------------------------------
    h1 = conv3x3_relu(xpad_ref[...], w1_ref, b1_ref)             # (M, 32)
    pad2_ref[...] = jnp.zeros_like(pad2_ref)
    pad2_ref[:, 1:H + 1, 1:W + 1, :] = h1.reshape(N, H, W, 32)
    h2 = conv3x3_relu(pad2_ref[...], w2_ref, b2_ref)             # (M, 64)
    pad3_ref[...] = jnp.zeros_like(pad3_ref)
    pad3_ref[:, 1:H + 1, 1:W + 1, :] = h2.reshape(N, H, W, 64)
    feat = conv3x3_relu(pad3_ref[...], w3_ref, b3_ref)           # (M, 128)

    # --- merged act/val 1x1-conv heads, produced transposed ----------------
    # hmT[c, n*hw + p]: rows 0..3 = act channels, rows 4..5 = val channels.
    hmT = jax.lax.dot_general(wavT_ref[...], feat,
                              (((1,), (1,)), ((), ())),
                              preferred_element_type=jnp.float32)  # (6, M)
    hmT = jnp.maximum(hmT + bav_ref[...], 0.0)

    # --- FC heads, per batch element (N is tiny, static unroll) ------------
    for n in range(N):
        sl = hmT[:, n * hw:(n + 1) * hw]                          # (6, hw)

        # policy head: act_fc1 + softmax
        ga = jnp.dot(sl[0:4, :], wfa_ref[...],
                     preferred_element_type=jnp.float32)          # (4, 4*hw)
        logits = bfa_ref[...]                                     # (1, hw)
        for c in range(4):
            logits = logits + ga[c:c + 1, c * hw:(c + 1) * hw]
        mx = jnp.max(logits, axis=-1, keepdims=True)
        e = jnp.exp(logits - mx)
        denom = jnp.sum(e, axis=-1, keepdims=True)
        pol_ref[pl.ds(n, 1), :] = e * pl.reciprocal(denom, approx=True)

        # value head: val_fc1 + relu, val_fc2 + tanh
        gv = jnp.dot(sl[4:6, :], wf1_ref[...],
                     preferred_element_type=jnp.float32)          # (2, 2*VAL_HIDDEN)
        hv = jnp.maximum(gv[0:1, 0:VAL_HIDDEN]
                         + gv[1:2, VAL_HIDDEN:2 * VAL_HIDDEN]
                         + bf1_ref[...], 0.0)                     # (1, VAL_HIDDEN)
        v = jnp.tanh(jnp.sum(hv * wf2_ref[...], axis=-1, keepdims=True)
                     + bf2_ref[...])                              # (1, 1)
        val_ref[pl.ds(n, 1), :] = v


# ----------------------------------------------------------------------------
# Wrapper: boundary layout glue + weight re-layout (trace-time) + pallas_call
# ----------------------------------------------------------------------------
def policy_value_forward(x_nchw, params, board_w, board_h):
    """Pallas implementation of MyModule.forward (input is NCHW like PyTorch)."""
    N = x_nchw.shape[0]
    H, W = board_h, board_w
    hw = H * W

    # tiny boundary glue (single small XLA fusion): NCHW -> NHWC + zero pad
    x = jnp.transpose(x_nchw, (0, 2, 3, 1)).astype(jnp.float32)
    xpad = jnp.pad(x, ((0, 0), (1, 1), (1, 1), (0, 0)))           # (N, H+2, W+2, 4)

    # bake layouts / flatten permutations into the weights (free at trace time)
    w1 = params['w1'].reshape(9 * 4, 32)
    w2 = params['w2'].reshape(9 * 32, 64)
    w3 = params['w3'].reshape(9 * 64, 128)
    b1 = params['b1'].reshape(1, 32)
    b2 = params['b2'].reshape(1, 64)
    b3 = params['b3'].reshape(1, 128)
    wavT = jnp.concatenate([params['wa'], params['wv']], axis=1).T          # (6, 128)
    bav = jnp.concatenate([params['ba'], params['bv']]).reshape(6, 1)
    # channel-major flatten (PyTorch NCHW .view) folded into FC weight rows:
    # wfa_big[p, c*hw + j] = wfa[c*hw + p, j] ; same for wf1_big.
    wfa_big = params['wfa'].reshape(4, hw, hw).transpose(1, 0, 2).reshape(hw, 4 * hw)
    wf1_big = params['wf1'].reshape(2, hw, VAL_HIDDEN).transpose(1, 0, 2).reshape(hw, 2 * VAL_HIDDEN)
    bfa = params['bfa'].reshape(1, hw)
    bf1 = params['bf1'].reshape(1, VAL_HIDDEN)
    wf2 = params['wf2'].reshape(1, VAL_HIDDEN)
    bf2 = params['bf2'].reshape(1, 1)

    inputs = (xpad, w1, b1, w2, b2, w3, b3, wavT, bav,
              wfa_big, bfa, wf1_big, bf1, wf2, bf2)

    def full_spec(shape):
        nd = len(shape)
        return pl.BlockSpec(tuple(shape), lambda i, _nd=nd: (0,) * _nd)

    pol, val = pl.pallas_call(
        partial(_fused_forward_kernel, N=N, H=H, W=W),
        out_shape=(jax.ShapeDtypeStruct((N, hw), jnp.float32),
                   jax.ShapeDtypeStruct((N, 1), jnp.float32)),
        grid=(1,),
        in_specs=[full_spec(a.shape) for a in inputs],
        out_specs=(full_spec((N, hw)), full_spec((N, 1))),
        scratch_shapes=[pltpu.VMEM((N, H + 2, W + 2, 32), jnp.float32),
                        pltpu.VMEM((N, H + 2, W + 2, 64), jnp.float32)],
        compiler_params=pltpu.CompilerParams(dimension_semantics=("arbitrary",)),
    )(*inputs)
    return pol, val


# ----------------------------------------------------------------------------
# Reference (pure JAX) for correctness check
# ----------------------------------------------------------------------------
def reference_forward(x_nchw, params, board_w, board_h):
    N = x_nchw.shape[0]
    hw = board_w * board_h
    hi = jax.lax.Precision.HIGHEST
    x = jnp.transpose(x_nchw, (0, 2, 3, 1)).astype(jnp.float32)

    def conv(x, w, b):
        y = jax.lax.conv_general_dilated(
            x, w, (1, 1), 'SAME',
            dimension_numbers=('NHWC', 'HWIO', 'NHWC'), precision=hi)
        return jax.nn.relu(y + b)

    x = conv(x, params['w1'], params['b1'])
    x = conv(x, params['w2'], params['b2'])
    x = conv(x, params['w3'], params['b3'])

    act = jax.nn.relu(jnp.einsum('nhwc,cd->nhwd', x, params['wa'], precision=hi)
                      + params['ba'])
    val = jax.nn.relu(jnp.einsum('nhwc,cd->nhwd', x, params['wv'], precision=hi)
                      + params['bv'])
    xa = jnp.transpose(act, (0, 3, 1, 2)).reshape(N, 4 * hw)
    xv = jnp.transpose(val, (0, 3, 1, 2)).reshape(N, 2 * hw)

    logits = jnp.dot(xa, params['wfa'], precision=hi) + params['bfa']
    pol = jax.nn.softmax(logits, axis=1)
    h = jax.nn.relu(jnp.dot(xv, params['wf1'], precision=hi) + params['bf1'])
    v = jnp.tanh(jnp.dot(h, params['wf2'], precision=hi) + params['bf2'].reshape(1, 1))
    return pol, v


# ----------------------------------------------------------------------------
# Deterministic parameter init (synthetic; shapes follow MyModule.__init__)
# ----------------------------------------------------------------------------
def init_params(key, board_w, board_h):
    hw = board_w * board_h
    ks = jax.random.split(key, 16)

    def dense(k, shape, fan_in):
        return jax.random.normal(k, shape, jnp.float32) * np.float32(1.0 / np.sqrt(fan_in))

    return {
        'w1': dense(ks[0], (3, 3, 4, 32), 4 * 9),    'b1': dense(ks[1], (32,), 100.0),
        'w2': dense(ks[2], (3, 3, 32, 64), 32 * 9),  'b2': dense(ks[3], (64,), 100.0),
        'w3': dense(ks[4], (3, 3, 64, 128), 64 * 9), 'b3': dense(ks[5], (128,), 100.0),
        'wa': dense(ks[6], (128, 4), 128),           'ba': dense(ks[7], (4,), 100.0),
        'wv': dense(ks[8], (128, 2), 128),           'bv': dense(ks[9], (2,), 100.0),
        'wfa': dense(ks[10], (4 * hw, hw), 4 * hw),  'bfa': dense(ks[11], (hw,), 100.0),
        'wf1': dense(ks[12], (2 * hw, 64), 2 * hw),  'bf1': dense(ks[13], (64,), 100.0),
        'wf2': dense(ks[14], (64, 1), 64),           'bf2': dense(ks[15], (1,), 100.0),
    }


if __name__ == "__main__":
    BOARD_W = BOARD_H = 8
    BATCH = 2

    key = jax.random.PRNGKey(0)
    kx, kp = jax.random.split(key)
    x = jax.random.normal(kx, (BATCH, 4, BOARD_H, BOARD_W), jnp.float32)   # NCHW input
    params = init_params(kp, BOARD_W, BOARD_H)

    fwd = jax.jit(partial(policy_value_forward, board_w=BOARD_W, board_h=BOARD_H))
    pol, val = jax.block_until_ready(fwd(x, params))

    assert pol.shape == (BATCH, BOARD_W * BOARD_H)
    assert val.shape == (BATCH, 1)

    ref_pol, ref_val = reference_forward(x, params, BOARD_W, BOARD_H)
    np.testing.assert_allclose(np.asarray(pol), np.asarray(ref_pol), atol=5e-3, rtol=5e-3)
    np.testing.assert_allclose(np.asarray(val), np.asarray(ref_val), atol=5e-3, rtol=5e-3)

    print("KERNEL_OK")
</pallas_src>

<mosaic_0001>
module attributes {stable_mosaic.version = 11 : i64} {
  func.func @_fused_forward_kernel(%arg0: i32, %arg1: memref<2x10x10x4xf32, #tpu.memory_space<vmem>>, %arg2: memref<36x32xf32, #tpu.memory_space<vmem>>, %arg3: memref<1x32xf32, #tpu.memory_space<vmem>>, %arg4: memref<288x64xf32, #tpu.memory_space<vmem>>, %arg5: memref<1x64xf32, #tpu.memory_space<vmem>>, %arg6: memref<576x128xf32, #tpu.memory_space<vmem>>, %arg7: memref<1x128xf32, #tpu.memory_space<vmem>>, %arg8: memref<6x128xf32, #tpu.memory_space<vmem>>, %arg9: memref<6x1xf32, #tpu.memory_space<vmem>>, %arg10: memref<64x256xf32, #tpu.memory_space<vmem>>, %arg11: memref<1x64xf32, #tpu.memory_space<vmem>>, %arg12: memref<64x128xf32, #tpu.memory_space<vmem>>, %arg13: memref<1x64xf32, #tpu.memory_space<vmem>>, %arg14: memref<1x64xf32, #tpu.memory_space<vmem>>, %arg15: memref<1x1xf32, #tpu.memory_space<vmem>>, %arg16: memref<2x64xf32, #tpu.memory_space<vmem>>, %arg17: memref<2x1xf32, #tpu.memory_space<vmem>>, %arg18: memref<2x10x10x32xf32, #tpu.memory_space<vmem>>, %arg19: memref<2x10x10x64xf32, #tpu.memory_space<vmem>>) attributes {dimension_semantics = [#tpu.dimension_semantics<arbitrary>], iteration_bounds = array<i64: 1>, scalar_prefetch = 0 : i64, scratch_operands = 2 : i64, tpu.core_type = #tpu.core_type<tc>, window_params = [{pipeline_mode = #tpu.pipeline_mode<synchronous>, transform_indices = @transform_0, window_bounds = array<i64: 2, 10, 10, 4>}, {pipeline_mode = #tpu.pipeline_mode<synchronous>, transform_indices = @transform_1, window_bounds = array<i64: 36, 32>}, {pipeline_mode = #tpu.pipeline_mode<synchronous>, transform_indices = @transform_2, window_bounds = array<i64: 1, 32>}, {pipeline_mode = #tpu.pipeline_mode<synchronous>, transform_indices = @transform_3, window_bounds = array<i64: 288, 64>}, {pipeline_mode = #tpu.pipeline_mode<synchronous>, transform_indices = @transform_4, window_bounds = array<i64: 1, 64>}, {pipeline_mode = #tpu.pipeline_mode<synchronous>, transform_indices = @transform_5, window_bounds = array<i64: 576, 128>}, {pipeline_mode = #tpu.pipeline_mode<synchronous>, transform_indices = @transform_6, window_bounds = array<i64: 1, 128>}, {pipeline_mode = #tpu.pipeline_mode<synchronous>, transform_indices = @transform_7, window_bounds = array<i64: 6, 128>}, {pipeline_mode = #tpu.pipeline_mode<synchronous>, transform_indices = @transform_8, window_bounds = array<i64: 6, 1>}, {pipeline_mode = #tpu.pipeline_mode<synchronous>, transform_indices = @transform_9, window_bounds = array<i64: 64, 256>}, {pipeline_mode = #tpu.pipeline_mode<synchronous>, transform_indices = @transform_10, window_bounds = array<i64: 1, 64>}, {pipeline_mode = #tpu.pipeline_mode<synchronous>, transform_indices = @transform_11, window_bounds = array<i64: 64, 128>}, {pipeline_mode = #tpu.pipeline_mode<synchronous>, transform_indices = @transform_12, window_bounds = array<i64: 1, 64>}, {pipeline_mode = #tpu.pipeline_mode<synchronous>, transform_indices = @transform_13, window_bounds = array<i64: 1, 64>}, {pipeline_mode = #tpu.pipeline_mode<synchronous>, transform_indices = @transform_14, window_bounds = array<i64: 1, 1>}, {pipeline_mode = #tpu.pipeline_mode<synchronous>, transform_indices = @transform_15, window_bounds = array<i64: 2, 64>}, {pipeline_mode = #tpu.pipeline_mode<synchronous>, transform_indices = @transform_16, window_bounds = array<i64: 2, 1>}]} {
    %c0 = arith.constant 0 : index
    %c0_0 = arith.constant 0 : index
    %c0_1 = arith.constant 0 : index
    %c0_2 = arith.constant 0 : index
    %0 = vector.load %arg1[%c0, %c0_0, %c0_1, %c0_2] : memref<2x10x10x4xf32, #tpu.memory_space<vmem>>, vector<2x10x10x4xf32>
    %1 = vector.extract_strided_slice %0 {offsets = [0, 0, 0, 0], sizes = [2, 8, 8, 4], strides = [1, 1, 1, 1]} : vector<2x10x10x4xf32> to vector<2x8x8x4xf32>
    %2 = vector.shape_cast %1 : vector<2x8x8x4xf32> to vector<128x4xf32>
    %3 = vector.extract_strided_slice %0 {offsets = [0, 0, 1, 0], sizes = [2, 8, 8, 4], strides = [1, 1, 1, 1]} : vector<2x10x10x4xf32> to vector<2x8x8x4xf32>
    %4 = vector.shape_cast %3 : vector<2x8x8x4xf32> to vector<128x4xf32>
    %5 = vector.extract_strided_slice %0 {offsets = [0, 0, 2, 0], sizes = [2, 8, 8, 4], strides = [1, 1, 1, 1]} : vector<2x10x10x4xf32> to vector<2x8x8x4xf32>
    %6 = vector.shape_cast %5 : vector<2x8x8x4xf32> to vector<128x4xf32>
    %7 = vector.extract_strided_slice %0 {offsets = [0, 1, 0, 0], sizes = [2, 8, 8, 4], strides = [1, 1, 1, 1]} : vector<2x10x10x4xf32> to vector<2x8x8x4xf32>
    %8 = vector.shape_cast %7 : vector<2x8x8x4xf32> to vector<128x4xf32>
    %9 = vector.extract_strided_slice %0 {offsets = [0, 1, 1, 0], sizes = [2, 8, 8, 4], strides = [1, 1, 1, 1]} : vector<2x10x10x4xf32> to vector<2x8x8x4xf32>
    %10 = vector.shape_cast %9 : vector<2x8x8x4xf32> to vector<128x4xf32>
    %11 = vector.extract_strided_slice %0 {offsets = [0, 1, 2, 0], sizes = [2, 8, 8, 4], strides = [1, 1, 1, 1]} : vector<2x10x10x4xf32> to vector<2x8x8x4xf32>
    %12 = vector.shape_cast %11 : vector<2x8x8x4xf32> to vector<128x4xf32>
    %13 = vector.extract_strided_slice %0 {offsets = [0, 2, 0, 0], sizes = [2, 8, 8, 4], strides = [1, 1, 1, 1]} : vector<2x10x10x4xf32> to vector<2x8x8x4xf32>
    %14 = vector.shape_cast %13 : vector<2x8x8x4xf32> to vector<128x4xf32>
    %15 = vector.extract_strided_slice %0 {offsets = [0, 2, 1, 0], sizes = [2, 8, 8, 4], strides = [1, 1, 1, 1]} : vector<2x10x10x4xf32> to vector<2x8x8x4xf32>
    %16 = vector.shape_cast %15 : vector<2x8x8x4xf32> to vector<128x4xf32>
    %17 = vector.extract_strided_slice %0 {offsets = [0, 2, 2, 0], sizes = [2, 8, 8, 4], strides = [1, 1, 1, 1]} : vector<2x10x10x4xf32> to vector<2x8x8x4xf32>
    %18 = vector.shape_cast %17 : vector<2x8x8x4xf32> to vector<128x4xf32>
    %19 = tpu.concatenate %2, %4, %6, %8, %10, %12, %14, %16, %18 in 1 : vector<128x4xf32>, vector<128x4xf32>, vector<128x4xf32>, vector<128x4xf32>, vector<128x4xf32>, vector<128x4xf32>, vector<128x4xf32>, vector<128x4xf32>, vector<128x4xf32> -> vector<128x36xf32>
    %c0_3 = arith.constant 0 : index
    %c0_4 = arith.constant 0 : index
    %20 = vector.load %arg2[%c0_3, %c0_4] : memref<36x32xf32, #tpu.memory_space<vmem>>, vector<36x32xf32>
    %cst = arith.constant dense<0.000000e+00> : vector<128x32xf32>
    %21 = tpu.matmul %19, %20, %cst {dimension_numbers = #tpu.dot_dimension_numbers<[1], [0], [0], [1], [0, 0, 1, 1], [], []>} : vector<128x36xf32>, vector<36x32xf32>, vector<128x32xf32> -> vector<128x32xf32>
    %c0_5 = arith.constant 0 : index
    %c0_6 = arith.constant 0 : index
    %22 = vector.load %arg3[%c0_5, %c0_6] : memref<1x32xf32, #tpu.memory_space<vmem>>, vector<1x32xf32>
    %23 = vector.broadcast %22 : vector<1x32xf32> to vector<128x32xf32>
    %24 = arith.addf %21, %23 : vector<128x32xf32>
    %cst_7 = arith.constant 0.000000e+00 : f32
    %25 = vector.broadcast %cst_7 : f32 to vector<128x32xf32>
    %26 = arith.maximumf %24, %25 : vector<128x32xf32>
    %cst_8 = arith.constant 0.000000e+00 : f32
    %27 = vector.broadcast %cst_8 : f32 to vector<2x10x10x32xf32>
    %c0_9 = arith.constant 0 : index
    %c0_10 = arith.constant 0 : index
    %c0_11 = arith.constant 0 : index
    %c0_12 = arith.constant 0 : index
    %28 = vector.load %arg18[%c0_9, %c0_10, %c0_11, %c0_12] : memref<2x10x10x32xf32, #tpu.memory_space<vmem>>, vector<2x10x10x32xf32>
    tpu.vector_store %arg18[%c0_9, %c0_10, %c0_11, %c0_12], %27 {strides = array<i32>} : memref<2x10x10x32xf32, #tpu.memory_space<vmem>>, vector<2x10x10x32xf32>,
    %29 = vector.shape_cast %26 : vector<128x32xf32> to vector<2x8x8x32xf32>
    %c0_13 = arith.constant 0 : index
    %c1 = arith.constant 1 : index
    %c1_14 = arith.constant 1 : index
    %c0_15 = arith.constant 0 : index
    %30 = vector.load %arg18[%c0_13, %c1, %c1_14, %c0_15] : memref<2x10x10x32xf32, #tpu.memory_space<vmem>>, vector<2x8x8x32xf32>
    tpu.vector_store %arg18[%c0_13, %c1, %c1_14, %c0_15], %29 {strides = array<i32>} : memref<2x10x10x32xf32, #tpu.memory_space<vmem>>, vector<2x8x8x32xf32>,
    %c0_16 = arith.constant 0 : index
    %c0_17 = arith.constant 0 : index
    %c0_18 = arith.constant 0 : index
    %c0_19 = arith.constant 0 : index
    %31 = vector.load %arg18[%c0_16, %c0_17, %c0_18, %c0_19] : memref<2x10x10x32xf32, #tpu.memory_space<vmem>>, vector<2x10x10x32xf32>
    %32 = vector.extract_strided_slice %31 {offsets = [0, 0, 0, 0], sizes = [2, 8, 8, 32], strides = [1, 1, 1, 1]} : vector<2x10x10x32xf32> to vector<2x8x8x32xf32>
    %33 = vector.shape_cast %32 : vector<2x8x8x32xf32> to vector<128x32xf32>
    %34 = vector.extract_strided_slice %31 {offsets = [0, 0, 1, 0], sizes = [2, 8, 8, 32], strides = [1, 1, 1, 1]} : vector<2x10x10x32xf32> to vector<2x8x8x32xf32>
    %35 = vector.shape_cast %34 : vector<2x8x8x32xf32> to vector<128x32xf32>
    %36 = vector.extract_strided_slice %31 {offsets = [0, 0, 2, 0], sizes = [2, 8, 8, 32], strides = [1, 1, 1, 1]} : vector<2x10x10x32xf32> to vector<2x8x8x32xf32>
    %37 = vector.shape_cast %36 : vector<2x8x8x32xf32> to vector<128x32xf32>
    %38 = vector.extract_strided_slice %31 {offsets = [0, 1, 0, 0], sizes = [2, 8, 8, 32], strides = [1, 1, 1, 1]} : vector<2x10x10x32xf32> to vector<2x8x8x32xf32>
    %39 = vector.shape_cast %38 : vector<2x8x8x32xf32> to vector<128x32xf32>
    %40 = vector.extract_strided_slice %31 {offsets = [0, 1, 1, 0], sizes = [2, 8, 8, 32], strides = [1, 1, 1, 1]} : vector<2x10x10x32xf32> to vector<2x8x8x32xf32>
    %41 = vector.shape_cast %40 : vector<2x8x8x32xf32> to vector<128x32xf32>
    %42 = vector.extract_strided_slice %31 {offsets = [0, 1, 2, 0], sizes = [2, 8, 8, 32], strides = [1, 1, 1, 1]} : vector<2x10x10x32xf32> to vector<2x8x8x32xf32>
    %43 = vector.shape_cast %42 : vector<2x8x8x32xf32> to vector<128x32xf32>
    %44 = vector.extract_strided_slice %31 {offsets = [0, 2, 0, 0], sizes = [2, 8, 8, 32], strides = [1, 1, 1, 1]} : vector<2x10x10x32xf32> to vector<2x8x8x32xf32>
    %45 = vector.shape_cast %44 : vector<2x8x8x32xf32> to vector<128x32xf32>
    %46 = vector.extract_strided_slice %31 {offsets = [0, 2, 1, 0], sizes = [2, 8, 8, 32], strides = [1, 1, 1, 1]} : vector<2x10x10x32xf32> to vector<2x8x8x32xf32>
    %47 = vector.shape_cast %46 : vector<2x8x8x32xf32> to vector<128x32xf32>
    %48 = vector.extract_strided_slice %31 {offsets = [0, 2, 2, 0], sizes = [2, 8, 8, 32], strides = [1, 1, 1, 1]} : vector<2x10x10x32xf32> to vector<2x8x8x32xf32>
    %49 = vector.shape_cast %48 : vector<2x8x8x32xf32> to vector<128x32xf32>
    %50 = tpu.concatenate %33, %35, %37, %39, %41, %43, %45, %47, %49 in 1 : vector<128x32xf32>, vector<128x32xf32>, vector<128x32xf32>, vector<128x32xf32>, vector<128x32xf32>, vector<128x32xf32>, vector<128x32xf32>, vector<128x32xf32>, vector<128x32xf32> -> vector<128x288xf32>
    %c0_20 = arith.constant 0 : index
    %c0_21 = arith.constant 0 : index
    %51 = vector.load %arg4[%c0_20, %c0_21] : memref<288x64xf32, #tpu.memory_space<vmem>>, vector<288x64xf32>
    %cst_22 = arith.constant dense<0.000000e+00> : vector<128x64xf32>
    %52 = tpu.matmul %50, %51, %cst_22 {dimension_numbers = #tpu.dot_dimension_numbers<[1], [0], [0], [1], [0, 0, 1, 1], [], []>} : vector<128x288xf32>, vector<288x64xf32>, vector<128x64xf32> -> vector<128x64xf32>
    %c0_23 = arith.constant 0 : index
    %c0_24 = arith.constant 0 : index
    %53 = vector.load %arg5[%c0_23, %c0_24] : memref<1x64xf32, #tpu.memory_space<vmem>>, vector<1x64xf32>
    %54 = vector.broadcast %53 : vector<1x64xf32> to vector<128x64xf32>
    %55 = arith.addf %52, %54 : vector<128x64xf32>
    %cst_25 = arith.constant 0.000000e+00 : f32
    %56 = vector.broadcast %cst_25 : f32 to vector<128x64xf32>
    %57 = arith.maximumf %55, %56 : vector<128x64xf32>
    %cst_26 = arith.constant 0.000000e+00 : f32
    %58 = vector.broadcast %cst_26 : f32 to vector<2x10x10x64xf32>
    %c0_27 = arith.constant 0 : index
    %c0_28 = arith.constant 0 : index
    %c0_29 = arith.constant 0 : index
    %c0_30 = arith.constant 0 : index
    %59 = vector.load %arg19[%c0_27, %c0_28, %c0_29, %c0_30] : memref<2x10x10x64xf32, #tpu.memory_space<vmem>>, vector<2x10x10x64xf32>
    tpu.vector_store %arg19[%c0_27, %c0_28, %c0_29, %c0_30], %58 {strides = array<i32>} : memref<2x10x10x64xf32, #tpu.memory_space<vmem>>, vector<2x10x10x64xf32>,
    %60 = vector.shape_cast %57 : vector<128x64xf32> to vector<2x8x8x64xf32>
    %c0_31 = arith.constant 0 : index
    %c1_32 = arith.constant 1 : index
    %c1_33 = arith.constant 1 : index
    %c0_34 = arith.constant 0 : index
    %61 = vector.load %arg19[%c0_31, %c1_32, %c1_33, %c0_34] : memref<2x10x10x64xf32, #tpu.memory_space<vmem>>, vector<2x8x8x64xf32>
    tpu.vector_store %arg19[%c0_31, %c1_32, %c1_33, %c0_34], %60 {strides = array<i32>} : memref<2x10x10x64xf32, #tpu.memory_space<vmem>>, vector<2x8x8x64xf32>,
    %c0_35 = arith.constant 0 : index
    %c0_36 = arith.constant 0 : index
    %c0_37 = arith.constant 0 : index
    %c0_38 = arith.constant 0 : index
    %62 = vector.load %arg19[%c0_35, %c0_36, %c0_37, %c0_38] : memref<2x10x10x64xf32, #tpu.memory_space<vmem>>, vector<2x10x10x64xf32>
    %63 = vector.extract_strided_slice %62 {offsets = [0, 0, 0, 0], sizes = [2, 8, 8, 64], strides = [1, 1, 1, 1]} : vector<2x10x10x64xf32> to vector<2x8x8x64xf32>
    %64 = vector.shape_cast %63 : vector<2x8x8x64xf32> to vector<128x64xf32>
    %65 = vector.extract_strided_slice %62 {offsets = [0, 0, 1, 0], sizes = [2, 8, 8, 64], strides = [1, 1, 1, 1]} : vector<2x10x10x64xf32> to vector<2x8x8x64xf32>
    %66 = vector.shape_cast %65 : vector<2x8x8x64xf32> to vector<128x64xf32>
    %67 = vector.extract_strided_slice %62 {offsets = [0, 0, 2, 0], sizes = [2, 8, 8, 64], strides = [1, 1, 1, 1]} : vector<2x10x10x64xf32> to vector<2x8x8x64xf32>
    %68 = vector.shape_cast %67 : vector<2x8x8x64xf32> to vector<128x64xf32>
    %69 = vector.extract_strided_slice %62 {offsets = [0, 1, 0, 0], sizes = [2, 8, 8, 64], strides = [1, 1, 1, 1]} : vector<2x10x10x64xf32> to vector<2x8x8x64xf32>
    %70 = vector.shape_cast %69 : vector<2x8x8x64xf32> to vector<128x64xf32>
    %71 = vector.extract_strided_slice %62 {offsets = [0, 1, 1, 0], sizes = [2, 8, 8, 64], strides = [1, 1, 1, 1]} : vector<2x10x10x64xf32> to vector<2x8x8x64xf32>
    %72 = vector.shape_cast %71 : vector<2x8x8x64xf32> to vector<128x64xf32>
    %73 = vector.extract_strided_slice %62 {offsets = [0, 1, 2, 0], sizes = [2, 8, 8, 64], strides = [1, 1, 1, 1]} : vector<2x10x10x64xf32> to vector<2x8x8x64xf32>
    %74 = vector.shape_cast %73 : vector<2x8x8x64xf32> to vector<128x64xf32>
    %75 = vector.extract_strided_slice %62 {offsets = [0, 2, 0, 0], sizes = [2, 8, 8, 64], strides = [1, 1, 1, 1]} : vector<2x10x10x64xf32> to vector<2x8x8x64xf32>
    %76 = vector.shape_cast %75 : vector<2x8x8x64xf32> to vector<128x64xf32>
    %77 = vector.extract_strided_slice %62 {offsets = [0, 2, 1, 0], sizes = [2, 8, 8, 64], strides = [1, 1, 1, 1]} : vector<2x10x10x64xf32> to vector<2x8x8x64xf32>
    %78 = vector.shape_cast %77 : vector<2x8x8x64xf32> to vector<128x64xf32>
    %79 = vector.extract_strided_slice %62 {offsets = [0, 2, 2, 0], sizes = [2, 8, 8, 64], strides = [1, 1, 1, 1]} : vector<2x10x10x64xf32> to vector<2x8x8x64xf32>
    %80 = vector.shape_cast %79 : vector<2x8x8x64xf32> to vector<128x64xf32>
    %81 = tpu.concatenate %64, %66, %68, %70, %72, %74, %76, %78, %80 in 1 : vector<128x64xf32>, vector<128x64xf32>, vector<128x64xf32>, vector<128x64xf32>, vector<128x64xf32>, vector<128x64xf32>, vector<128x64xf32>, vector<128x64xf32>, vector<128x64xf32> -> vector<128x576xf32>
    %c0_39 = arith.constant 0 : index
    %c0_40 = arith.constant 0 : index
    %82 = vector.load %arg6[%c0_39, %c0_40] : memref<576x128xf32, #tpu.memory_space<vmem>>, vector<576x128xf32>
    %cst_41 = arith.constant dense<0.000000e+00> : vector<128x128xf32>
    %83 = tpu.matmul %81, %82, %cst_41 {dimension_numbers = #tpu.dot_dimension_numbers<[1], [0], [0], [1], [0, 0, 1, 1], [], []>} : vector<128x576xf32>, vector<576x128xf32>, vector<128x128xf32> -> vector<128x128xf32>
    %c0_42 = arith.constant 0 : index
    %c0_43 = arith.constant 0 : index
    %84 = vector.load %arg7[%c0_42, %c0_43] : memref<1x128xf32, #tpu.memory_space<vmem>>, vector<1x128xf32>
    %85 = vector.broadcast %84 : vector<1x128xf32> to vector<128x128xf32>
    %86 = arith.addf %83, %85 : vector<128x128xf32>
    %cst_44 = arith.constant 0.000000e+00 : f32
    %87 = vector.broadcast %cst_44 : f32 to vector<128x128xf32>
    %88 = arith.maximumf %86, %87 : vector<128x128xf32>
    %c0_45 = arith.constant 0 : index
    %c0_46 = arith.constant 0 : index
    %89 = vector.load %arg8[%c0_45, %c0_46] : memref<6x128xf32, #tpu.memory_space<vmem>>, vector<6x128xf32>
    %cst_47 = arith.constant dense<0.000000e+00> : vector<6x128xf32>
    %90 = tpu.matmul %89, %88, %cst_47 {dimension_numbers = #tpu.dot_dimension_numbers<[1], [1], [0], [0], [0, 0, 1, 0], [], []>} : vector<6x128xf32>, vector<128x128xf32>, vector<6x128xf32> -> vector<6x128xf32>
    %c0_48 = arith.constant 0 : index
    %c0_49 = arith.constant 0 : index
    %91 = vector.load %arg9[%c0_48, %c0_49] : memref<6x1xf32, #tpu.memory_space<vmem>>, vector<6x1xf32>
    %92 = vector.broadcast %91 : vector<6x1xf32> to vector<6x128xf32>
    %93 = arith.addf %90, %92 : vector<6x128xf32>
    %cst_50 = arith.constant 0.000000e+00 : f32
    %94 = vector.broadcast %cst_50 : f32 to vector<6x128xf32>
    %95 = arith.maximumf %93, %94 : vector<6x128xf32>
    %96 = vector.extract_strided_slice %95 {offsets = [0, 0], sizes = [6, 64], strides = [1, 1]} : vector<6x128xf32> to vector<6x64xf32>
    %97 = vector.extract_strided_slice %96 {offsets = [0, 0], sizes = [4, 64], strides = [1, 1]} : vector<6x64xf32> to vector<4x64xf32>
    %c0_51 = arith.constant 0 : index
    %c0_52 = arith.constant 0 : index
    %98 = vector.load %arg10[%c0_51, %c0_52] : memref<64x256xf32, #tpu.memory_space<vmem>>, vector<64x256xf32>
    %cst_53 = arith.constant dense<0.000000e+00> : vector<4x256xf32>
    %99 = tpu.matmul %97, %98, %cst_53 {dimension_numbers = #tpu.dot_dimension_numbers<[1], [0], [0], [1], [0, 0, 1, 1], [], []>} : vector<4x64xf32>, vector<64x256xf32>, vector<4x256xf32> -> vector<4x256xf32>
    %c0_54 = arith.constant 0 : index
    %c0_55 = arith.constant 0 : index
    %100 = vector.load %arg11[%c0_54, %c0_55] : memref<1x64xf32, #tpu.memory_space<vmem>>, vector<1x64xf32>
    %101 = vector.extract_strided_slice %99 {offsets = [0, 0], sizes = [1, 64], strides = [1, 1]} : vector<4x256xf32> to vector<1x64xf32>
    %102 = arith.addf %100, %101 : vector<1x64xf32>
    %103 = vector.extract_strided_slice %99 {offsets = [1, 64], sizes = [1, 64], strides = [1, 1]} : vector<4x256xf32> to vector<1x64xf32>
    %104 = arith.addf %102, %103 : vector<1x64xf32>
    %105 = vector.extract_strided_slice %99 {offsets = [2, 128], sizes = [1, 64], strides = [1, 1]} : vector<4x256xf32> to vector<1x64xf32>
    %106 = arith.addf %104, %105 : vector<1x64xf32>
    %107 = vector.extract_strided_slice %99 {offsets = [3, 192], sizes = [1, 64], strides = [1, 1]} : vector<4x256xf32> to vector<1x64xf32>
    %108 = arith.addf %106, %107 : vector<1x64xf32>
    %cst_56 = arith.constant dense<0xFF800000> : vector<1xf32>
    %109 = vector.multi_reduction <maximumf>, %108, %cst_56 [1] : vector<1x64xf32> to vector<1xf32>
    %110 = vector.shape_cast %109 : vector<1xf32> to vector<1x1xf32>
    %111 = vector.broadcast %110 : vector<1x1xf32> to vector<1x64xf32>
    %112 = arith.subf %108, %111 : vector<1x64xf32>
    %113 = math.exp %112 : vector<1x64xf32>
    %cst_57 = arith.constant dense<0.000000e+00> : vector<1xf32>
    %114 = vector.multi_reduction <add>, %113, %cst_57 [1] : vector<1x64xf32> to vector<1xf32>
    %115 = vector.shape_cast %114 : vector<1xf32> to vector<1x1xf32>
    %116 = tpu.reciprocal %115 {approx = true} : vector<1x1xf32> -> vector<1x1xf32>
    %117 = vector.broadcast %116 : vector<1x1xf32> to vector<1x64xf32>
    %118 = arith.mulf %113, %117 : vector<1x64xf32>
    %c0_58 = arith.constant 0 : index
    %c0_59 = arith.constant 0 : index
    %119 = vector.load %arg16[%c0_58, %c0_59] : memref<2x64xf32, #tpu.memory_space<vmem>>, vector<1x64xf32>
    tpu.vector_store %arg16[%c0_58, %c0_59], %118 {strides = array<i32>} : memref<2x64xf32, #tpu.memory_space<vmem>>, vector<1x64xf32>,
    %120 = vector.extract_strided_slice %96 {offsets = [4, 0], sizes = [2, 64], strides = [1, 1]} : vector<6x64xf32> to vector<2x64xf32>
    %c0_60 = arith.constant 0 : index
    %c0_61 = arith.constant 0 : index
    %121 = vector.load %arg12[%c0_60, %c0_61] : memref<64x128xf32, #tpu.memory_space<vmem>>, vector<64x128xf32>
    %cst_62 = arith.constant dense<0.000000e+00> : vector<2x128xf32>
    %122 = tpu.matmul %120, %121, %cst_62 {dimension_numbers = #tpu.dot_dimension_numbers<[1], [0], [0], [1], [0, 0, 1, 1], [], []>} : vector<2x64xf32>, vector<64x128xf32>, vector<2x128xf32> -> vector<2x128xf32>
    %123 = vector.extract_strided_slice %122 {offsets = [0, 0], sizes = [1, 64], strides = [1, 1]} : vector<2x128xf32> to vector<1x64xf32>
    %124 = vector.extract_strided_slice %122 {offsets = [1, 64], sizes = [1, 64], strides = [1, 1]} : vector<2x128xf32> to vector<1x64xf32>
    %125 = arith.addf %123, %124 : vector<1x64xf32>
    %c0_63 = arith.constant 0 : index
    %c0_64 = arith.constant 0 : index
    %126 = vector.load %arg13[%c0_63, %c0_64] : memref<1x64xf32, #tpu.memory_space<vmem>>, vector<1x64xf32>
    %127 = arith.addf %125, %126 : vector<1x64xf32>
    %cst_65 = arith.constant 0.000000e+00 : f32
    %128 = vector.broadcast %cst_65 : f32 to vector<1x64xf32>
    %129 = arith.maximumf %127, %128 : vector<1x64xf32>
    %c0_66 = arith.constant 0 : index
    %c0_67 = arith.constant 0 : index
    %130 = vector.load %arg14[%c0_66, %c0_67] : memref<1x64xf32, #tpu.memory_space<vmem>>, vector<1x64xf32>
    %131 = arith.mulf %129, %130 : vector<1x64xf32>
    %cst_68 = arith.constant dense<0.000000e+00> : vector<1xf32>
    %132 = vector.multi_reduction <add>, %131, %cst_68 [1] : vector<1x64xf32> to vector<1xf32>
    %133 = vector.shape_cast %132 : vector<1xf32> to vector<1x1xf32>
    %c0_69 = arith.constant 0 : index
    %c0_70 = arith.constant 0 : index
    %134 = vector.load %arg15[%c0_69, %c0_70] : memref<1x1xf32, #tpu.memory_space<vmem>>, vector<1x1xf32>
    %135 = arith.addf %133, %134 : vector<1x1xf32>
    %136 = math.tanh %135 : vector<1x1xf32>
    %c0_71 = arith.constant 0 : index
    %c0_72 = arith.constant 0 : index
    %137 = vector.load %arg17[%c0_71, %c0_72] : memref<2x1xf32, #tpu.memory_space<vmem>>, vector<1x1xf32>
    tpu.vector_store %arg17[%c0_71, %c0_72], %136 {strides = array<i32>} : memref<2x1xf32, #tpu.memory_space<vmem>>, vector<1x1xf32>,
    %138 = vector.extract_strided_slice %95 {offsets = [0, 64], sizes = [6, 64], strides = [1, 1]} : vector<6x128xf32> to vector<6x64xf32>
    %139 = vector.extract_strided_slice %138 {offsets = [0, 0], sizes = [4, 64], strides = [1, 1]} : vector<6x64xf32> to vector<4x64xf32>
    %c0_73 = arith.constant 0 : index
    %c0_74 = arith.constant 0 : index
    %140 = vector.load %arg10[%c0_73, %c0_74] : memref<64x256xf32, #tpu.memory_space<vmem>>, vector<64x256xf32>
    %cst_75 = arith.constant dense<0.000000e+00> : vector<4x256xf32>
    %141 = tpu.matmul %139, %140, %cst_75 {dimension_numbers = #tpu.dot_dimension_numbers<[1], [0], [0], [1], [0, 0, 1, 1], [], []>} : vector<4x64xf32>, vector<64x256xf32>, vector<4x256xf32> -> vector<4x256xf32>
    %c0_76 = arith.constant 0 : index
    %c0_77 = arith.constant 0 : index
    %142 = vector.load %arg11[%c0_76, %c0_77] : memref<1x64xf32, #tpu.memory_space<vmem>>, vector<1x64xf32>
    %143 = vector.extract_strided_slice %141 {offsets = [0, 0], sizes = [1, 64], strides = [1, 1]} : vector<4x256xf32> to vector<1x64xf32>
    %144 = arith.addf %142, %143 : vector<1x64xf32>
    %145 = vector.extract_strided_slice %141 {offsets = [1, 64], sizes = [1, 64], strides = [1, 1]} : vector<4x256xf32> to vector<1x64xf32>
    %146 = arith.addf %144, %145 : vector<1x64xf32>
    %147 = vector.extract_strided_slice %141 {offsets = [2, 128], sizes = [1, 64], strides = [1, 1]} : vector<4x256xf32> to vector<1x64xf32>
    %148 = arith.addf %146, %147 : vector<1x64xf32>
    %149 = vector.extract_strided_slice %141 {offsets = [3, 192], sizes = [1, 64], strides = [1, 1]} : vector<4x256xf32> to vector<1x64xf32>
    %150 = arith.addf %148, %149 : vector<1x64xf32>
    %cst_78 = arith.constant dense<0xFF800000> : vector<1xf32>
    %151 = vector.multi_reduction <maximumf>, %150, %cst_78 [1] : vector<1x64xf32> to vector<1xf32>
    %152 = vector.shape_cast %151 : vector<1xf32> to vector<1x1xf32>
    %153 = vector.broadcast %152 : vector<1x1xf32> to vector<1x64xf32>
    %154 = arith.subf %150, %153 : vector<1x64xf32>
    %155 = math.exp %154 : vector<1x64xf32>
    %cst_79 = arith.constant dense<0.000000e+00> : vector<1xf32>
    %156 = vector.multi_reduction <add>, %155, %cst_79 [1] : vector<1x64xf32> to vector<1xf32>
    %157 = vector.shape_cast %156 : vector<1xf32> to vector<1x1xf32>
    %158 = tpu.reciprocal %157 {approx = true} : vector<1x1xf32> -> vector<1x1xf32>
    %159 = vector.broadcast %158 : vector<1x1xf32> to vector<1x64xf32>
    %160 = arith.mulf %155, %159 : vector<1x64xf32>
    %c1_80 = arith.constant 1 : index
    %c0_81 = arith.constant 0 : index
    %161 = vector.load %arg16[%c1_80, %c0_81] : memref<2x64xf32, #tpu.memory_space<vmem>>, vector<1x64xf32>
    tpu.vector_store %arg16[%c1_80, %c0_81], %160 {strides = array<i32>} : memref<2x64xf32, #tpu.memory_space<vmem>>, vector<1x64xf32>,
    %162 = vector.extract_strided_slice %138 {offsets = [4, 0], sizes = [2, 64], strides = [1, 1]} : vector<6x64xf32> to vector<2x64xf32>
    %c0_82 = arith.constant 0 : index
    %c0_83 = arith.constant 0 : index
    %163 = vector.load %arg12[%c0_82, %c0_83] : memref<64x128xf32, #tpu.memory_space<vmem>>, vector<64x128xf32>
    %cst_84 = arith.constant dense<0.000000e+00> : vector<2x128xf32>
    %164 = tpu.matmul %162, %163, %cst_84 {dimension_numbers = #tpu.dot_dimension_numbers<[1], [0], [0], [1], [0, 0, 1, 1], [], []>} : vector<2x64xf32>, vector<64x128xf32>, vector<2x128xf32> -> vector<2x128xf32>
    %165 = vector.extract_strided_slice %164 {offsets = [0, 0], sizes = [1, 64], strides = [1, 1]} : vector<2x128xf32> to vector<1x64xf32>
    %166 = vector.extract_strided_slice %164 {offsets = [1, 64], sizes = [1, 64], strides = [1, 1]} : vector<2x128xf32> to vector<1x64xf32>
    %167 = arith.addf %165, %166 : vector<1x64xf32>
    %c0_85 = arith.constant 0 : index
    %c0_86 = arith.constant 0 : index
    %168 = vector.load %arg13[%c0_85, %c0_86] : memref<1x64xf32, #tpu.memory_space<vmem>>, vector<1x64xf32>
    %169 = arith.addf %167, %168 : vector<1x64xf32>
    %cst_87 = arith.constant 0.000000e+00 : f32
    %170 = vector.broadcast %cst_87 : f32 to vector<1x64xf32>
    %171 = arith.maximumf %169, %170 : vector<1x64xf32>
    %c0_88 = arith.constant 0 : index
    %c0_89 = arith.constant 0 : index
    %172 = vector.load %arg14[%c0_88, %c0_89] : memref<1x64xf32, #tpu.memory_space<vmem>>, vector<1x64xf32>
    %173 = arith.mulf %171, %172 : vector<1x64xf32>
    %cst_90 = arith.constant dense<0.000000e+00> : vector<1xf32>
    %174 = vector.multi_reduction <add>, %173, %cst_90 [1] : vector<1x64xf32> to vector<1xf32>
    %175 = vector.shape_cast %174 : vector<1xf32> to vector<1x1xf32>
    %c0_91 = arith.constant 0 : index
    %c0_92 = arith.constant 0 : index
    %176 = vector.load %arg15[%c0_91, %c0_92] : memref<1x1xf32, #tpu.memory_space<vmem>>, vector<1x1xf32>
    %177 = arith.addf %175, %176 : vector<1x1xf32>
    %178 = math.tanh %177 : vector<1x1xf32>
    %c1_93 = arith.constant 1 : index
    %c0_94 = arith.constant 0 : index
    %179 = vector.load %arg17[%c1_93, %c0_94] : memref<2x1xf32, #tpu.memory_space<vmem>>, vector<1x1xf32>
    tpu.vector_store %arg17[%c1_93, %c0_94], %178 {strides = array<i32>} : memref<2x1xf32, #tpu.memory_space<vmem>>, vector<1x1xf32>,
    return
  }
  func.func @transform_0(%arg0: i32) -> (i32, i32, i32, i32) {
    %c0_i32 = arith.constant 0 : i32
    %c0_i32_0 = arith.constant 0 : i32
    %c0_i32_1 = arith.constant 0 : i32
    %c0_i32_2 = arith.constant 0 : i32
    %c0_i32_3 = arith.constant 0 : i32
    return %c0_i32, %c0_i32_0, %c0_i32_1, %c0_i32_2 : i32, i32, i32, i32
  }
  func.func @transform_1(%arg0: i32) -> (i32, i32) {
    %c0_i32 = arith.constant 0 : i32
    %c0_i32_0 = arith.constant 0 : i32
    %c0_i32_1 = arith.constant 0 : i32
    return %c0_i32, %c0_i32_0 : i32, i32
  }
  func.func @transform_2(%arg0: i32) -> (i32, i32) {
    %c0_i32 = arith.constant 0 : i32
    %c0_i32_0 = arith.constant 0 : i32
    %c0_i32_1 = arith.constant 0 : i32
    return %c0_i32, %c0_i32_0 : i32, i32
  }
  func.func @transform_3(%arg0: i32) -> (i32, i32) {
    %c0_i32 = arith.constant 0 : i32
    %c0_i32_0 = arith.constant 0 : i32
    %c0_i32_1 = arith.constant 0 : i32
    return %c0_i32, %c0_i32_0 : i32, i32
  }
  func.func @transform_4(%arg0: i32) -> (i32, i32) {
    %c0_i32 = arith.constant 0 : i32
    %c0_i32_0 = arith.constant 0 : i32
    %c0_i32_1 = arith.constant 0 : i32
    return %c0_i32, %c0_i32_0 : i32, i32
  }
  func.func @transform_5(%arg0: i32) -> (i32, i32) {
    %c0_i32 = arith.constant 0 : i32
    %c0_i32_0 = arith.constant 0 : i32
    %c0_i32_1 = arith.constant 0 : i32
    return %c0_i32, %c0_i32_0 : i32, i32
  }
  func.func @transform_6(%arg0: i32) -> (i32, i32) {
    %c0_i32 = arith.constant 0 : i32
    %c0_i32_0 = arith.constant 0 : i32
    %c0_i32_1 = arith.constant 0 : i32
    return %c0_i32, %c0_i32_0 : i32, i32
  }
  func.func @transform_7(%arg0: i32) -> (i32, i32) {
    %c0_i32 = arith.constant 0 : i32
    %c0_i32_0 = arith.constant 0 : i32
    %c0_i32_1 = arith.constant 0 : i32
    return %c0_i32, %c0_i32_0 : i32, i32
  }
  func.func @transform_8(%arg0: i32) -> (i32, i32) {
    %c0_i32 = arith.constant 0 : i32
    %c0_i32_0 = arith.constant 0 : i32
    %c0_i32_1 = arith.constant 0 : i32
    return %c0_i32, %c0_i32_0 : i32, i32
  }
  func.func @transform_9(%arg0: i32) -> (i32, i32) {
    %c0_i32 = arith.constant 0 : i32
    %c0_i32_0 = arith.constant 0 : i32
    %c0_i32_1 = arith.constant 0 : i32
    return %c0_i32, %c0_i32_0 : i32, i32
  }
  func.func @transform_10(%arg0: i32) -> (i32, i32) {
    %c0_i32 = arith.constant 0 : i32
    %c0_i32_0 = arith.constant 0 : i32
    %c0_i32_1 = arith.constant 0 : i32
    return %c0_i32, %c0_i32_0 : i32, i32
  }
  func.func @transform_11(%arg0: i32) -> (i32, i32) {
    %c0_i32 = arith.constant 0 : i32
    %c0_i32_0 = arith.constant 0 : i32
    %c0_i32_1 = arith.constant 0 : i32
    return %c0_i32, %c0_i32_0 : i32, i32
  }
  func.func @transform_12(%arg0: i32) -> (i32, i32) {
    %c0_i32 = arith.constant 0 : i32
    %c0_i32_0 = arith.constant 0 : i32
    %c0_i32_1 = arith.constant 0 : i32
    return %c0_i32, %c0_i32_0 : i32, i32
  }
  func.func @transform_13(%arg0: i32) -> (i32, i32) {
    %c0_i32 = arith.constant 0 : i32
    %c0_i32_0 = arith.constant 0 : i32
    %c0_i32_1 = arith.constant 0 : i32
    return %c0_i32, %c0_i32_0 : i32, i32
  }
  func.func @transform_14(%arg0: i32) -> (i32, i32) {
    %c0_i32 = arith.constant 0 : i32
    %c0_i32_0 = arith.constant 0 : i32
    %c0_i32_1 = arith.constant 0 : i32
    return %c0_i32, %c0_i32_0 : i32, i32
  }
  func.func @transform_15(%arg0: i32) -> (i32, i32) {
    %c0_i32 = arith.constant 0 : i32
    %c0_i32_0 = arith.constant 0 : i32
    %c0_i32_1 = arith.constant 0 : i32
    return %c0_i32, %c0_i32_0 : i32, i32
  }
  func.func @transform_16(%arg0: i32) -> (i32, i32) {
    %c0_i32 = arith.constant 0 : i32
    %c0_i32_0 = arith.constant 0 : i32
    %c0_i32_1 = arith.constant 0 : i32
    return %c0_i32, %c0_i32_0 : i32, i32
  }
}

</mosaic_0001>

<llo_original>
// kernel: policy_value_forward.1
$region0: #{policy_value_forward.1}
  #allocation0 [shape = 'u32[]', space=smem, size = 0x4, offset = 0x4, fixed_abs, tag = 'smem constant byte address 0x4 - core index']
  #allocation1 [shape = 'u32[72,128]{1,0:T(1,128)}', space=vmem, size = 0x9000, scoped, tag = 'internal scratch']
  #allocation2 [shape = 'f32[2,10,10,32]{3,2,1,0:T(8,128)}', space=vmem, size = 0x28000, scoped, tag = 'scratch operand']
  #allocation3 [shape = 'f32[2,10,10,64]{3,2,1,0:T(8,128)}', space=vmem, size = 0x28000, scoped, tag = 'scratch operand']
  #allocation4 [shape = 'f32[1,1]{1,0:T(1,128)S(1)}', space=vmem, size = 0x200, scoped, tag = 'scoped memory for policy_value_forward.1']
  %s0 = inlined_call_operand.vmem [shape: f32[2,10,10,4], index: 0, kind: input, shape index: {}]
  %s1 = inlined_call_operand.vmem [shape: f32[36,32], index: 1, kind: input, shape index: {}]
  %s2 = inlined_call_operand.vmem [shape: f32[1,32], index: 2, kind: input, shape index: {}]
  %s3 = inlined_call_operand.vmem [shape: f32[288,64], index: 3, kind: input, shape index: {}]
  %s4 = inlined_call_operand.vmem [shape: f32[1,64], index: 4, kind: input, shape index: {}]
  %s5 = inlined_call_operand.vmem [shape: f32[576,128], index: 5, kind: input, shape index: {}]
  %s6 = inlined_call_operand.vmem [shape: f32[1,128], index: 6, kind: input, shape index: {}]
  %s7 = inlined_call_operand.vmem [shape: f32[6,128], index: 7, kind: input, shape index: {}]
  %s8 = inlined_call_operand.vmem [shape: f32[6,1], index: 8, kind: input, shape index: {}]
  %s9 = inlined_call_operand.vmem [shape: f32[64,256], index: 9, kind: input, shape index: {}]
  %s10 = inlined_call_operand.vmem [shape: f32[1,64], index: 10, kind: input, shape index: {}]
  %s11 = inlined_call_operand.vmem [shape: f32[64,128], index: 11, kind: input, shape index: {}]
  %s12 = inlined_call_operand.vmem [shape: f32[1,64], index: 12, kind: input, shape index: {}]
  %s13 = inlined_call_operand.vmem [shape: f32[1,64], index: 13, kind: input, shape index: {}]
  %s14 = inlined_call_operand.<no memory space> [shape: f32[1,1], index: 14, kind: input, shape index: {}]
  %s15 = inlined_call_operand.hbm [shape: f32[2,64], index: 15, kind: output, shape index: {0}]
  %s16 = inlined_call_operand.vmem [shape: f32[2,1], index: 16, kind: output, shape index: {1}]
  %17 = xla_tuple %s15, %s16
  %s18 = sld [smem:[#allocation0]]
  $region78: #{policy_value_forward.1} parent=0
    _
  %s20 = ssub.s32 1, %s18
  %s21 = scalar_select 0, %s20, %s18
  %v22 = vstv %s14
  %23 = vst [vmem:[#allocation4] sm:$0x1] %v22
  $region1: #{policy_value_forward.1} parent=0
    #allocation5 [shape = 'u8[1024]{0}', space=vmem, size = 0x400, scoped, tag = 'output window, operand 0, single buffered']
    #allocation6 [shape = 's32[1]{0}', space=sflag, size = 0x4, scoped, tag = 'scoped memory for policy_value_forward.1']
    %24 = vsyncpa [#allocation6], 0
    // Predicated region
    $region2: #{policy_value_forward.1} parent=1 // pred_check
      _
    $region3: #{policy_value_forward.1} parent=1 // pred_check_branch
      %26 = sbr.rel (0) target = $region5
    $region4: #{policy_value_forward.1} parent=1 // pred_region
      _
    $region5: #{policy_value_forward.1} parent=1 // pred_fallthru
      _
    // Predicated region
    $region6: #{policy_value_forward.1} parent=1 // pred_check
      _
    $region7: #{policy_value_forward.1} parent=1 // pred_check_branch
      %28 = sbr.rel (0) target = $region9
    $region8: #{policy_value_forward.1} parent=1 // pred_region
      _
    $region9: #{policy_value_forward.1} parent=1 // pred_fallthru
      _
    // Predicated region
    $region10: #{policy_value_forward.1} parent=1 // pred_check
      _
    $region11: #{policy_value_forward.1} parent=1 // pred_check_branch
      %30 = sbr.rel (0) target = $region13
    $region12: #{policy_value_forward.1} parent=1 // pred_region
      _
    $region13: #{policy_value_forward.1} parent=1 // pred_fallthru
      _
    // Predicated region
    $region14: #{policy_value_forward.1} parent=1 // pred_check
      _
    $region15: #{policy_value_forward.1} parent=1 // pred_check_branch
      %32 = sbr.rel (0) target = $region17
    $region16: #{policy_value_forward.1} parent=1 // pred_region
      _
    $region17: #{policy_value_forward.1} parent=1 // pred_fallthru
      _
    // Predicated region
    $region18: #{policy_value_forward.1} parent=1 // pred_check
      _
    $region19: #{policy_value_forward.1} parent=1 // pred_check_branch
      %34 = sbr.rel (0) target = $region21
    $region20: #{policy_value_forward.1} parent=1 // pred_region
      _
    $region21: #{policy_value_forward.1} parent=1 // pred_fallthru
      _
    // Predicated region
    $region22: #{policy_value_forward.1} parent=1 // pred_check
      _
    $region23: #{policy_value_forward.1} parent=1 // pred_check_branch
      %36 = sbr.rel (0) target = $region25
    $region24: #{policy_value_forward.1} parent=1 // pred_region
      _
    $region25: #{policy_value_forward.1} parent=1 // pred_fallthru
      _
    // Predicated region
    $region26: #{policy_value_forward.1} parent=1 // pred_check
      _
    $region27: #{policy_value_forward.1} parent=1 // pred_check_branch
      %38 = sbr.rel (0) target = $region29
    $region28: #{policy_value_forward.1} parent=1 // pred_region
      _
    $region29: #{policy_value_forward.1} parent=1 // pred_fallthru
      _
    // Predicated region
    $region30: #{policy_value_forward.1} parent=1 // pred_check
      _
    $region31: #{policy_value_forward.1} parent=1 // pred_check_branch
      %40 = sbr.rel (0) target = $region33
    $region32: #{policy_value_forward.1} parent=1 // pred_region
      _
    $region33: #{policy_value_forward.1} parent=1 // pred_fallthru
      _
    // Predicated region
    $region34: #{policy_value_forward.1} parent=1 // pred_check
      _
    $region35: #{policy_value_forward.1} parent=1 // pred_check_branch
      %42 = sbr.rel (0) target = $region37
    $region36: #{policy_value_forward.1} parent=1 // pred_region
      _
    $region37: #{policy_value_forward.1} parent=1 // pred_fallthru
      _
    // Predicated region
    $region38: #{policy_value_forward.1} parent=1 // pred_check
      _
    $region39: #{policy_value_forward.1} parent=1 // pred_check_branch
      %44 = sbr.rel (0) target = $region41
    $region40: #{policy_value_forward.1} parent=1 // pred_region
      _
    $region41: #{policy_value_forward.1} parent=1 // pred_fallthru
      _
    // Predicated region
    $region42: #{policy_value_forward.1} parent=1 // pred_check
      _
    $region43: #{policy_value_forward.1} parent=1 // pred_check_branch
      %46 = sbr.rel (0) target = $region45
    $region44: #{policy_value_forward.1} parent=1 // pred_region
      _
    $region45: #{policy_value_forward.1} parent=1 // pred_fallthru
      _
    // Predicated region
    $region46: #{policy_value_forward.1} parent=1 // pred_check
      _
    $region47: #{policy_value_forward.1} parent=1 // pred_check_branch
      %48 = sbr.rel (0) target = $region49
    $region48: #{policy_value_forward.1} parent=1 // pred_region
      _
    $region49: #{policy_value_forward.1} parent=1 // pred_fallthru
      _
    // Predicated region
    $region50: #{policy_value_forward.1} parent=1 // pred_check
      _
    $region51: #{policy_value_forward.1} parent=1 // pred_check_branch
      %50 = sbr.rel (0) target = $region53
    $region52: #{policy_value_forward.1} parent=1 // pred_region
      _
    $region53: #{policy_value_forward.1} parent=1 // pred_fallthru
      _
    // Predicated region
    $region54: #{policy_value_forward.1} parent=1 // pred_check
      _
    $region55: #{policy_value_forward.1} parent=1 // pred_check_branch
      %52 = sbr.rel (0) target = $region57
    $region56: #{policy_value_forward.1} parent=1 // pred_region
      _
    $region57: #{policy_value_forward.1} parent=1 // pred_fallthru
      _
    // Predicated region
    $region58: #{policy_value_forward.1} parent=1 // pred_check
      _
    $region59: #{policy_value_forward.1} parent=1 // pred_check_branch
      %54 = sbr.rel (0) target = $region61
    $region60: #{policy_value_forward.1} parent=1 // pred_region
      _
    $region61: #{policy_value_forward.1} parent=1 // pred_fallthru
      _
    %v55 = vld [vmem:[%s0] sm:$0xff]
    %v56 = vld [vmem:[%s0 + $0x8] sm:$0x3]
    %v57 = vld [vmem:[%s0 + $0x10] sm:$0xff]
    %v58 = vld [vmem:[%s0 + $0x18] sm:$0x3]
    %v59 = vld [vmem:[%s0 + $0x20] sm:$0xff]
    %v60 = vld [vmem:[%s0 + $0x28] sm:$0x3]
    %v61 = vld [vmem:[%s0 + $0x30] sm:$0xff]
    %v62 = vld [vmem:[%s0 + $0x38] sm:$0x3]
    %v63 = vld [vmem:[%s0 + $0x40] sm:$0xff]
    %v64 = vld [vmem:[%s0 + $0x48] sm:$0x3]
    %v65 = vld [vmem:[%s0 + $0x50] sm:$0xff]
    %v66 = vld [vmem:[%s0 + $0x58] sm:$0x3]
    %v67 = vld [vmem:[%s0 + $0x60] sm:$0xff]
    %v68 = vld [vmem:[%s0 + $0x68] sm:$0x3]
    %v69 = vld [vmem:[%s0 + $0x70] sm:$0xff]
    %v70 = vld [vmem:[%s0 + $0x78] sm:$0x3]
    %v71 = vld [vmem:[%s0 + $0x80] sm:$0xff]
    %v72 = vld [vmem:[%s0 + $0x88] sm:$0x3]
    %v73 = vld [vmem:[%s0 + $0x90] sm:$0xff]
    %v74 = vld [vmem:[%s0 + $0x98] sm:$0x3]
    %v75 = vld [vmem:[%s0 + $0xa0] sm:$0xff]
    %v76 = vld [vmem:[%s0 + $0xa8] sm:$0x3]
    %v77 = vld [vmem:[%s0 + $0xb0] sm:$0xff]
    %v78 = vld [vmem:[%s0 + $0xb8] sm:$0x3]
    %v79 = vld [vmem:[%s0 + $0xc0] sm:$0xff]
    %v80 = vld [vmem:[%s0 + $0xc8] sm:$0x3]
    %v81 = vld [vmem:[%s0 + $0xd0] sm:$0xff]
    %v82 = vld [vmem:[%s0 + $0xd8] sm:$0x3]
    %v83 = vld [vmem:[%s0 + $0xe0] sm:$0xff]
    %v84 = vld [vmem:[%s0 + $0xe8] sm:$0x3]
    %v85 = vld [vmem:[%s0 + $0xf0] sm:$0xff]
    %v86 = vld [vmem:[%s0 + $0xf8] sm:$0x3]
    %v87 = vld [vmem:[%s0 + $0x100] sm:$0xff]
    %v88 = vld [vmem:[%s0 + $0x108] sm:$0x3]
    %v89 = vld [vmem:[%s0 + $0x110] sm:$0xff]
    %v90 = vld [vmem:[%s0 + $0x118] sm:$0x3]
    %v91 = vld [vmem:[%s0 + $0x120] sm:$0xff]
    %v92 = vld [vmem:[%s0 + $0x128] sm:$0x3]
    %v93 = vld [vmem:[%s0 + $0x130] sm:$0xff]
    %v94 = vld [vmem:[%s0 + $0x138] sm:$0x3]
    %vm127 = vcmask 1046528
    %v128 = vrot.slane %v55, 1
    %v129 = vrot.slane %v56, 1
    %v130 = vsel %vm127, %v128, %v129
    %v131 = vrot.slane %v57, 1
    %v132 = vrot.slane %v58, 1
    %v133 = vsel %vm127, %v131, %v132
    %v134 = vrot.slane %v59, 1
    %v135 = vrot.slane %v60, 1
    %v136 = vsel %vm127, %v134, %v135
    %v137 = vrot.slane %v61, 1
    %v138 = vrot.slane %v62, 1
    %v139 = vsel %vm127, %v137, %v138
    %v140 = vrot.slane %v63, 1
    %v141 = vrot.slane %v64, 1
    %v142 = vsel %vm127, %v140, %v141
    %v143 = vrot.slane %v65, 1
    %v144 = vrot.slane %v66, 1
    %v145 = vsel %vm127, %v143, %v144
    %v146 = vrot.slane %v67, 1
    %v147 = vrot.slane %v68, 1
    %v148 = vsel %vm127, %v146, %v147
    %v149 = vrot.slane %v69, 1
    %v150 = vrot.slane %v70, 1
    %v151 = vsel %vm127, %v149, %v150
    %v152 = vrot.slane %v75, 1
    %v153 = vrot.slane %v76, 1
    %v154 = vsel %vm127, %v152, %v153
    %v155 = vrot.slane %v77, 1
    %v156 = vrot.slane %v78, 1
    %v157 = vsel %vm127, %v155, %v156
    %v158 = vrot.slane %v79, 1
    %v159 = vrot.slane %v80, 1
    %v160 = vsel %vm127, %v158, %v159
    %v161 = vrot.slane %v81, 1
    %v162 = vrot.slane %v82, 1
    %v163 = vsel %vm127, %v161, %v162
    %v164 = vrot.slane %v83, 1
    %v165 = vrot.slane %v84, 1
    %v166 = vsel %vm127, %v164, %v165
    %v167 = vrot.slane %v85, 1
    %v168 = vrot.slane %v86, 1
    %v169 = vsel %vm127, %v167, %v168
    %v170 = vrot.slane %v87, 1
    %v171 = vrot.slane %v88, 1
    %v172 = vsel %vm127, %v170, %v171
    %v173 = vrot.slane %v89, 1
    %v174 = vrot.slane %v90, 1
    %v175 = vsel %vm127, %v173, %v174
    %vm176 = vcmask 1045504
    %v177 = vrot.slane %v55, 2
    %v178 = vrot.slane %v56, 2
    %v179 = vsel %vm176, %v177, %v178
    %v180 = vrot.slane %v57, 2
    %v181 = vrot.slane %v58, 2
    %v182 = vsel %vm176, %v180, %v181
    %v183 = vrot.slane %v59, 2
    %v184 = vrot.slane %v60, 2
    %v185 = vsel %vm176, %v183, %v184
    %v186 = vrot.slane %v61, 2
    %v187 = vrot.slane %v62, 2
    %v188 = vsel %vm176, %v186, %v187
    %v189 = vrot.slane %v63, 2
    %v190 = vrot.slane %v64, 2
    %v191 = vsel %vm176, %v189, %v190
    %v192 = vrot.slane %v65, 2
    %v193 = vrot.slane %v66, 2
    %v194 = vsel %vm176, %v192, %v193
    %v195 = vrot.slane %v67, 2
    %v196 = vrot.slane %v68, 2
    %v197 = vsel %vm176, %v195, %v196
    %v198 = vrot.slane %v69, 2
    %v199 = vrot.slane %v70, 2
    %v200 = vsel %vm176, %v198, %v199
    %v201 = vrot.slane %v75, 2
    %v202 = vrot.slane %v76, 2
    %v203 = vsel %vm176, %v201, %v202
    %v204 = vrot.slane %v77, 2
    %v205 = vrot.slane %v78, 2
    %v206 = vsel %vm176, %v204, %v205
    %v207 = vrot.slane %v79, 2
    %v208 = vrot.slane %v80, 2
    %v209 = vsel %vm176, %v207, %v208
    %v210 = vrot.slane %v81, 2
    %v211 = vrot.slane %v82, 2
    %v212 = vsel %vm176, %v210, %v211
    %v213 = vrot.slane %v83, 2
    %v214 = vrot.slane %v84, 2
    %v215 = vsel %vm176, %v213, %v214
    %v216 = vrot.slane %v85, 2
    %v217 = vrot.slane %v86, 2
    %v218 = vsel %vm176, %v216, %v217
    %v219 = vrot.slane %v87, 2
    %v220 = vrot.slane %v88, 2
    %v221 = vsel %vm176, %v219, %v220
    %v222 = vrot.slane %v89, 2
    %v223 = vrot.slane %v90, 2
    %v224 = vsel %vm176, %v222, %v223
    %v229 = vrot.slane %v71, 1
    %v230 = vrot.slane %v72, 1
    %v231 = vsel %vm127, %v229, %v230
    %v232 = vrot.slane %v91, 1
    %v233 = vrot.slane %v92, 1
    %v234 = vsel %vm127, %v232, %v233
    %v235 = vrot.slane %v71, 2
    %v236 = vrot.slane %v72, 2
    %v237 = vsel %vm176, %v235, %v236
    %v238 = vrot.slane %v91, 2
    %v239 = vrot.slane %v92, 2
    %v240 = vsel %vm176, %v238, %v239
    %v245 = vrot.slane %v73, 1
    %v246 = vrot.slane %v74, 1
    %v247 = vsel %vm127, %v245, %v246
    %v248 = vrot.slane %v93, 1
    %v249 = vrot.slane %v94, 1
    %v250 = vsel %vm127, %v248, %v249
    %v251 = vrot.slane %v73, 2
    %v252 = vrot.slane %v74, 2
    %v253 = vsel %vm176, %v251, %v252
    %v254 = vrot.slane %v93, 2
    %v255 = vrot.slane %v94, 2
    %v256 = vsel %vm176, %v254, %v255
    %257 = vrot.lane.b32.xlu0 %v130, 4
    %v258 = vpop.permute.xlu0 %257
    %259 = vrot.lane.b32.xlu0 %v133, 4
    %v260 = vpop.permute.xlu0 %259
    %261 = vrot.lane.b32.xlu0 %v136, 4
    %v262 = vpop.permute.xlu0 %261
    %263 = vrot.lane.b32.xlu0 %v139, 4
    %v264 = vpop.permute.xlu0 %263
    %265 = vrot.lane.b32.xlu0 %v142, 4
    %v266 = vpop.permute.xlu0 %265
    %267 = vrot.lane.b32.xlu0 %v145, 4
    %v268 = vpop.permute.xlu0 %267
    %269 = vrot.lane.b32.xlu0 %v148, 4
    %v270 = vpop.permute.xlu0 %269
    %271 = vrot.lane.b32.xlu0 %v151, 4
    %v272 = vpop.permute.xlu0 %271
    %273 = vrot.lane.b32.xlu0 %v154, 4
    %v274 = vpop.permute.xlu0 %273
    %275 = vrot.lane.b32.xlu0 %v157, 4
    %v276 = vpop.permute.xlu0 %275
    %277 = vrot.lane.b32.xlu0 %v160, 4
    %v278 = vpop.permute.xlu0 %277
    %279 = vrot.lane.b32.xlu0 %v163, 4
    %v280 = vpop.permute.xlu0 %279
    %281 = vrot.lane.b32.xlu0 %v166, 4
    %v282 = vpop.permute.xlu0 %281
    %283 = vrot.lane.b32.xlu0 %v169, 4
    %v284 = vpop.permute.xlu0 %283
    %285 = vrot.lane.b32.xlu0 %v172, 4
    %v286 = vpop.permute.xlu0 %285
    %287 = vrot.lane.b32.xlu0 %v175, 4
    %v288 = vpop.permute.xlu0 %287
    %305 = vrot.lane.b32.xlu0 %v179, 8
    %v306 = vpop.permute.xlu0 %305
    %307 = vrot.lane.b32.xlu0 %v182, 8
    %v308 = vpop.permute.xlu0 %307
    %309 = vrot.lane.b32.xlu0 %v185, 8
    %v310 = vpop.permute.xlu0 %309
    %311 = vrot.lane.b32.xlu0 %v188, 8
    %v312 = vpop.permute.xlu0 %311
    %313 = vrot.lane.b32.xlu0 %v191, 8
    %v314 = vpop.permute.xlu0 %313
    %315 = vrot.lane.b32.xlu0 %v194, 8
    %v316 = vpop.permute.xlu0 %315
    %317 = vrot.lane.b32.xlu0 %v197, 8
    %v318 = vpop.permute.xlu0 %317
    %319 = vrot.lane.b32.xlu0 %v200, 8
    %v320 = vpop.permute.xlu0 %319
    %321 = vrot.lane.b32.xlu0 %v203, 8
    %v322 = vpop.permute.xlu0 %321
    %323 = vrot.lane.b32.xlu0 %v206, 8
    %v324 = vpop.permute.xlu0 %323
    %325 = vrot.lane.b32.xlu0 %v209, 8
    %v326 = vpop.permute.xlu0 %325
    %327 = vrot.lane.b32.xlu0 %v212, 8
    %v328 = vpop.permute.xlu0 %327
    %329 = vrot.lane.b32.xlu0 %v215, 8
    %v330 = vpop.permute.xlu0 %329
    %331 = vrot.lane.b32.xlu0 %v218, 8
    %v332 = vpop.permute.xlu0 %331
    %333 = vrot.lane.b32.xlu0 %v221, 8
    %v334 = vpop.permute.xlu0 %333
    %335 = vrot.lane.b32.xlu0 %v224, 8
    %v336 = vpop.permute.xlu0 %335
    %353 = vrot.lane.b32.xlu0 %v57, 12
    %v354 = vpop.permute.xlu0 %353
    %355 = vrot.lane.b32.xlu0 %v59, 12
    %v356 = vpop.permute.xlu0 %355
    %357 = vrot.lane.b32.xlu0 %v61, 12
    %v358 = vpop.permute.xlu0 %357
    %359 = vrot.lane.b32.xlu0 %v63, 12
    %v360 = vpop.permute.xlu0 %359
    %361 = vrot.lane.b32.xlu0 %v65, 12
    %v362 = vpop.permute.xlu0 %361
    %363 = vrot.lane.b32.xlu0 %v67, 12
    %v364 = vpop.permute.xlu0 %363
    %365 = vrot.lane.b32.xlu0 %v69, 12
    %v366 = vpop.permute.xlu0 %365
    %367 = vrot.lane.b32.xlu0 %v71, 12
    %v368 = vpop.permute.xlu0 %367
    %369 = vrot.lane.b32.xlu0 %v77, 12
    %v370 = vpop.permute.xlu0 %369
    %371 = vrot.lane.b32.xlu0 %v79, 12
    %v372 = vpop.permute.xlu0 %371
    %373 = vrot.lane.b32.xlu0 %v81, 12
    %v374 = vpop.permute.xlu0 %373
    %375 = vrot.lane.b32.xlu0 %v83, 12
    %v376 = vpop.permute.xlu0 %375
    %377 = vrot.lane.b32.xlu0 %v85, 12
    %v378 = vpop.permute.xlu0 %377
    %379 = vrot.lane.b32.xlu0 %v87, 12
    %v380 = vpop.permute.xlu0 %379
    %381 = vrot.lane.b32.xlu0 %v89, 12
    %v382 = vpop.permute.xlu0 %381
    %383 = vrot.lane.b32.xlu0 %v91, 12
    %v384 = vpop.permute.xlu0 %383
    %401 = vrot.lane.b32.xlu0 %v133, 16
    %v402 = vpop.permute.xlu0 %401
    %403 = vrot.lane.b32.xlu0 %v136, 16
    %v404 = vpop.permute.xlu0 %403
    %405 = vrot.lane.b32.xlu0 %v139, 16
    %v406 = vpop.permute.xlu0 %405
    %407 = vrot.lane.b32.xlu0 %v142, 16
    %v408 = vpop.permute.xlu0 %407
    %409 = vrot.lane.b32.xlu0 %v145, 16
    %v410 = vpop.permute.xlu0 %409
    %411 = vrot.lane.b32.xlu0 %v148, 16
    %v412 = vpop.permute.xlu0 %411
    %413 = vrot.lane.b32.xlu0 %v151, 16
    %v414 = vpop.permute.xlu0 %413
    %415 = vrot.lane.b32.xlu0 %v231, 16
    %v416 = vpop.permute.xlu0 %415
    %417 = vrot.lane.b32.xlu0 %v157, 16
    %v418 = vpop.permute.xlu0 %417
    %419 = vrot.lane.b32.xlu0 %v160, 16
    %v420 = vpop.permute.xlu0 %419
    %421 = vrot.lane.b32.xlu0 %v163, 16
    %v422 = vpop.permute.xlu0 %421
    %423 = vrot.lane.b32.xlu0 %v166, 16
    %v424 = vpop.permute.xlu0 %423
    %425 = vrot.lane.b32.xlu0 %v169, 16
    %v426 = vpop.permute.xlu0 %425
    %427 = vrot.lane.b32.xlu0 %v172, 16
    %v428 = vpop.permute.xlu0 %427
    %429 = vrot.lane.b32.xlu0 %v175, 16
    %v430 = vpop.permute.xlu0 %429
    %431 = vrot.lane.b32.xlu0 %v234, 16
    %v432 = vpop.permute.xlu0 %431
    %449 = vrot.lane.b32.xlu0 %v182, 20
    %v450 = vpop.permute.xlu0 %449
    %451 = vrot.lane.b32.xlu0 %v185, 20
    %v452 = vpop.permute.xlu0 %451
    %453 = vrot.lane.b32.xlu0 %v188, 20
    %v454 = vpop.permute.xlu0 %453
    %455 = vrot.lane.b32.xlu0 %v191, 20
    %v456 = vpop.permute.xlu0 %455
    %457 = vrot.lane.b32.xlu0 %v194, 20
    %v458 = vpop.permute.xlu0 %457
    %459 = vrot.lane.b32.xlu0 %v197, 20
    %v460 = vpop.permute.xlu0 %459
    %461 = vrot.lane.b32.xlu0 %v200, 20
    %v462 = vpop.permute.xlu0 %461
    %463 = vrot.lane.b32.xlu0 %v237, 20
    %v464 = vpop.permute.xlu0 %463
    %465 = vrot.lane.b32.xlu0 %v206, 20
    %v466 = vpop.permute.xlu0 %465
    %467 = vrot.lane.b32.xlu0 %v209, 20
    %v468 = vpop.permute.xlu0 %467
    %469 = vrot.lane.b32.xlu0 %v212, 20
    %v470 = vpop.permute.xlu0 %469
    %471 = vrot.lane.b32.xlu0 %v215, 20
    %v472 = vpop.permute.xlu0 %471
    %473 = vrot.lane.b32.xlu0 %v218, 20
    %v474 = vpop.permute.xlu0 %473
    %475 = vrot.lane.b32.xlu0 %v221, 20
    %v476 = vpop.permute.xlu0 %475
    %477 = vrot.lane.b32.xlu0 %v224, 20
    %v478 = vpop.permute.xlu0 %477
    %479 = vrot.lane.b32.xlu0 %v240, 20
    %v480 = vpop.permute.xlu0 %479
    %497 = vrot.lane.b32.xlu0 %v59, 24
    %v498 = vpop.permute.xlu0 %497
    %499 = vrot.lane.b32.xlu0 %v61, 24
    %v500 = vpop.permute.xlu0 %499
    %501 = vrot.lane.b32.xlu0 %v63, 24
    %v502 = vpop.permute.xlu0 %501
    %503 = vrot.lane.b32.xlu0 %v65, 24
    %v504 = vpop.permute.xlu0 %503
    %505 = vrot.lane.b32.xlu0 %v67, 24
    %v506 = vpop.permute.xlu0 %505
    %507 = vrot.lane.b32.xlu0 %v69, 24
    %v508 = vpop.permute.xlu0 %507
    %509 = vrot.lane.b32.xlu0 %v71, 24
    %v510 = vpop.permute.xlu0 %509
    %511 = vrot.lane.b32.xlu0 %v73, 24
    %v512 = vpop.permute.xlu0 %511
    %513 = vrot.lane.b32.xlu0 %v79, 24
    %v514 = vpop.permute.xlu0 %513
    %515 = vrot.lane.b32.xlu0 %v81, 24
    %v516 = vpop.permute.xlu0 %515
    %517 = vrot.lane.b32.xlu0 %v83, 24
    %v518 = vpop.permute.xlu0 %517
    %519 = vrot.lane.b32.xlu0 %v85, 24
    %v520 = vpop.permute.xlu0 %519
    %521 = vrot.lane.b32.xlu0 %v87, 24
    %v522 = vpop.permute.xlu0 %521
    %523 = vrot.lane.b32.xlu0 %v89, 24
    %v524 = vpop.permute.xlu0 %523
    %525 = vrot.lane.b32.xlu0 %v91, 24
    %v526 = vpop.permute.xlu0 %525
    %527 = vrot.lane.b32.xlu0 %v93, 24
    %v528 = vpop.permute.xlu0 %527
    %545 = vrot.lane.b32.xlu0 %v136, 28
    %v546 = vpop.permute.xlu0 %545
    %547 = vrot.lane.b32.xlu0 %v139, 28
    %v548 = vpop.permute.xlu0 %547
    %549 = vrot.lane.b32.xlu0 %v142, 28
    %v550 = vpop.permute.xlu0 %549
    %551 = vrot.lane.b32.xlu0 %v145, 28
    %v552 = vpop.permute.xlu0 %551
    %553 = vrot.lane.b32.xlu0 %v148, 28
    %v554 = vpop.permute.xlu0 %553
    %555 = vrot.lane.b32.xlu0 %v151, 28
    %v556 = vpop.permute.xlu0 %555
    %557 = vrot.lane.b32.xlu0 %v231, 28
    %v558 = vpop.permute.xlu0 %557
    %559 = vrot.lane.b32.xlu0 %v247, 28
    %v560 = vpop.permute.xlu0 %559
    %561 = vrot.lane.b32.xlu0 %v160, 28
    %v562 = vpop.permute.xlu0 %561
    %563 = vrot.lane.b32.xlu0 %v163, 28
    %v564 = vpop.permute.xlu0 %563
    %565 = vrot.lane.b32.xlu0 %v166, 28
    %v566 = vpop.permute.xlu0 %565
    %567 = vrot.lane.b32.xlu0 %v169, 28
    %v568 = vpop.permute.xlu0 %567
    %569 = vrot.lane.b32.xlu0 %v172, 28
    %v570 = vpop.permute.xlu0 %569
    %571 = vrot.lane.b32.xlu0 %v175, 28
    %v572 = vpop.permute.xlu0 %571
    %573 = vrot.lane.b32.xlu0 %v234, 28
    %v574 = vpop.permute.xlu0 %573
    %575 = vrot.lane.b32.xlu0 %v250, 28
    %v576 = vpop.permute.xlu0 %575
    %593 = vrot.lane.b32.xlu0 %v185, 32
    %v594 = vpop.permute.xlu0 %593
    %595 = vrot.lane.b32.xlu0 %v188, 32
    %v596 = vpop.permute.xlu0 %595
    %597 = vrot.lane.b32.xlu0 %v191, 32
    %v598 = vpop.permute.xlu0 %597
    %599 = vrot.lane.b32.xlu0 %v194, 32
    %v600 = vpop.permute.xlu0 %599
    %601 = vrot.lane.b32.xlu0 %v197, 32
    %v602 = vpop.permute.xlu0 %601
    %603 = vrot.lane.b32.xlu0 %v200, 32
    %v604 = vpop.permute.xlu0 %603
    %605 = vrot.lane.b32.xlu0 %v237, 32
    %v606 = vpop.permute.xlu0 %605
    %607 = vrot.lane.b32.xlu0 %v253, 32
    %v608 = vpop.permute.xlu0 %607
    %609 = vrot.lane.b32.xlu0 %v209, 32
    %v610 = vpop.permute.xlu0 %609
    %611 = vrot.lane.b32.xlu0 %v212, 32
    %v612 = vpop.permute.xlu0 %611
    %613 = vrot.lane.b32.xlu0 %v215, 32
    %v614 = vpop.permute.xlu0 %613
    %615 = vrot.lane.b32.xlu0 %v218, 32
    %v616 = vpop.permute.xlu0 %615
    %617 = vrot.lane.b32.xlu0 %v221, 32
    %v618 = vpop.permute.xlu0 %617
    %619 = vrot.lane.b32.xlu0 %v224, 32
    %v620 = vpop.permute.xlu0 %619
    %621 = vrot.lane.b32.xlu0 %v240, 32
    %v622 = vpop.permute.xlu0 %621
    %623 = vrot.lane.b32.xlu0 %v256, 32
    %v624 = vpop.permute.xlu0 %623
    %vm641 = vcmask 31744
    %v642 = vsel %vm641, %v55, %v258
    %v643 = vsel %vm641, %v57, %v260
    %v644 = vsel %vm641, %v59, %v262
    %v645 = vsel %vm641, %v61, %v264
    %v646 = vsel %vm641, %v63, %v266
    %v647 = vsel %vm641, %v65, %v268
    %v648 = vsel %vm641, %v67, %v270
    %v649 = vsel %vm641, %v69, %v272
    %v650 = vsel %vm641, %v75, %v274
    %v651 = vsel %vm641, %v77, %v276
    %v652 = vsel %vm641, %v79, %v278
    %v653 = vsel %vm641, %v81, %v280
    %v654 = vsel %vm641, %v83, %v282
    %v655 = vsel %vm641, %v85, %v284
    %v656 = vsel %vm641, %v87, %v286
    %v657 = vsel %vm641, %v89, %v288
    %vm658 = vcmask 64512
    %v659 = vsel %vm658, %v642, %v306
    %v660 = vsel %vm658, %v643, %v308
    %v661 = vsel %vm658, %v644, %v310
    %v662 = vsel %vm658, %v645, %v312
    %v663 = vsel %vm658, %v646, %v314
    %v664 = vsel %vm658, %v647, %v316
    %v665 = vsel %vm658, %v648, %v318
    %v666 = vsel %vm658, %v649, %v320
    %v667 = vsel %vm658, %v650, %v322
    %v668 = vsel %vm658, %v651, %v324
    %v669 = vsel %vm658, %v652, %v326
    %v670 = vsel %vm658, %v653, %v328
    %v671 = vsel %vm658, %v654, %v330
    %v672 = vsel %vm658, %v655, %v332
    %v673 = vsel %vm658, %v656, %v334
    %v674 = vsel %vm658, %v657, %v336
    %vm675 = vcmask 97280
    %v676 = vsel %vm675, %v659, %v354
    %v677 = vsel %vm675, %v660, %v356
    %v678 = vsel %vm675, %v661, %v358
    %v679 = vsel %vm675, %v662, %v360
    %v680 = vsel %vm675, %v663, %v362
    %v681 = vsel %vm675, %v664, %v364
    %v682 = vsel %vm675, %v665, %v366
    %v683 = vsel %vm675, %v666, %v368
    %v684 = vsel %vm675, %v667, %v370
    %v685 = vsel %vm675, %v668, %v372
    %v686 = vsel %vm675, %v669, %v374
    %v687 = vsel %vm675, %v670, %v376
    %v688 = vsel %vm675, %v671, %v378
    %v689 = vsel %vm675, %v672, %v380
    %v690 = vsel %vm675, %v673, %v382
    %v691 = vsel %vm675, %v674, %v384
    %vm692 = vcmask 130048
    %v693 = vsel %vm692, %v676, %v402
    %v694 = vsel %vm692, %v677, %v404
    %v695 = vsel %vm692, %v678, %v406
    %v696 = vsel %vm692, %v679, %v408
    %v697 = vsel %vm692, %v680, %v410
    %v698 = vsel %vm692, %v681, %v412
    %v699 = vsel %vm692, %v682, %v414
    %v700 = vsel %vm692, %v683, %v416
    %v701 = vsel %vm692, %v684, %v418
    %v702 = vsel %vm692, %v685, %v420
    %v703 = vsel %vm692, %v686, %v422
    %v704 = vsel %vm692, %v687, %v424
    %v705 = vsel %vm692, %v688, %v426
    %v706 = vsel %vm692, %v689, %v428
    %v707 = vsel %vm692, %v690, %v430
    %v708 = vsel %vm692, %v691, %v432
    %vm709 = vcmask 162816
    %v710 = vsel %vm709, %v693, %v450
    %v711 = vsel %vm709, %v694, %v452
    %v712 = vsel %vm709, %v695, %v454
    %v713 = vsel %vm709, %v696, %v456
    %v714 = vsel %vm709, %v697, %v458
    %v715 = vsel %vm709, %v698, %v460
    %v716 = vsel %vm709, %v699, %v462
    %v717 = vsel %vm709, %v700, %v464
    %v718 = vsel %vm709, %v701, %v466
    %v719 = vsel %vm709, %v702, %v468
    %v720 = vsel %vm709, %v703, %v470
    %v721 = vsel %vm709, %v704, %v472
    %v722 = vsel %vm709, %v705, %v474
    %v723 = vsel %vm709, %v706, %v476
    %v724 = vsel %vm709, %v707, %v478
    %v725 = vsel %vm709, %v708, %v480
    %vm726 = vcmask 195584
    %v727 = vsel %vm726, %v710, %v498
    %v728 = vsel %vm726, %v711, %v500
    %v729 = vsel %vm726, %v712, %v502
    %v730 = vsel %vm726, %v713, %v504
    %v731 = vsel %vm726, %v714, %v506
    %v732 = vsel %vm726, %v715, %v508
    %v733 = vsel %vm726, %v716, %v510
    %v734 = vsel %vm726, %v717, %v512
    %v735 = vsel %vm726, %v718, %v514
    %v736 = vsel %vm726, %v719, %v516
    %v737 = vsel %vm726, %v720, %v518
    %v738 = vsel %vm726, %v721, %v520
    %v739 = vsel %vm726, %v722, %v522
    %v740 = vsel %vm726, %v723, %v524
    %v741 = vsel %vm726, %v724, %v526
    %v742 = vsel %vm726, %v725, %v528
    %vm743 = vcmask 228352
    %v744 = vsel %vm743, %v727, %v546
    %v745 = vsel %vm743, %v728, %v548
    %v746 = vsel %vm743, %v729, %v550
    %v747 = vsel %vm743, %v730, %v552
    %v748 = vsel %vm743, %v731, %v554
    %v749 = vsel %vm743, %v732, %v556
    %v750 = vsel %vm743, %v733, %v558
    %v751 = vsel %vm743, %v734, %v560
    %v752 = vsel %vm743, %v735, %v562
    %v753 = vsel %vm743, %v736, %v564
    %v754 = vsel %vm743, %v737, %v566
    %v755 = vsel %vm743, %v738, %v568
    %v756 = vsel %vm743, %v739, %v570
    %v757 = vsel %vm743, %v740, %v572
    %v758 = vsel %vm743, %v741, %v574
    %v759 = vsel %vm743, %v742, %v576
    %vm760 = vcmask 261120
    %v761 = vsel %vm760, %v744, %v594
    %v762 = vsel %vm760, %v745, %v596
    %v763 = vsel %vm760, %v746, %v598
    %v764 = vsel %vm760, %v747, %v600
    %v765 = vsel %vm760, %v748, %v602
    %v766 = vsel %vm760, %v749, %v604
    %v767 = vsel %vm760, %v750, %v606
    %v768 = vsel %vm760, %v751, %v608
    %v769 = vsel %vm760, %v752, %v610
    %v770 = vsel %vm760, %v753, %v612
    %v771 = vsel %vm760, %v754, %v614
    %v772 = vsel %vm760, %v755, %v616
    %v773 = vsel %vm760, %v756, %v618
    %v774 = vsel %vm760, %v757, %v620
    %v775 = vsel %vm760, %v758, %v622
    %v776 = vsel %vm760, %v759, %v624
    %v777 = vld [vmem:[%s1] sm:$0xff]
    %v778 = vld [vmem:[%s1 + $0x8] sm:$0xff]
    %v779 = vld [vmem:[%s1 + $0x10] sm:$0xff]
    %v780 = vld [vmem:[%s1 + $0x18] sm:$0xff]
    %v781 = vld [vmem:[%s1 + $0x20] sm:$0xf]
    %v782 = vld [vmem:[%s2] sm:$0x1]
    %v784 = vperm.slane %v782, 0
    %vm786 = vcmask 293888
    %v788 = vsel %vm786, %v761, 0
    %v791 = vsel %vm786, %v762, 0
    %v794 = vsel %vm786, %v763, 0
    %v797 = vsel %vm786, %v764, 0
    %v800 = vsel %vm786, %v765, 0
    %v803 = vsel %vm786, %v766, 0
    %v806 = vsel %vm786, %v767, 0
    %v809 = vsel %vm786, %v768, 0
    %v812 = vsel %vm786, %v769, 0
    %v815 = vsel %vm786, %v770, 0
    %v818 = vsel %vm786, %v771, 0
    %v821 = vsel %vm786, %v772, 0
    %v824 = vsel %vm786, %v773, 0
    %v827 = vsel %vm786, %v774, 0
    %v830 = vsel %vm786, %v775, 0
    %v833 = vsel %vm786, %v776, 0
    %vm835 = vcmask 1043456
    %v837 = vsel %vm835, %v781, 0
    %839 = vmatpush.msra.mxu0 0.0
    %840 = vmatpush.msra.mxu0 0.0
    %841 = vmatpush.msra.mxu0 0.0
    %842 = vmatpush.msra.mxu0 0.0
    %843 = vmatpush.msra.mxu0 0.0
    %844 = vmatpush.msra.mxu0 0.0
    %845 = vmatpush.msra.mxu0 0.0
    %846 = vmatpush.msra.mxu0 0.0
    %847 = vmatpush.msra.mxu0 0.0
    %848 = vmatpush.msra.mxu0 0.0
    %849 = vmatpush.msra.mxu0 0.0
    %850 = vmatpush.msra.mxu0 %v837
    %851 = vmatpush.msra.mxu0 %v780
    %852 = vmatpush.msra.mxu0 %v779
    %853 = vmatpush.msra.mxu0 %v778
    %854 = vmatpush.msra.mxu0 %v777
    %855 = vmatmul.f32.gmra.mxu0 %v788
    %v856 = vpop.f32.mrf.mxu0
    %v857 = vadd.f32 %v784, %v856
    %858 = vmatmul.f32.gmra.mxu0 %v791
    %v859 = vpop.f32.mrf.mxu0
    %v860 = vadd.f32 %v784, %v859
    %861 = vmatmul.f32.gmra.mxu0 %v794
    %v862 = vpop.f32.mrf.mxu0
    %v863 = vadd.f32 %v784, %v862
    %864 = vmatmul.f32.gmra.mxu0 %v797
    %v865 = vpop.f32.mrf.mxu0
    %v866 = vadd.f32 %v784, %v865
    %867 = vmatmul.f32.gmra.mxu0 %v800
    %v868 = vpop.f32.mrf.mxu0
    %v869 = vadd.f32 %v784, %v868
    %870 = vmatmul.f32.gmra.mxu0 %v803
    %v871 = vpop.f32.mrf.mxu0
    %v872 = vadd.f32 %v784, %v871
    %873 = vmatmul.f32.gmra.mxu0 %v806
    %v874 = vpop.f32.mrf.mxu0
    %v875 = vadd.f32 %v784, %v874
    %876 = vmatmul.f32.gmra.mxu0 %v809
    %v877 = vpop.f32.mrf.mxu0
    %v878 = vadd.f32 %v784, %v877
    %879 = vmatmul.f32.gmra.mxu0 %v812
    %v880 = vpop.f32.mrf.mxu0
    %v881 = vadd.f32 %v784, %v880
    %882 = vmatmul.f32.gmra.mxu0 %v815
    %v883 = vpop.f32.mrf.mxu0
    %v884 = vadd.f32 %v784, %v883
    %885 = vmatmul.f32.gmra.mxu0 %v818
    %v886 = vpop.f32.mrf.mxu0
    %v887 = vadd.f32 %v784, %v886
    %888 = vmatmul.f32.gmra.mxu0 %v821
    %v889 = vpop.f32.mrf.mxu0
    %v890 = vadd.f32 %v784, %v889
    %891 = vmatmul.f32.gmra.mxu0 %v824
    %v892 = vpop.f32.mrf.mxu0
    %v893 = vadd.f32 %v784, %v892
    %894 = vmatmul.f32.gmra.mxu0 %v827
    %v895 = vpop.f32.mrf.mxu0
    %v896 = vadd.f32 %v784, %v895
    %897 = vmatmul.f32.gmra.mxu0 %v830
    %v898 = vpop.f32.mrf.mxu0
    %v899 = vadd.f32 %v784, %v898
    %900 = vmatmul.f32.gmra.mxu0 %v833
    %v901 = vpop.f32.mrf.mxu0
    %v902 = vadd.f32 %v784, %v901
    %903 = vdwg.mxu0
    %v904 = vmax.f32 %v857, 0.0
    %v905 = vmax.f32 %v860, 0.0
    %v906 = vmax.f32 %v863, 0.0
    %v907 = vmax.f32 %v866, 0.0
    %v908 = vmax.f32 %v869, 0.0
    %v909 = vmax.f32 %v872, 0.0
    %v910 = vmax.f32 %v875, 0.0
    %v911 = vmax.f32 %v878, 0.0
    %v912 = vmax.f32 %v881, 0.0
    %v913 = vmax.f32 %v884, 0.0
    %v914 = vmax.f32 %v887, 0.0
    %v915 = vmax.f32 %v890, 0.0
    %v916 = vmax.f32 %v893, 0.0
    %v917 = vmax.f32 %v896, 0.0
    %v918 = vmax.f32 %v899, 0.0
    %v919 = vmax.f32 %v902, 0.0
    %920 = vst.msk [vmem:[#allocation2] sm:$0xff] %vm760, 0.0
    %vm921 = vcmask 254976
    %922 = vst.msk [vmem:[#allocation2 + $0x8] sm:$0x3] %vm921, 0.0
    %923 = vst.msk [vmem:[#allocation2 + $0x10] sm:$0xff] %vm760, 0.0
    %924 = vst.msk [vmem:[#allocation2 + $0x18] sm:$0x3] %vm921, 0.0
    %925 = vst.msk [vmem:[#allocation2 + $0x20] sm:$0xff] %vm760, 0.0
    %926 = vst.msk [vmem:[#allocation2 + $0x28] sm:$0x3] %vm921, 0.0
    %927 = vst.msk [vmem:[#allocation2 + $0x30] sm:$0xff] %vm760, 0.0
    %928 = vst.msk [vmem:[#allocation2 + $0x38] sm:$0x3] %vm921, 0.0
    %929 = vst.msk [vmem:[#allocation2 + $0x40] sm:$0xff] %vm760, 0.0
    %930 = vst.msk [vmem:[#allocation2 + $0x48] sm:$0x3] %vm921, 0.0
    %931 = vst.msk [vmem:[#allocation2 + $0x50] sm:$0xff] %vm760, 0.0
    %932 = vst.msk [vmem:[#allocation2 + $0x58] sm:$0x3] %vm921, 0.0
    %933 = vst.msk [vmem:[#allocation2 + $0x60] sm:$0xff] %vm760, 0.0
    %934 = vst.msk [vmem:[#allocation2 + $0x68] sm:$0x3] %vm921, 0.0
    %935 = vst.msk [vmem:[#allocation2 + $0x70] sm:$0xff] %vm760, 0.0
    %936 = vst.msk [vmem:[#allocation2 + $0x78] sm:$0x3] %vm921, 0.0
    %937 = vst.msk [vmem:[#allocation2 + $0x80] sm:$0xff] %vm760, 0.0
    %938 = vst.msk [vmem:[#allocation2 + $0x88] sm:$0x3] %vm921, 0.0
    %939 = vst.msk [vmem:[#allocation2 + $0x90] sm:$0xff] %vm760, 0.0
    %940 = vst.msk [vmem:[#allocation2 + $0x98] sm:$0x3] %vm921, 0.0
    %941 = vst.msk [vmem:[#allocation2 + $0xa0] sm:$0xff] %vm760, 0.0
    %942 = vst.msk [vmem:[#allocation2 + $0xa8] sm:$0x3] %vm921, 0.0
    %943 = vst.msk [vmem:[#allocation2 + $0xb0] sm:$0xff] %vm760, 0.0
    %944 = vst.msk [vmem:[#allocation2 + $0xb8] sm:$0x3] %vm921, 0.0
    %945 = vst.msk [vmem:[#allocation2 + $0xc0] sm:$0xff] %vm760, 0.0
    %946 = vst.msk [vmem:[#allocation2 + $0xc8] sm:$0x3] %vm921, 0.0
    %947 = vst.msk [vmem:[#allocation2 + $0xd0] sm:$0xff] %vm760, 0.0
    %948 = vst.msk [vmem:[#allocation2 + $0xd8] sm:$0x3] %vm921, 0.0
    %949 = vst.msk [vmem:[#allocation2 + $0xe0] sm:$0xff] %vm760, 0.0
    %950 = vst.msk [vmem:[#allocation2 + $0xe8] sm:$0x3] %vm921, 0.0
    %951 = vst.msk [vmem:[#allocation2 + $0xf0] sm:$0xff] %vm760, 0.0
    %952 = vst.msk [vmem:[#allocation2 + $0xf8] sm:$0x3] %vm921, 0.0
    %953 = vst.msk [vmem:[#allocation2 + $0x100] sm:$0xff] %vm760, 0.0
    %954 = vst.msk [vmem:[#allocation2 + $0x108] sm:$0x3] %vm921, 0.0
    %955 = vst.msk [vmem:[#allocation2 + $0x110] sm:$0xff] %vm760, 0.0
    %956 = vst.msk [vmem:[#allocation2 + $0x118] sm:$0x3] %vm921, 0.0
    %957 = vst.msk [vmem:[#allocation2 + $0x120] sm:$0xff] %vm760, 0.0
    %958 = vst.msk [vmem:[#allocation2 + $0x128] sm:$0x3] %vm921, 0.0
    %959 = vst.msk [vmem:[#allocation2 + $0x130] sm:$0xff] %vm760, 0.0
    %960 = vst.msk [vmem:[#allocation2 + $0x138] sm:$0x3] %vm921, 0.0
    %s961 = scalar_lea.vmem [#allocation2], 16
    %962 = vst.msk [vmem:[%s961 + $0x1] sm:$0xff] %vm760, %v904
    %963 = vst.msk [vmem:[%s961 + $0x11] sm:$0xff] %vm760, %v905
    %964 = vst.msk [vmem:[%s961 + $0x21] sm:$0xff] %vm760, %v906
    %965 = vst.msk [vmem:[%s961 + $0x31] sm:$0xff] %vm760, %v907
    %966 = vst.msk [vmem:[%s961 + $0x41] sm:$0xff] %vm760, %v908
    %967 = vst.msk [vmem:[%s961 + $0x51] sm:$0xff] %vm760, %v909
    %968 = vst.msk [vmem:[%s961 + $0x61] sm:$0xff] %vm760, %v910
    %969 = vst.msk [vmem:[%s961 + $0x71] sm:$0xff] %vm760, %v911
    %970 = vst.msk [vmem:[%s961 + $0xa1] sm:$0xff] %vm760, %v912
    %971 = vst.msk [vmem:[%s961 + $0xb1] sm:$0xff] %vm760, %v913
    %972 = vst.msk [vmem:[%s961 + $0xc1] sm:$0xff] %vm760, %v914
    %973 = vst.msk [vmem:[%s961 + $0xd1] sm:$0xff] %vm760, %v915
    %974 = vst.msk [vmem:[%s961 + $0xe1] sm:$0xff] %vm760, %v916
    %975 = vst.msk [vmem:[%s961 + $0xf1] sm:$0xff] %vm760, %v917
    %976 = vst.msk [vmem:[%s961 + $0x101] sm:$0xff] %vm760, %v918
    %977 = vst.msk [vmem:[%s961 + $0x111] sm:$0xff] %vm760, %v919
    %v978 = vld [vmem:[#allocation2] sm:$0xff]
    %v979 = vld [vmem:[#allocation2 + $0x8] sm:$0x3]
    %v980 = vld [vmem:[#allocation2 + $0x10] sm:$0xff]
    %v981 = vld [vmem:[#allocation2 + $0x18] sm:$0x3]
    %v982 = vld [vmem:[#allocation2 + $0x20] sm:$0xff]
    %v983 = vld [vmem:[#allocation2 + $0x28] sm:$0x3]
    %v984 = vld [vmem:[#allocation2 + $0x30] sm:$0xff]
    %v985 = vld [vmem:[#allocation2 + $0x38] sm:$0x3]
    %v986 = vld [vmem:[#allocation2 + $0x40] sm:$0xff]
    %v987 = vld [vmem:[#allocation2 + $0x48] sm:$0x3]
    %v988 = vld [vmem:[#allocation2 + $0x50] sm:$0xff]
    %v989 = vld [vmem:[#allocation2 + $0x58] sm:$0x3]
    %v990 = vld [vmem:[#allocation2 + $0x60] sm:$0xff]
    %v991 = vld [vmem:[#allocation2 + $0x68] sm:$0x3]
    %v992 = vld [vmem:[#allocation2 + $0x70] sm:$0xff]
    %v993 = vld [vmem:[#allocation2 + $0x78] sm:$0x3]
    %v994 = vld [vmem:[#allocation2 + $0x80] sm:$0xff]
    %v995 = vld [vmem:[#allocation2 + $0x88] sm:$0x3]
    %v996 = vld [vmem:[#allocation2 + $0x90] sm:$0xff]
    %v997 = vld [vmem:[#allocation2 + $0x98] sm:$0x3]
    %v998 = vld [vmem:[#allocation2 + $0xa0] sm:$0xff]
    %v999 = vld [vmem:[#allocation2 + $0xa8] sm:$0x3]
    %v1000 = vld [vmem:[#allocation2 + $0xb0] sm:$0xff]
    %v1001 = vld [vmem:[#allocation2 + $0xb8] sm:$0x3]
    %v1002 = vld [vmem:[#allocation2 + $0xc0] sm:$0xff]
    %v1003 = vld [vmem:[#allocation2 + $0xc8] sm:$0x3]
    %v1004 = vld [vmem:[#allocation2 + $0xd0] sm:$0xff]
    %v1005 = vld [vmem:[#allocation2 + $0xd8] sm:$0x3]
    %v1006 = vld [vmem:[#allocation2 + $0xe0] sm:$0xff]
    %v1007 = vld [vmem:[#allocation2 + $0xe8] sm:$0x3]
    %v1008 = vld [vmem:[#allocation2 + $0xf0] sm:$0xff]
    %v1009 = vld [vmem:[#allocation2 + $0xf8] sm:$0x3]
    %v1010 = vld [vmem:[#allocation2 + $0x100] sm:$0xff]
    %v1011 = vld [vmem:[#allocation2 + $0x108] sm:$0x3]
    %v1012 = vld [vmem:[#allocation2 + $0x110] sm:$0xff]
    %v1013 = vld [vmem:[#allocation2 + $0x118] sm:$0x3]
    %v1014 = vld [vmem:[#allocation2 + $0x120] sm:$0xff]
    %v1015 = vld [vmem:[#allocation2 + $0x128] sm:$0x3]
    %v1016 = vld [vmem:[#allocation2 + $0x130] sm:$0xff]
    %v1017 = vld [vmem:[#allocation2 + $0x138] sm:$0x3]
    %v1050 = vrot.slane %v978, 1
    %v1051 = vrot.slane %v979, 1
    %v1052 = vsel %vm127, %v1050, %v1051
    %v1053 = vrot.slane %v980, 1
    %v1054 = vrot.slane %v981, 1
    %v1055 = vsel %vm127, %v1053, %v1054
    %v1056 = vrot.slane %v982, 1
    %v1057 = vrot.slane %v983, 1
    %v1058 = vsel %vm127, %v1056, %v1057
    %v1059 = vrot.slane %v984, 1
    %v1060 = vrot.slane %v985, 1
    %v1061 = vsel %vm127, %v1059, %v1060
    %v1062 = vrot.slane %v986, 1
    %v1063 = vrot.slane %v987, 1
    %v1064 = vsel %vm127, %v1062, %v1063
    %v1065 = vrot.slane %v988, 1
    %v1066 = vrot.slane %v989, 1
    %v1067 = vsel %vm127, %v1065, %v1066
    %v1068 = vrot.slane %v990, 1
    %v1069 = vrot.slane %v991, 1
    %v1070 = vsel %vm127, %v1068, %v1069
    %v1071 = vrot.slane %v992, 1
    %v1072 = vrot.slane %v993, 1
    %v1073 = vsel %vm127, %v1071, %v1072
    %v1074 = vrot.slane %v998, 1
    %v1075 = vrot.slane %v999, 1
    %v1076 = vsel %vm127, %v1074, %v1075
    %v1077 = vrot.slane %v1000, 1
    %v1078 = vrot.slane %v1001, 1
    %v1079 = vsel %vm127, %v1077, %v1078
    %v1080 = vrot.slane %v1002, 1
    %v1081 = vrot.slane %v1003, 1
    %v1082 = vsel %vm127, %v1080, %v1081
    %v1083 = vrot.slane %v1004, 1
    %v1084 = vrot.slane %v1005, 1
    %v1085 = vsel %vm127, %v1083, %v1084
    %v1086 = vrot.slane %v1006, 1
    %v1087 = vrot.slane %v1007, 1
    %v1088 = vsel %vm127, %v1086, %v1087
    %v1089 = vrot.slane %v1008, 1
    %v1090 = vrot.slane %v1009, 1
    %v1091 = vsel %vm127, %v1089, %v1090
    %v1092 = vrot.slane %v1010, 1
    %v1093 = vrot.slane %v1011, 1
    %v1094 = vsel %vm127, %v1092, %v1093
    %v1095 = vrot.slane %v1012, 1
    %v1096 = vrot.slane %v1013, 1
    %v1097 = vsel %vm127, %v1095, %v1096
    %v1098 = vrot.slane %v978, 2
    %v1099 = vrot.slane %v979, 2
    %v1100 = vsel %vm176, %v1098, %v1099
    %v1101 = vrot.slane %v980, 2
    %v1102 = vrot.slane %v981, 2
    %v1103 = vsel %vm176, %v1101, %v1102
    %v1104 = vrot.slane %v982, 2
    %v1105 = vrot.slane %v983, 2
    %v1106 = vsel %vm176, %v1104, %v1105
    %v1107 = vrot.slane %v984, 2
    %v1108 = vrot.slane %v985, 2
    %v1109 = vsel %vm176, %v1107, %v1108
    %v1110 = vrot.slane %v986, 2
    %v1111 = vrot.slane %v987, 2
    %v1112 = vsel %vm176, %v1110, %v1111
    %v1113 = vrot.slane %v988, 2
    %v1114 = vrot.slane %v989, 2
    %v1115 = vsel %vm176, %v1113, %v1114
    %v1116 = vrot.slane %v990, 2
    %v1117 = vrot.slane %v991, 2
    %v1118 = vsel %vm176, %v1116, %v1117
    %v1119 = vrot.slane %v992, 2
    %v1120 = vrot.slane %v993, 2
    %v1121 = vsel %vm176, %v1119, %v1120
    %v1122 = vrot.slane %v998, 2
    %v1123 = vrot.slane %v999, 2
    %v1124 = vsel %vm176, %v1122, %v1123
    %v1125 = vrot.slane %v1000, 2
    %v1126 = vrot.slane %v1001, 2
    %v1127 = vsel %vm176, %v1125, %v1126
    %v1128 = vrot.slane %v1002, 2
    %v1129 = vrot.slane %v1003, 2
    %v1130 = vsel %vm176, %v1128, %v1129
    %v1131 = vrot.slane %v1004, 2
    %v1132 = vrot.slane %v1005, 2
    %v1133 = vsel %vm176, %v1131, %v1132
    %v1134 = vrot.slane %v1006, 2
    %v1135 = vrot.slane %v1007, 2
    %v1136 = vsel %vm176, %v1134, %v1135
    %v1137 = vrot.slane %v1008, 2
    %v1138 = vrot.slane %v1009, 2
    %v1139 = vsel %vm176, %v1137, %v1138
    %v1140 = vrot.slane %v1010, 2
    %v1141 = vrot.slane %v1011, 2
    %v1142 = vsel %vm176, %v1140, %v1141
    %v1143 = vrot.slane %v1012, 2
    %v1144 = vrot.slane %v1013, 2
    %v1145 = vsel %vm176, %v1143, %v1144
    %v1150 = vrot.slane %v994, 1
    %v1151 = vrot.slane %v995, 1
    %v1152 = vsel %vm127, %v1150, %v1151
    %v1153 = vrot.slane %v1014, 1
    %v1154 = vrot.slane %v1015, 1
    %v1155 = vsel %vm127, %v1153, %v1154
    %v1172 = vrot.slane %v994, 2
    %v1173 = vrot.slane %v995, 2
    %v1174 = vsel %vm176, %v1172, %v1173
    %v1175 = vrot.slane %v1014, 2
    %v1176 = vrot.slane %v1015, 2
    %v1177 = vsel %vm176, %v1175, %v1176
    %v1182 = vrot.slane %v996, 1
    %v1183 = vrot.slane %v997, 1
    %v1184 = vsel %vm127, %v1182, %v1183
    %v1185 = vrot.slane %v1016, 1
    %v1186 = vrot.slane %v1017, 1
    %v1187 = vsel %vm127, %v1185, %v1186
    %v1188 = vrot.slane %v996, 2
    %v1189 = vrot.slane %v997, 2
    %v1190 = vsel %vm176, %v1188, %v1189
    %v1191 = vrot.slane %v1016, 2
    %v1192 = vrot.slane %v1017, 2
    %v1193 = vsel %vm176, %v1191, %v1192
    %1194 = vrot.lane.b32.xlu0 %v1052, 32
    %v1195 = vpop.permute.xlu0 %1194
    %1196 = vrot.lane.b32.xlu0 %v1055, 32
    %v1197 = vpop.permute.xlu0 %1196
    %1198 = vrot.lane.b32.xlu0 %v1058, 32
    %v1199 = vpop.permute.xlu0 %1198
    %1200 = vrot.lane.b32.xlu0 %v1061, 32
    %v1201 = vpop.permute.xlu0 %1200
    %1202 = vrot.lane.b32.xlu0 %v1064, 32
    %v1203 = vpop.permute.xlu0 %1202
    %1204 = vrot.lane.b32.xlu0 %v1067, 32
    %v1205 = vpop.permute.xlu0 %1204
    %1206 = vrot.lane.b32.xlu0 %v1070, 32
    %v1207 = vpop.permute.xlu0 %1206
    %1208 = vrot.lane.b32.xlu0 %v1073, 32
    %v1209 = vpop.permute.xlu0 %1208
    %1210 = vrot.lane.b32.xlu0 %v1076, 32
    %v1211 = vpop.permute.xlu0 %1210
    %1212 = vrot.lane.b32.xlu0 %v1079, 32
    %v1213 = vpop.permute.xlu0 %1212
    %1214 = vrot.lane.b32.xlu0 %v1082, 32
    %v1215 = vpop.permute.xlu0 %1214
    %1216 = vrot.lane.b32.xlu0 %v1085, 32
    %v1217 = vpop.permute.xlu0 %1216
    %1218 = vrot.lane.b32.xlu0 %v1088, 32
    %v1219 = vpop.permute.xlu0 %1218
    %1220 = vrot.lane.b32.xlu0 %v1091, 32
    %v1221 = vpop.permute.xlu0 %1220
    %1222 = vrot.lane.b32.xlu0 %v1094, 32
    %v1223 = vpop.permute.xlu0 %1222
    %1224 = vrot.lane.b32.xlu0 %v1097, 32
    %v1225 = vpop.permute.xlu0 %1224
    %1242 = vrot.lane.b32.xlu0 %v1100, 64
    %v1243 = vpop.permute.xlu0 %1242
    %1244 = vrot.lane.b32.xlu0 %v1103, 64
    %v1245 = vpop.permute.xlu0 %1244
    %1246 = vrot.lane.b32.xlu0 %v1106, 64
    %v1247 = vpop.permute.xlu0 %1246
    %1248 = vrot.lane.b32.xlu0 %v1109, 64
    %v1249 = vpop.permute.xlu0 %1248
    %1250 = vrot.lane.b32.xlu0 %v1112, 64
    %v1251 = vpop.permute.xlu0 %1250
    %1252 = vrot.lane.b32.xlu0 %v1115, 64
    %v1253 = vpop.permute.xlu0 %1252
    %1254 = vrot.lane.b32.xlu0 %v1118, 64
    %v1255 = vpop.permute.xlu0 %1254
    %1256 = vrot.lane.b32.xlu0 %v1121, 64
    %v1257 = vpop.permute.xlu0 %1256
    %1258 = vrot.lane.b32.xlu0 %v1124, 64
    %v1259 = vpop.permute.xlu0 %1258
    %1260 = vrot.lane.b32.xlu0 %v1127, 64
    %v1261 = vpop.permute.xlu0 %1260
    %1262 = vrot.lane.b32.xlu0 %v1130, 64
    %v1263 = vpop.permute.xlu0 %1262
    %1264 = vrot.lane.b32.xlu0 %v1133, 64
    %v1265 = vpop.permute.xlu0 %1264
    %1266 = vrot.lane.b32.xlu0 %v1136, 64
    %v1267 = vpop.permute.xlu0 %1266
    %1268 = vrot.lane.b32.xlu0 %v1139, 64
    %v1269 = vpop.permute.xlu0 %1268
    %1270 = vrot.lane.b32.xlu0 %v1142, 64
    %v1271 = vpop.permute.xlu0 %1270
    %1272 = vrot.lane.b32.xlu0 %v1145, 64
    %v1273 = vpop.permute.xlu0 %1272
    %1290 = vrot.lane.b32.xlu0 %v980, 96
    %v1291 = vpop.permute.xlu0 %1290
    %1292 = vrot.lane.b32.xlu0 %v982, 96
    %v1293 = vpop.permute.xlu0 %1292
    %1294 = vrot.lane.b32.xlu0 %v984, 96
    %v1295 = vpop.permute.xlu0 %1294
    %1296 = vrot.lane.b32.xlu0 %v986, 96
    %v1297 = vpop.permute.xlu0 %1296
    %1298 = vrot.lane.b32.xlu0 %v988, 96
    %v1299 = vpop.permute.xlu0 %1298
    %1300 = vrot.lane.b32.xlu0 %v990, 96
    %v1301 = vpop.permute.xlu0 %1300
    %1302 = vrot.lane.b32.xlu0 %v992, 96
    %v1303 = vpop.permute.xlu0 %1302
    %1304 = vrot.lane.b32.xlu0 %v994, 96
    %v1305 = vpop.permute.xlu0 %1304
    %1306 = vrot.lane.b32.xlu0 %v1000, 96
    %v1307 = vpop.permute.xlu0 %1306
    %1308 = vrot.lane.b32.xlu0 %v1002, 96
    %v1309 = vpop.permute.xlu0 %1308
    %1310 = vrot.lane.b32.xlu0 %v1004, 96
    %v1311 = vpop.permute.xlu0 %1310
    %1312 = vrot.lane.b32.xlu0 %v1006, 96
    %v1313 = vpop.permute.xlu0 %1312
    %1314 = vrot.lane.b32.xlu0 %v1008, 96
    %v1315 = vpop.permute.xlu0 %1314
    %1316 = vrot.lane.b32.xlu0 %v1010, 96
    %v1317 = vpop.permute.xlu0 %1316
    %1318 = vrot.lane.b32.xlu0 %v1012, 96
    %v1319 = vpop.permute.xlu0 %1318
    %1320 = vrot.lane.b32.xlu0 %v1014, 96
    %v1321 = vpop.permute.xlu0 %1320
    %1338 = vrot.lane.b32.xlu0 %v1103, 32
    %v1339 = vpop.permute.xlu0 %1338
    %1340 = vrot.lane.b32.xlu0 %v1106, 32
    %v1341 = vpop.permute.xlu0 %1340
    %1342 = vrot.lane.b32.xlu0 %v1109, 32
    %v1343 = vpop.permute.xlu0 %1342
    %1344 = vrot.lane.b32.xlu0 %v1112, 32
    %v1345 = vpop.permute.xlu0 %1344
    %1346 = vrot.lane.b32.xlu0 %v1115, 32
    %v1347 = vpop.permute.xlu0 %1346
    %1348 = vrot.lane.b32.xlu0 %v1118, 32
    %v1349 = vpop.permute.xlu0 %1348
    %1350 = vrot.lane.b32.xlu0 %v1121, 32
    %v1351 = vpop.permute.xlu0 %1350
    %1352 = vrot.lane.b32.xlu0 %v1174, 32
    %v1353 = vpop.permute.xlu0 %1352
    %1354 = vrot.lane.b32.xlu0 %v1127, 32
    %v1355 = vpop.permute.xlu0 %1354
    %1356 = vrot.lane.b32.xlu0 %v1130, 32
    %v1357 = vpop.permute.xlu0 %1356
    %1358 = vrot.lane.b32.xlu0 %v1133, 32
    %v1359 = vpop.permute.xlu0 %1358
    %1360 = vrot.lane.b32.xlu0 %v1136, 32
    %v1361 = vpop.permute.xlu0 %1360
    %1362 = vrot.lane.b32.xlu0 %v1139, 32
    %v1363 = vpop.permute.xlu0 %1362
    %1364 = vrot.lane.b32.xlu0 %v1142, 32
    %v1365 = vpop.permute.xlu0 %1364
    %1366 = vrot.lane.b32.xlu0 %v1145, 32
    %v1367 = vpop.permute.xlu0 %1366
    %1368 = vrot.lane.b32.xlu0 %v1177, 32
    %v1369 = vpop.permute.xlu0 %1368
    %1386 = vrot.lane.b32.xlu0 %v982, 64
    %v1387 = vpop.permute.xlu0 %1386
    %1388 = vrot.lane.b32.xlu0 %v984, 64
    %v1389 = vpop.permute.xlu0 %1388
    %1390 = vrot.lane.b32.xlu0 %v986, 64
    %v1391 = vpop.permute.xlu0 %1390
    %1392 = vrot.lane.b32.xlu0 %v988, 64
    %v1393 = vpop.permute.xlu0 %1392
    %1394 = vrot.lane.b32.xlu0 %v990, 64
    %v1395 = vpop.permute.xlu0 %1394
    %1396 = vrot.lane.b32.xlu0 %v992, 64
    %v1397 = vpop.permute.xlu0 %1396
    %1398 = vrot.lane.b32.xlu0 %v994, 64
    %v1399 = vpop.permute.xlu0 %1398
    %1400 = vrot.lane.b32.xlu0 %v996, 64
    %v1401 = vpop.permute.xlu0 %1400
    %1402 = vrot.lane.b32.xlu0 %v1002, 64
    %v1403 = vpop.permute.xlu0 %1402
    %1404 = vrot.lane.b32.xlu0 %v1004, 64
    %v1405 = vpop.permute.xlu0 %1404
    %1406 = vrot.lane.b32.xlu0 %v1006, 64
    %v1407 = vpop.permute.xlu0 %1406
    %1408 = vrot.lane.b32.xlu0 %v1008, 64
    %v1409 = vpop.permute.xlu0 %1408
    %1410 = vrot.lane.b32.xlu0 %v1010, 64
    %v1411 = vpop.permute.xlu0 %1410
    %1412 = vrot.lane.b32.xlu0 %v1012, 64
    %v1413 = vpop.permute.xlu0 %1412
    %1414 = vrot.lane.b32.xlu0 %v1014, 64
    %v1415 = vpop.permute.xlu0 %1414
    %1416 = vrot.lane.b32.xlu0 %v1016, 64
    %v1417 = vpop.permute.xlu0 %1416
    %1434 = vrot.lane.b32.xlu0 %v1058, 96
    %v1435 = vpop.permute.xlu0 %1434
    %1436 = vrot.lane.b32.xlu0 %v1061, 96
    %v1437 = vpop.permute.xlu0 %1436
    %1438 = vrot.lane.b32.xlu0 %v1064, 96
    %v1439 = vpop.permute.xlu0 %1438
    %1440 = vrot.lane.b32.xlu0 %v1067, 96
    %v1441 = vpop.permute.xlu0 %1440
    %1442 = vrot.lane.b32.xlu0 %v1070, 96
    %v1443 = vpop.permute.xlu0 %1442
    %1444 = vrot.lane.b32.xlu0 %v1073, 96
    %v1445 = vpop.permute.xlu0 %1444
    %1446 = vrot.lane.b32.xlu0 %v1152, 96
    %v1447 = vpop.permute.xlu0 %1446
    %1448 = vrot.lane.b32.xlu0 %v1184, 96
    %v1449 = vpop.permute.xlu0 %1448
    %1450 = vrot.lane.b32.xlu0 %v1082, 96
    %v1451 = vpop.permute.xlu0 %1450
    %1452 = vrot.lane.b32.xlu0 %v1085, 96
    %v1453 = vpop.permute.xlu0 %1452
    %1454 = vrot.lane.b32.xlu0 %v1088, 96
    %v1455 = vpop.permute.xlu0 %1454
    %1456 = vrot.lane.b32.xlu0 %v1091, 96
    %v1457 = vpop.permute.xlu0 %1456
    %1458 = vrot.lane.b32.xlu0 %v1094, 96
    %v1459 = vpop.permute.xlu0 %1458
    %1460 = vrot.lane.b32.xlu0 %v1097, 96
    %v1461 = vpop.permute.xlu0 %1460
    %1462 = vrot.lane.b32.xlu0 %v1155, 96
    %v1463 = vpop.permute.xlu0 %1462
    %1464 = vrot.lane.b32.xlu0 %v1187, 96
    %v1465 = vpop.permute.xlu0 %1464
    %v1482 = vsel %vm760, %v978, %v1195
    %v1483 = vsel %vm760, %v980, %v1197
    %v1484 = vsel %vm760, %v982, %v1199
    %v1485 = vsel %vm760, %v984, %v1201
    %v1486 = vsel %vm760, %v986, %v1203
    %v1487 = vsel %vm760, %v988, %v1205
    %v1488 = vsel %vm760, %v990, %v1207
    %v1489 = vsel %vm760, %v992, %v1209
    %v1490 = vsel %vm760, %v998, %v1211
    %v1491 = vsel %vm760, %v1000, %v1213
    %v1492 = vsel %vm760, %v1002, %v1215
    %v1493 = vsel %vm760, %v1004, %v1217
    %v1494 = vsel %vm760, %v1006, %v1219
    %v1495 = vsel %vm760, %v1008, %v1221
    %v1496 = vsel %vm760, %v1010, %v1223
    %v1497 = vsel %vm760, %v1012, %v1225
    %vm1498 = vcmask 523264
    %v1499 = vsel %vm1498, %v1482, %v1243
    %v1500 = vsel %vm1498, %v1483, %v1245
    %v1501 = vsel %vm1498, %v1484, %v1247
    %v1502 = vsel %vm1498, %v1485, %v1249
    %v1503 = vsel %vm1498, %v1486, %v1251
    %v1504 = vsel %vm1498, %v1487, %v1253
    %v1505 = vsel %vm1498, %v1488, %v1255
    %v1506 = vsel %vm1498, %v1489, %v1257
    %v1507 = vsel %vm1498, %v1490, %v1259
    %v1508 = vsel %vm1498, %v1491, %v1261
    %v1509 = vsel %vm1498, %v1492, %v1263
    %v1510 = vsel %vm1498, %v1493, %v1265
    %v1511 = vsel %vm1498, %v1494, %v1267
    %v1512 = vsel %vm1498, %v1495, %v1269
    %v1513 = vsel %vm1498, %v1496, %v1271
    %v1514 = vsel %vm1498, %v1497, %v1273
    %vm1515 = vcmask 785408
    %v1516 = vsel %vm1515, %v1499, %v1291
    %v1517 = vsel %vm1515, %v1500, %v1293
    %v1518 = vsel %vm1515, %v1501, %v1295
    %v1519 = vsel %vm1515, %v1502, %v1297
    %v1520 = vsel %vm1515, %v1503, %v1299
    %v1521 = vsel %vm1515, %v1504, %v1301
    %v1522 = vsel %vm1515, %v1505, %v1303
    %v1523 = vsel %vm1515, %v1506, %v1305
    %v1524 = vsel %vm1515, %v1507, %v1307
    %v1525 = vsel %vm1515, %v1508, %v1309
    %v1526 = vsel %vm1515, %v1509, %v1311
    %v1527 = vsel %vm1515, %v1510, %v1313
    %v1528 = vsel %vm1515, %v1511, %v1315
    %v1529 = vsel %vm1515, %v1512, %v1317
    %v1530 = vsel %vm1515, %v1513, %v1319
    %v1531 = vsel %vm1515, %v1514, %v1321
    %v1532 = vsel %vm760, %v1055, %v1339
    %v1533 = vsel %vm760, %v1058, %v1341
    %v1534 = vsel %vm760, %v1061, %v1343
    %v1535 = vsel %vm760, %v1064, %v1345
    %v1536 = vsel %vm760, %v1067, %v1347
    %v1537 = vsel %vm760, %v1070, %v1349
    %v1538 = vsel %vm760, %v1073, %v1351
    %v1539 = vsel %vm760, %v1152, %v1353
    %v1540 = vsel %vm760, %v1079, %v1355
    %v1541 = vsel %vm760, %v1082, %v1357
    %v1542 = vsel %vm760, %v1085, %v1359
    %v1543 = vsel %vm760, %v1088, %v1361
    %v1544 = vsel %vm760, %v1091, %v1363
    %v1545 = vsel %vm760, %v1094, %v1365
    %v1546 = vsel %vm760, %v1097, %v1367
    %v1547 = vsel %vm760, %v1155, %v1369
    %v1548 = vsel %vm1498, %v1532, %v1387
    %v1549 = vsel %vm1498, %v1533, %v1389
    %v1550 = vsel %vm1498, %v1534, %v1391
    %v1551 = vsel %vm1498, %v1535, %v1393
    %v1552 = vsel %vm1498, %v1536, %v1395
    %v1553 = vsel %vm1498, %v1537, %v1397
    %v1554 = vsel %vm1498, %v1538, %v1399
    %v1555 = vsel %vm1498, %v1539, %v1401
    %v1556 = vsel %vm1498, %v1540, %v1403
    %v1557 = vsel %vm1498, %v1541, %v1405
    %v1558 = vsel %vm1498, %v1542, %v1407
    %v1559 = vsel %vm1498, %v1543, %v1409
    %v1560 = vsel %vm1498, %v1544, %v1411
    %v1561 = vsel %vm1498, %v1545, %v1413
    %v1562 = vsel %vm1498, %v1546, %v1415
    %v1563 = vsel %vm1498, %v1547, %v1417
    %v1564 = vsel %vm1515, %v1548, %v1435
    %v1565 = vsel %vm1515, %v1549, %v1437
    %v1566 = vsel %vm1515, %v1550, %v1439
    %v1567 = vsel %vm1515, %v1551, %v1441
    %v1568 = vsel %vm1515, %v1552, %v1443
    %v1569 = vsel %vm1515, %v1553, %v1445
    %v1570 = vsel %vm1515, %v1554, %v1447
    %v1571 = vsel %vm1515, %v1555, %v1449
    %v1572 = vsel %vm1515, %v1556, %v1451
    %v1573 = vsel %vm1515, %v1557, %v1453
    %v1574 = vsel %vm1515, %v1558, %v1455
    %v1575 = vsel %vm1515, %v1559, %v1457
    %v1576 = vsel %vm1515, %v1560, %v1459
    %v1577 = vsel %vm1515, %v1561, %v1461
    %v1578 = vsel %vm1515, %v1562, %v1463
    %v1579 = vsel %vm1515, %v1563, %v1465
    %v1580 = vld [vmem:[%s3] sm:$0xff]
    %v1581 = vld [vmem:[%s3 + $0x8] sm:$0xff]
    %v1582 = vld [vmem:[%s3 + $0x10] sm:$0xff]
    %v1583 = vld [vmem:[%s3 + $0x18] sm:$0xff]
    %v1584 = vld [vmem:[%s3 + $0x20] sm:$0xff]
    %v1585 = vld [vmem:[%s3 + $0x28] sm:$0xff]
    %v1586 = vld [vmem:[%s3 + $0x30] sm:$0xff]
    %v1587 = vld [vmem:[%s3 + $0x38] sm:$0xff]
    %v1588 = vld [vmem:[%s3 + $0x40] sm:$0xff]
    %v1589 = vld [vmem:[%s3 + $0x48] sm:$0xff]
    %v1590 = vld [vmem:[%s3 + $0x50] sm:$0xff]
    %v1591 = vld [vmem:[%s3 + $0x58] sm:$0xff]
    %v1592 = vld [vmem:[%s3 + $0x60] sm:$0xff]
    %v1593 = vld [vmem:[%s3 + $0x68] sm:$0xff]
    %v1594 = vld [vmem:[%s3 + $0x70] sm:$0xff]
    %v1595 = vld [vmem:[%s3 + $0x78] sm:$0xff]
    %v1596 = vld [vmem:[%s3 + $0x80] sm:$0xff]
    %v1597 = vld [vmem:[%s3 + $0x88] sm:$0xff]
    %v1598 = vld [vmem:[%s3 + $0x90] sm:$0xff]
    %v1599 = vld [vmem:[%s3 + $0x98] sm:$0xff]
    %v1600 = vld [vmem:[%s3 + $0xa0] sm:$0xff]
    %v1601 = vld [vmem:[%s3 + $0xa8] sm:$0xff]
    %v1602 = vld [vmem:[%s3 + $0xb0] sm:$0xff]
    %v1603 = vld [vmem:[%s3 + $0xb8] sm:$0xff]
    %v1604 = vld [vmem:[%s3 + $0xc0] sm:$0xff]
    %v1605 = vld [vmem:[%s3 + $0xc8] sm:$0xff]
    %v1606 = vld [vmem:[%s3 + $0xd0] sm:$0xff]
    %v1607 = vld [vmem:[%s3 + $0xd8] sm:$0xff]
    %v1608 = vld [vmem:[%s3 + $0xe0] sm:$0xff]
    %v1609 = vld [vmem:[%s3 + $0xe8] sm:$0xff]
    %v1610 = vld [vmem:[%s3 + $0xf0] sm:$0xff]
    %v1611 = vld [vmem:[%s3 + $0xf8] sm:$0xff]
    %v1612 = vld [vmem:[%s3 + $0x100] sm:$0xff]
    %v1613 = vld [vmem:[%s3 + $0x108] sm:$0xff]
    %v1614 = vld [vmem:[%s3 + $0x110] sm:$0xff]
    %v1615 = vld [vmem:[%s3 + $0x118] sm:$0xff]
    %v1616 = vld [vmem:[%s4] sm:$0x1]
    %v1618 = vperm.slane %v1616, 0
    %v1620 = vsel %vm760, %v1106, 0
    %v1622 = vsel %vm760, %v1109, 0
    %v1624 = vsel %vm760, %v1112, 0
    %v1626 = vsel %vm760, %v1115, 0
    %v1628 = vsel %vm760, %v1118, 0
    %v1630 = vsel %vm760, %v1121, 0
    %v1632 = vsel %vm760, %v1174, 0
    %v1634 = vsel %vm760, %v1190, 0
    %v1636 = vsel %vm760, %v1130, 0
    %v1638 = vsel %vm760, %v1133, 0
    %v1640 = vsel %vm760, %v1136, 0
    %v1642 = vsel %vm760, %v1139, 0
    %v1644 = vsel %vm760, %v1142, 0
    %v1646 = vsel %vm760, %v1145, 0
    %v1648 = vsel %vm760, %v1177, 0
    %v1650 = vsel %vm760, %v1193, 0
    %1652 = vmatpush.msra.mxu0 %v1595
    %1653 = vmatpush.msra.mxu0 %v1594
    %1654 = vmatpush.msra.mxu0 %v1593
    %1655 = vmatpush.msra.mxu0 %v1592
    %1656 = vmatpush.msra.mxu0 %v1591
    %1657 = vmatpush.msra.mxu0 %v1590
    %1658 = vmatpush.msra.mxu0 %v1589
    %1659 = vmatpush.msra.mxu0 %v1588
    %1660 = vmatpush.msra.mxu0 %v1587
    %1661 = vmatpush.msra.mxu0 %v1586
    %1662 = vmatpush.msra.mxu0 %v1585
    %1663 = vmatpush.msra.mxu0 %v1584
    %1664 = vmatpush.msra.mxu0 %v1583
    %1665 = vmatpush.msra.mxu0 %v1582
    %1666 = vmatpush.msra.mxu0 %v1581
    %1667 = vmatpush.msra.mxu0 %v1580
    %1668 = vmatmul.f32.gmra.mxu0 %v1516
    %v1669 = vpop.f32.mrf.mxu0
    %v1670 = vadd.f32 %v1618, %v1669
    %1671 = vmatmul.f32.gmra.mxu0 %v1517
    %v1672 = vpop.f32.mrf.mxu0
    %v1673 = vadd.f32 %v1618, %v1672
    %1674 = vmatmul.f32.gmra.mxu0 %v1518
    %v1675 = vpop.f32.mrf.mxu0
    %v1676 = vadd.f32 %v1618, %v1675
    %1677 = vmatmul.f32.gmra.mxu0 %v1519
    %v1678 = vpop.f32.mrf.mxu0
    %v1679 = vadd.f32 %v1618, %v1678
    %1680 = vmatmul.f32.gmra.mxu0 %v1520
    %v1681 = vpop.f32.mrf.mxu0
    %v1682 = vadd.f32 %v1618, %v1681
    %1683 = vmatmul.f32.gmra.mxu0 %v1521
    %v1684 = vpop.f32.mrf.mxu0
    %v1685 = vadd.f32 %v1618, %v1684
    %1686 = vmatmul.f32.gmra.mxu0 %v1522
    %v1687 = vpop.f32.mrf.mxu0
    %v1688 = vadd.f32 %v1618, %v1687
    %1689 = vmatmul.f32.gmra.mxu0 %v1523
    %v1690 = vpop.f32.mrf.mxu0
    %v1691 = vadd.f32 %v1618, %v1690
    %1692 = vmatmul.f32.gmra.mxu0 %v1524
    %v1693 = vpop.f32.mrf.mxu0
    %v1694 = vadd.f32 %v1618, %v1693
    %1695 = vmatmul.f32.gmra.mxu0 %v1525
    %v1696 = vpop.f32.mrf.mxu0
    %v1697 = vadd.f32 %v1618, %v1696
    %1698 = vmatmul.f32.gmra.mxu0 %v1526
    %v1699 = vpop.f32.mrf.mxu0
    %v1700 = vadd.f32 %v1618, %v1699
    %1701 = vmatmul.f32.gmra.mxu0 %v1527
    %v1702 = vpop.f32.mrf.mxu0
    %v1703 = vadd.f32 %v1618, %v1702
    %1704 = vmatmul.f32.gmra.mxu0 %v1528
    %v1705 = vpop.f32.mrf.mxu0
    %v1706 = vadd.f32 %v1618, %v1705
    %1707 = vmatmul.f32.gmra.mxu0 %v1529
    %v1708 = vpop.f32.mrf.mxu0
    %v1709 = vadd.f32 %v1618, %v1708
    %1710 = vmatmul.f32.gmra.mxu0 %v1530
    %v1711 = vpop.f32.mrf.mxu0
    %v1712 = vadd.f32 %v1618, %v1711
    %1713 = vmatmul.f32.gmra.mxu0 %v1531
    %v1714 = vpop.f32.mrf.mxu0
    %v1715 = vadd.f32 %v1618, %v1714
    %1716 = vdwg.mxu0
    %1717 = vmatpush.msra.mxu0 %v1611
    %1718 = vmatpush.msra.mxu0 %v1610
    %1719 = vmatpush.msra.mxu0 %v1609
    %1720 = vmatpush.msra.mxu0 %v1608
    %1721 = vmatpush.msra.mxu0 %v1607
    %1722 = vmatpush.msra.mxu0 %v1606
    %1723 = vmatpush.msra.mxu0 %v1605
    %1724 = vmatpush.msra.mxu0 %v1604
    %1725 = vmatpush.msra.mxu0 %v1603
    %1726 = vmatpush.msra.mxu0 %v1602
    %1727 = vmatpush.msra.mxu0 %v1601
    %1728 = vmatpush.msra.mxu0 %v1600
    %1729 = vmatpush.msra.mxu0 %v1599
    %1730 = vmatpush.msra.mxu0 %v1598
    %1731 = vmatpush.msra.mxu0 %v1597
    %1732 = vmatpush.msra.mxu0 %v1596
    %1733 = vmatmul.f32.gmra.mxu0 %v1564
    %v1734 = vpop.f32.mrf.mxu0
    %v1735 = vadd.f32 %v1670, %v1734
    %1736 = vmatmul.f32.gmra.mxu0 %v1565
    %v1737 = vpop.f32.mrf.mxu0
    %v1738 = vadd.f32 %v1673, %v1737
    %1739 = vmatmul.f32.gmra.mxu0 %v1566
    %v1740 = vpop.f32.mrf.mxu0
    %v1741 = vadd.f32 %v1676, %v1740
    %1742 = vmatmul.f32.gmra.mxu0 %v1567
    %v1743 = vpop.f32.mrf.mxu0
    %v1744 = vadd.f32 %v1679, %v1743
    %1745 = vmatmul.f32.gmra.mxu0 %v1568
    %v1746 = vpop.f32.mrf.mxu0
    %v1747 = vadd.f32 %v1682, %v1746
    %1748 = vmatmul.f32.gmra.mxu0 %v1569
    %v1749 = vpop.f32.mrf.mxu0
    %v1750 = vadd.f32 %v1685, %v1749
    %1751 = vmatmul.f32.gmra.mxu0 %v1570
    %v1752 = vpop.f32.mrf.mxu0
    %v1753 = vadd.f32 %v1688, %v1752
    %1754 = vmatmul.f32.gmra.mxu0 %v1571
    %v1755 = vpop.f32.mrf.mxu0
    %v1756 = vadd.f32 %v1691, %v1755
    %1757 = vmatmul.f32.gmra.mxu0 %v1572
    %v1758 = vpop.f32.mrf.mxu0
    %v1759 = vadd.f32 %v1694, %v1758
    %1760 = vmatmul.f32.gmra.mxu0 %v1573
    %v1761 = vpop.f32.mrf.mxu0
    %v1762 = vadd.f32 %v1697, %v1761
    %1763 = vmatmul.f32.gmra.mxu0 %v1574
    %v1764 = vpop.f32.mrf.mxu0
    %v1765 = vadd.f32 %v1700, %v1764
    %1766 = vmatmul.f32.gmra.mxu0 %v1575
    %v1767 = vpop.f32.mrf.mxu0
    %v1768 = vadd.f32 %v1703, %v1767
    %1769 = vmatmul.f32.gmra.mxu0 %v1576
    %v1770 = vpop.f32.mrf.mxu0
    %v1771 = vadd.f32 %v1706, %v1770
    %1772 = vmatmul.f32.gmra.mxu0 %v1577
    %v1773 = vpop.f32.mrf.mxu0
    %v1774 = vadd.f32 %v1709, %v1773
    %1775 = vmatmul.f32.gmra.mxu0 %v1578
    %v1776 = vpop.f32.mrf.mxu0
    %v1777 = vadd.f32 %v1712, %v1776
    %1778 = vmatmul.f32.gmra.mxu0 %v1579
    %v1779 = vpop.f32.mrf.mxu0
    %v1780 = vadd.f32 %v1715, %v1779
    %1781 = vdwg.mxu0
    %1782 = vmatpush.msra.mxu0 0.0
    %1783 = vmatpush.msra.mxu0 0.0
    %1784 = vmatpush.msra.mxu0 0.0
    %1785 = vmatpush.msra.mxu0 0.0
    %1786 = vmatpush.msra.mxu0 0.0
    %1787 = vmatpush.msra.mxu0 0.0
    %1788 = vmatpush.msra.mxu0 0.0
    %1789 = vmatpush.msra.mxu0 0.0
    %1790 = vmatpush.msra.mxu0 0.0
    %1791 = vmatpush.msra.mxu0 0.0
    %1792 = vmatpush.msra.mxu0 0.0
    %1793 = vmatpush.msra.mxu0 0.0
    %1794 = vmatpush.msra.mxu0 %v1615
    %1795 = vmatpush.msra.mxu0 %v1614
    %1796 = vmatpush.msra.mxu0 %v1613
    %1797 = vmatpush.msra.mxu0 %v1612
    %1798 = vmatmul.f32.gmra.mxu0 %v1620
    %v1799 = vpop.f32.mrf.mxu0
    %v1800 = vadd.f32 %v1735, %v1799
    %1801 = vmatmul.f32.gmra.mxu0 %v1622
    %v1802 = vpop.f32.mrf.mxu0
    %v1803 = vadd.f32 %v1738, %v1802
    %1804 = vmatmul.f32.gmra.mxu0 %v1624
    %v1805 = vpop.f32.mrf.mxu0
    %v1806 = vadd.f32 %v1741, %v1805
    %1807 = vmatmul.f32.gmra.mxu0 %v1626
    %v1808 = vpop.f32.mrf.mxu0
    %v1809 = vadd.f32 %v1744, %v1808
    %1810 = vmatmul.f32.gmra.mxu0 %v1628
    %v1811 = vpop.f32.mrf.mxu0
    %v1812 = vadd.f32 %v1747, %v1811
    %1813 = vmatmul.f32.gmra.mxu0 %v1630
    %v1814 = vpop.f32.mrf.mxu0
    %v1815 = vadd.f32 %v1750, %v1814
    %1816 = vmatmul.f32.gmra.mxu0 %v1632
    %v1817 = vpop.f32.mrf.mxu0
    %v1818 = vadd.f32 %v1753, %v1817
    %1819 = vmatmul.f32.gmra.mxu0 %v1634
    %v1820 = vpop.f32.mrf.mxu0
    %v1821 = vadd.f32 %v1756, %v1820
    %1822 = vmatmul.f32.gmra.mxu0 %v1636
    %v1823 = vpop.f32.mrf.mxu0
    %v1824 = vadd.f32 %v1759, %v1823
    %1825 = vmatmul.f32.gmra.mxu0 %v1638
    %v1826 = vpop.f32.mrf.mxu0
    %v1827 = vadd.f32 %v1762, %v1826
    %1828 = vmatmul.f32.gmra.mxu0 %v1640
    %v1829 = vpop.f32.mrf.mxu0
    %v1830 = vadd.f32 %v1765, %v1829
    %1831 = vmatmul.f32.gmra.mxu0 %v1642
    %v1832 = vpop.f32.mrf.mxu0
    %v1833 = vadd.f32 %v1768, %v1832
    %1834 = vmatmul.f32.gmra.mxu0 %v1644
    %v1835 = vpop.f32.mrf.mxu0
    %v1836 = vadd.f32 %v1771, %v1835
    %1837 = vmatmul.f32.gmra.mxu0 %v1646
    %v1838 = vpop.f32.mrf.mxu0
    %v1839 = vadd.f32 %v1774, %v1838
    %1840 = vmatmul.f32.gmra.mxu0 %v1648
    %v1841 = vpop.f32.mrf.mxu0
    %v1842 = vadd.f32 %v1777, %v1841
    %1843 = vmatmul.f32.gmra.mxu0 %v1650
    %v1844 = vpop.f32.mrf.mxu0
    %v1845 = vadd.f32 %v1780, %v1844
    %1846 = vdwg.mxu0
    %v1847 = vmax.f32 %v1800, 0.0
    %v1848 = vmax.f32 %v1803, 0.0
    %v1849 = vmax.f32 %v1806, 0.0
    %v1850 = vmax.f32 %v1809, 0.0
    %v1851 = vmax.f32 %v1812, 0.0
    %v1852 = vmax.f32 %v1815, 0.0
    %v1853 = vmax.f32 %v1818, 0.0
    %v1854 = vmax.f32 %v1821, 0.0
    %v1855 = vmax.f32 %v1824, 0.0
    %v1856 = vmax.f32 %v1827, 0.0
    %v1857 = vmax.f32 %v1830, 0.0
    %v1858 = vmax.f32 %v1833, 0.0
    %v1859 = vmax.f32 %v1836, 0.0
    %v1860 = vmax.f32 %v1839, 0.0
    %v1861 = vmax.f32 %v1842, 0.0
    %v1862 = vmax.f32 %v1845, 0.0
    %1863 = vst.msk [vmem:[#allocation3] sm:$0xff] %vm1498, 0.0
    %vm1864 = vcmask 517120
    %1865 = vst.msk [vmem:[#allocation3 + $0x8] sm:$0x3] %vm1864, 0.0
    %1866 = vst.msk [vmem:[#allocation3 + $0x10] sm:$0xff] %vm1498, 0.0
    %1867 = vst.msk [vmem:[#allocation3 + $0x18] sm:$0x3] %vm1864, 0.0
    %1868 = vst.msk [vmem:[#allocation3 + $0x20] sm:$0xff] %vm1498, 0.0
    %1869 = vst.msk [vmem:[#allocation3 + $0x28] sm:$0x3] %vm1864, 0.0
    %1870 = vst.msk [vmem:[#allocation3 + $0x30] sm:$0xff] %vm1498, 0.0
    %1871 = vst.msk [vmem:[#allocation3 + $0x38] sm:$0x3] %vm1864, 0.0
    %1872 = vst.msk [vmem:[#allocation3 + $0x40] sm:$0xff] %vm1498, 0.0
    %1873 = vst.msk [vmem:[#allocation3 + $0x48] sm:$0x3] %vm1864, 0.0
    %1874 = vst.msk [vmem:[#allocation3 + $0x50] sm:$0xff] %vm1498, 0.0
    %1875 = vst.msk [vmem:[#allocation3 + $0x58] sm:$0x3] %vm1864, 0.0
    %1876 = vst.msk [vmem:[#allocation3 + $0x60] sm:$0xff] %vm1498, 0.0
    %1877 = vst.msk [vmem:[#allocation3 + $0x68] sm:$0x3] %vm1864, 0.0
    %1878 = vst.msk [vmem:[#allocation3 + $0x70] sm:$0xff] %vm1498, 0.0
    %1879 = vst.msk [vmem:[#allocation3 + $0x78] sm:$0x3] %vm1864, 0.0
    %1880 = vst.msk [vmem:[#allocation3 + $0x80] sm:$0xff] %vm1498, 0.0
    %1881 = vst.msk [vmem:[#allocation3 + $0x88] sm:$0x3] %vm1864, 0.0
    %1882 = vst.msk [vmem:[#allocation3 + $0x90] sm:$0xff] %vm1498, 0.0
    %1883 = vst.msk [vmem:[#allocation3 + $0x98] sm:$0x3] %vm1864, 0.0
    %1884 = vst.msk [vmem:[#allocation3 + $0xa0] sm:$0xff] %vm1498, 0.0
    %1885 = vst.msk [vmem:[#allocation3 + $0xa8] sm:$0x3] %vm1864, 0.0
    %1886 = vst.msk [vmem:[#allocation3 + $0xb0] sm:$0xff] %vm1498, 0.0
    %1887 = vst.msk [vmem:[#allocation3 + $0xb8] sm:$0x3] %vm1864, 0.0
    %1888 = vst.msk [vmem:[#allocation3 + $0xc0] sm:$0xff] %vm1498, 0.0
    %1889 = vst.msk [vmem:[#allocation3 + $0xc8] sm:$0x3] %vm1864, 0.0
    %1890 = vst.msk [vmem:[#allocation3 + $0xd0] sm:$0xff] %vm1498, 0.0
    %1891 = vst.msk [vmem:[#allocation3 + $0xd8] sm:$0x3] %vm1864, 0.0
    %1892 = vst.msk [vmem:[#allocation3 + $0xe0] sm:$0xff] %vm1498, 0.0
    %1893 = vst.msk [vmem:[#allocation3 + $0xe8] sm:$0x3] %vm1864, 0.0
    %1894 = vst.msk [vmem:[#allocation3 + $0xf0] sm:$0xff] %vm1498, 0.0
    %1895 = vst.msk [vmem:[#allocation3 + $0xf8] sm:$0x3] %vm1864, 0.0
    %1896 = vst.msk [vmem:[#allocation3 + $0x100] sm:$0xff] %vm1498, 0.0
    %1897 = vst.msk [vmem:[#allocation3 + $0x108] sm:$0x3] %vm1864, 0.0
    %1898 = vst.msk [vmem:[#allocation3 + $0x110] sm:$0xff] %vm1498, 0.0
    %1899 = vst.msk [vmem:[#allocation3 + $0x118] sm:$0x3] %vm1864, 0.0
    %1900 = vst.msk [vmem:[#allocation3 + $0x120] sm:$0xff] %vm1498, 0.0
    %1901 = vst.msk [vmem:[#allocation3 + $0x128] sm:$0x3] %vm1864, 0.0
    %1902 = vst.msk [vmem:[#allocation3 + $0x130] sm:$0xff] %vm1498, 0.0
    %1903 = vst.msk [vmem:[#allocation3 + $0x138] sm:$0x3] %vm1864, 0.0
    %s1904 = scalar_lea.vmem [#allocation3], 16
    %1905 = vst.msk [vmem:[%s1904 + $0x1] sm:$0xff] %vm1498, %v1847
    %1906 = vst.msk [vmem:[%s1904 + $0x11] sm:$0xff] %vm1498, %v1848
    %1907 = vst.msk [vmem:[%s1904 + $0x21] sm:$0xff] %vm1498, %v1849
    %1908 = vst.msk [vmem:[%s1904 + $0x31] sm:$0xff] %vm1498, %v1850
    %1909 = vst.msk [vmem:[%s1904 + $0x41] sm:$0xff] %vm1498, %v1851
    %1910 = vst.msk [vmem:[%s1904 + $0x51] sm:$0xff] %vm1498, %v1852
    %1911 = vst.msk [vmem:[%s1904 + $0x61] sm:$0xff] %vm1498, %v1853
    %1912 = vst.msk [vmem:[%s1904 + $0x71] sm:$0xff] %vm1498, %v1854
    %1913 = vst.msk [vmem:[%s1904 + $0xa1] sm:$0xff] %vm1498, %v1855
    %1914 = vst.msk [vmem:[%s1904 + $0xb1] sm:$0xff] %vm1498, %v1856
    %1915 = vst.msk [vmem:[%s1904 + $0xc1] sm:$0xff] %vm1498, %v1857
    %1916 = vst.msk [vmem:[%s1904 + $0xd1] sm:$0xff] %vm1498, %v1858
    %1917 = vst.msk [vmem:[%s1904 + $0xe1] sm:$0xff] %vm1498, %v1859
    %1918 = vst.msk [vmem:[%s1904 + $0xf1] sm:$0xff] %vm1498, %v1860
    %1919 = vst.msk [vmem:[%s1904 + $0x101] sm:$0xff] %vm1498, %v1861
    %1920 = vst.msk [vmem:[%s1904 + $0x111] sm:$0xff] %vm1498, %v1862
    %v1921 = vld [vmem:[#allocation3] sm:$0xff]
    %v1922 = vld [vmem:[#allocation3 + $0x8] sm:$0x3]
    %v1923 = vld [vmem:[#allocation3 + $0x10] sm:$0xff]
    %v1924 = vld [vmem:[#allocation3 + $0x18] sm:$0x3]
    %v1925 = vld [vmem:[#allocation3 + $0x20] sm:$0xff]
    %v1926 = vld [vmem:[#allocation3 + $0x28] sm:$0x3]
    %v1927 = vld [vmem:[#allocation3 + $0x30] sm:$0xff]
    %v1928 = vld [vmem:[#allocation3 + $0x38] sm:$0x3]
    %v1929 = vld [vmem:[#allocation3 + $0x40] sm:$0xff]
    %v1930 = vld [vmem:[#allocation3 + $0x48] sm:$0x3]
    %v1931 = vld [vmem:[#allocation3 + $0x50] sm:$0xff]
    %v1932 = vld [vmem:[#allocation3 + $0x58] sm:$0x3]
    %v1933 = vld [vmem:[#allocation3 + $0x60] sm:$0xff]
    %v1934 = vld [vmem:[#allocation3 + $0x68] sm:$0x3]
    %v1935 = vld [vmem:[#allocation3 + $0x70] sm:$0xff]
    %v1936 = vld [vmem:[#allocation3 + $0x78] sm:$0x3]
    %v1937 = vld [vmem:[#allocation3 + $0x80] sm:$0xff]
    %v1938 = vld [vmem:[#allocation3 + $0x88] sm:$0x3]
    %v1939 = vld [vmem:[#allocation3 + $0x90] sm:$0xff]
    %v1940 = vld [vmem:[#allocation3 + $0x98] sm:$0x3]
    %v1941 = vld [vmem:[#allocation3 + $0xa0] sm:$0xff]
    %v1942 = vld [vmem:[#allocation3 + $0xa8] sm:$0x3]
    %v1943 = vld [vmem:[#allocation3 + $0xb0] sm:$0xff]
    %v1944 = vld [vmem:[#allocation3 + $0xb8] sm:$0x3]
    %v1945 = vld [vmem:[#allocation3 + $0xc0] sm:$0xff]
    %v1946 = vld [vmem:[#allocation3 + $0xc8] sm:$0x3]
    %v1947 = vld [vmem:[#allocation3 + $0xd0] sm:$0xff]
    %v1948 = vld [vmem:[#allocation3 + $0xd8] sm:$0x3]
    %v1949 = vld [vmem:[#allocation3 + $0xe0] sm:$0xff]
    %v1950 = vld [vmem:[#allocation3 + $0xe8] sm:$0x3]
    %v1951 = vld [vmem:[#allocation3 + $0xf0] sm:$0xff]
    %v1952 = vld [vmem:[#allocation3 + $0xf8] sm:$0x3]
    %v1953 = vld [vmem:[#allocation3 + $0x100] sm:$0xff]
    %v1954 = vld [vmem:[#allocation3 + $0x108] sm:$0x3]
    %v1955 = vld [vmem:[#allocation3 + $0x110] sm:$0xff]
    %v1956 = vld [vmem:[#allocation3 + $0x118] sm:$0x3]
    %v1957 = vld [vmem:[#allocation3 + $0x120] sm:$0xff]
    %v1958 = vld [vmem:[#allocation3 + $0x128] sm:$0x3]
    %v1959 = vld [vmem:[#allocation3 + $0x130] sm:$0xff]
    %v1960 = vld [vmem:[#allocation3 + $0x138] sm:$0x3]
    %v1993 = vrot.slane %v1921, 1
    %v1994 = vrot.slane %v1922, 1
    %v1995 = vsel %vm127, %v1993, %v1994
    %v1996 = vrot.slane %v1923, 1
    %v1997 = vrot.slane %v1924, 1
    %v1998 = vsel %vm127, %v1996, %v1997
    %v1999 = vrot.slane %v1925, 1
    %v2000 = vrot.slane %v1926, 1
    %v2001 = vsel %vm127, %v1999, %v2000
    %v2002 = vrot.slane %v1927, 1
    %v2003 = vrot.slane %v1928, 1
    %v2004 = vsel %vm127, %v2002, %v2003
    %v2005 = vrot.slane %v1929, 1
    %v2006 = vrot.slane %v1930, 1
    %v2007 = vsel %vm127, %v2005, %v2006
    %v2008 = vrot.slane %v1931, 1
    %v2009 = vrot.slane %v1932, 1
    %v2010 = vsel %vm127, %v2008, %v2009
    %v2011 = vrot.slane %v1933, 1
    %v2012 = vrot.slane %v1934, 1
    %v2013 = vsel %vm127, %v2011, %v2012
    %v2014 = vrot.slane %v1935, 1
    %v2015 = vrot.slane %v1936, 1
    %v2016 = vsel %vm127, %v2014, %v2015
    %v2017 = vrot.slane %v1941, 1
    %v2018 = vrot.slane %v1942, 1
    %v2019 = vsel %vm127, %v2017, %v2018
    %v2020 = vrot.slane %v1943, 1
    %v2021 = vrot.slane %v1944, 1
    %v2022 = vsel %vm127, %v2020, %v2021
    %v2023 = vrot.slane %v1945, 1
    %v2024 = vrot.slane %v1946, 1
    %v2025 = vsel %vm127, %v2023, %v2024
    %v2026 = vrot.slane %v1947, 1
    %v2027 = vrot.slane %v1948, 1
    %v2028 = vsel %vm127, %v2026, %v2027
    %v2029 = vrot.slane %v1949, 1
    %v2030 = vrot.slane %v1950, 1
    %v2031 = vsel %vm127, %v2029, %v2030
    %v2032 = vrot.slane %v1951, 1
    %v2033 = vrot.slane %v1952, 1
    %v2034 = vsel %vm127, %v2032, %v2033
    %v2035 = vrot.slane %v1953, 1
    %v2036 = vrot.slane %v1954, 1
    %v2037 = vsel %vm127, %v2035, %v2036
    %v2038 = vrot.slane %v1955, 1
    %v2039 = vrot.slane %v1956, 1
    %v2040 = vsel %vm127, %v2038, %v2039
    %v2041 = vrot.slane %v1921, 2
    %v2042 = vrot.slane %v1922, 2
    %v2043 = vsel %vm176, %v2041, %v2042
    %v2044 = vrot.slane %v1923, 2
    %v2045 = vrot.slane %v1924, 2
    %v2046 = vsel %vm176, %v2044, %v2045
    %v2047 = vrot.slane %v1925, 2
    %v2048 = vrot.slane %v1926, 2
    %v2049 = vsel %vm176, %v2047, %v2048
    %v2050 = vrot.slane %v1927, 2
    %v2051 = vrot.slane %v1928, 2
    %v2052 = vsel %vm176, %v2050, %v2051
    %v2053 = vrot.slane %v1929, 2
    %v2054 = vrot.slane %v1930, 2
    %v2055 = vsel %vm176, %v2053, %v2054
    %v2056 = vrot.slane %v1931, 2
    %v2057 = vrot.slane %v1932, 2
    %v2058 = vsel %vm176, %v2056, %v2057
    %v2059 = vrot.slane %v1933, 2
    %v2060 = vrot.slane %v1934, 2
    %v2061 = vsel %vm176, %v2059, %v2060
    %v2062 = vrot.slane %v1935, 2
    %v2063 = vrot.slane %v1936, 2
    %v2064 = vsel %vm176, %v2062, %v2063
    %v2065 = vrot.slane %v1941, 2
    %v2066 = vrot.slane %v1942, 2
    %v2067 = vsel %vm176, %v2065, %v2066
    %v2068 = vrot.slane %v1943, 2
    %v2069 = vrot.slane %v1944, 2
    %v2070 = vsel %vm176, %v2068, %v2069
    %v2071 = vrot.slane %v1945, 2
    %v2072 = vrot.slane %v1946, 2
    %v2073 = vsel %vm176, %v2071, %v2072
    %v2074 = vrot.slane %v1947, 2
    %v2075 = vrot.slane %v1948, 2
    %v2076 = vsel %vm176, %v2074, %v2075
    %v2077 = vrot.slane %v1949, 2
    %v2078 = vrot.slane %v1950, 2
    %v2079 = vsel %vm176, %v2077, %v2078
    %v2080 = vrot.slane %v1951, 2
    %v2081 = vrot.slane %v1952, 2
    %v2082 = vsel %vm176, %v2080, %v2081
    %v2083 = vrot.slane %v1953, 2
    %v2084 = vrot.slane %v1954, 2
    %v2085 = vsel %vm176, %v2083, %v2084
    %v2086 = vrot.slane %v1955, 2
    %v2087 = vrot.slane %v1956, 2
    %v2088 = vsel %vm176, %v2086, %v2087
    %v2109 = vrot.slane %v1937, 1
    %v2110 = vrot.slane %v1938, 1
    %v2111 = vsel %vm127, %v2109, %v2110
    %v2112 = vrot.slane %v1957, 1
    %v2113 = vrot.slane %v1958, 1
    %v2114 = vsel %vm127, %v2112, %v2113
    %v2131 = vrot.slane %v1937, 2
    %v2132 = vrot.slane %v1938, 2
    %v2133 = vsel %vm176, %v2131, %v2132
    %v2134 = vrot.slane %v1957, 2
    %v2135 = vrot.slane %v1958, 2
    %v2136 = vsel %vm176, %v2134, %v2135
    %v2141 = vrot.slane %v1939, 1
    %v2142 = vrot.slane %v1940, 1
    %v2143 = vsel %vm127, %v2141, %v2142
    %v2144 = vrot.slane %v1959, 1
    %v2145 = vrot.slane %v1960, 1
    %v2146 = vsel %vm127, %v2144, %v2145
    %v2147 = vrot.slane %v1939, 2
    %v2148 = vrot.slane %v1940, 2
    %v2149 = vsel %vm176, %v2147, %v2148
    %v2150 = vrot.slane %v1959, 2
    %v2151 = vrot.slane %v1960, 2
    %v2152 = vsel %vm176, %v2150, %v2151
    %2153 = vrot.lane.b32.xlu0 %v1995, 64
    %v2154 = vpop.permute.xlu0 %2153
    %2155 = vrot.lane.b32.xlu0 %v1998, 64
    %v2156 = vpop.permute.xlu0 %2155
    %2157 = vrot.lane.b32.xlu0 %v2001, 64
    %v2158 = vpop.permute.xlu0 %2157
    %2159 = vrot.lane.b32.xlu0 %v2004, 64
    %v2160 = vpop.permute.xlu0 %2159
    %2161 = vrot.lane.b32.xlu0 %v2007, 64
    %v2162 = vpop.permute.xlu0 %2161
    %2163 = vrot.lane.b32.xlu0 %v2010, 64
    %v2164 = vpop.permute.xlu0 %2163
    %2165 = vrot.lane.b32.xlu0 %v2013, 64
    %v2166 = vpop.permute.xlu0 %2165
    %2167 = vrot.lane.b32.xlu0 %v2016, 64
    %v2168 = vpop.permute.xlu0 %2167
    %2169 = vrot.lane.b32.xlu0 %v2019, 64
    %v2170 = vpop.permute.xlu0 %2169
    %2171 = vrot.lane.b32.xlu0 %v2022, 64
    %v2172 = vpop.permute.xlu0 %2171
    %2173 = vrot.lane.b32.xlu0 %v2025, 64
    %v2174 = vpop.permute.xlu0 %2173
    %2175 = vrot.lane.b32.xlu0 %v2028, 64
    %v2176 = vpop.permute.xlu0 %2175
    %2177 = vrot.lane.b32.xlu0 %v2031, 64
    %v2178 = vpop.permute.xlu0 %2177
    %2179 = vrot.lane.b32.xlu0 %v2034, 64
    %v2180 = vpop.permute.xlu0 %2179
    %2181 = vrot.lane.b32.xlu0 %v2037, 64
    %v2182 = vpop.permute.xlu0 %2181
    %2183 = vrot.lane.b32.xlu0 %v2040, 64
    %v2184 = vpop.permute.xlu0 %2183
    %2201 = vrot.lane.b32.xlu0 %v1923, 64
    %v2202 = vpop.permute.xlu0 %2201
    %2203 = vrot.lane.b32.xlu0 %v1925, 64
    %v2204 = vpop.permute.xlu0 %2203
    %2205 = vrot.lane.b32.xlu0 %v1927, 64
    %v2206 = vpop.permute.xlu0 %2205
    %2207 = vrot.lane.b32.xlu0 %v1929, 64
    %v2208 = vpop.permute.xlu0 %2207
    %2209 = vrot.lane.b32.xlu0 %v1931, 64
    %v2210 = vpop.permute.xlu0 %2209
    %2211 = vrot.lane.b32.xlu0 %v1933, 64
    %v2212 = vpop.permute.xlu0 %2211
    %2213 = vrot.lane.b32.xlu0 %v1935, 64
    %v2214 = vpop.permute.xlu0 %2213
    %2215 = vrot.lane.b32.xlu0 %v1937, 64
    %v2216 = vpop.permute.xlu0 %2215
    %2217 = vrot.lane.b32.xlu0 %v1943, 64
    %v2218 = vpop.permute.xlu0 %2217
    %2219 = vrot.lane.b32.xlu0 %v1945, 64
    %v2220 = vpop.permute.xlu0 %2219
    %2221 = vrot.lane.b32.xlu0 %v1947, 64
    %v2222 = vpop.permute.xlu0 %2221
    %2223 = vrot.lane.b32.xlu0 %v1949, 64
    %v2224 = vpop.permute.xlu0 %2223
    %2225 = vrot.lane.b32.xlu0 %v1951, 64
    %v2226 = vpop.permute.xlu0 %2225
    %2227 = vrot.lane.b32.xlu0 %v1953, 64
    %v2228 = vpop.permute.xlu0 %2227
    %2229 = vrot.lane.b32.xlu0 %v1955, 64
    %v2230 = vpop.permute.xlu0 %2229
    %2231 = vrot.lane.b32.xlu0 %v1957, 64
    %v2232 = vpop.permute.xlu0 %2231
    %2249 = vrot.lane.b32.xlu0 %v2046, 64
    %v2250 = vpop.permute.xlu0 %2249
    %2251 = vrot.lane.b32.xlu0 %v2049, 64
    %v2252 = vpop.permute.xlu0 %2251
    %2253 = vrot.lane.b32.xlu0 %v2052, 64
    %v2254 = vpop.permute.xlu0 %2253
    %2255 = vrot.lane.b32.xlu0 %v2055, 64
    %v2256 = vpop.permute.xlu0 %2255
    %2257 = vrot.lane.b32.xlu0 %v2058, 64
    %v2258 = vpop.permute.xlu0 %2257
    %2259 = vrot.lane.b32.xlu0 %v2061, 64
    %v2260 = vpop.permute.xlu0 %2259
    %2261 = vrot.lane.b32.xlu0 %v2064, 64
    %v2262 = vpop.permute.xlu0 %2261
    %2263 = vrot.lane.b32.xlu0 %v2133, 64
    %v2264 = vpop.permute.xlu0 %2263
    %2265 = vrot.lane.b32.xlu0 %v2070, 64
    %v2266 = vpop.permute.xlu0 %2265
    %2267 = vrot.lane.b32.xlu0 %v2073, 64
    %v2268 = vpop.permute.xlu0 %2267
    %2269 = vrot.lane.b32.xlu0 %v2076, 64
    %v2270 = vpop.permute.xlu0 %2269
    %2271 = vrot.lane.b32.xlu0 %v2079, 64
    %v2272 = vpop.permute.xlu0 %2271
    %2273 = vrot.lane.b32.xlu0 %v2082, 64
    %v2274 = vpop.permute.xlu0 %2273
    %2275 = vrot.lane.b32.xlu0 %v2085, 64
    %v2276 = vpop.permute.xlu0 %2275
    %2277 = vrot.lane.b32.xlu0 %v2088, 64
    %v2278 = vpop.permute.xlu0 %2277
    %2279 = vrot.lane.b32.xlu0 %v2136, 64
    %v2280 = vpop.permute.xlu0 %2279
    %2297 = vrot.lane.b32.xlu0 %v2111, 64
    %v2298 = vpop.permute.xlu0 %2297
    %2299 = vrot.lane.b32.xlu0 %v2143, 64
    %v2300 = vpop.permute.xlu0 %2299
    %2301 = vrot.lane.b32.xlu0 %v2114, 64
    %v2302 = vpop.permute.xlu0 %2301
    %2303 = vrot.lane.b32.xlu0 %v2146, 64
    %v2304 = vpop.permute.xlu0 %2303
    %v2309 = vsel %vm1498, %v1921, %v2154
    %v2310 = vsel %vm1498, %v1923, %v2156
    %v2311 = vsel %vm1498, %v1925, %v2158
    %v2312 = vsel %vm1498, %v1927, %v2160
    %v2313 = vsel %vm1498, %v1929, %v2162
    %v2314 = vsel %vm1498, %v1931, %v2164
    %v2315 = vsel %vm1498, %v1933, %v2166
    %v2316 = vsel %vm1498, %v1935, %v2168
    %v2317 = vsel %vm1498, %v1941, %v2170
    %v2318 = vsel %vm1498, %v1943, %v2172
    %v2319 = vsel %vm1498, %v1945, %v2174
    %v2320 = vsel %vm1498, %v1947, %v2176
    %v2321 = vsel %vm1498, %v1949, %v2178
    %v2322 = vsel %vm1498, %v1951, %v2180
    %v2323 = vsel %vm1498, %v1953, %v2182
    %v2324 = vsel %vm1498, %v1955, %v2184
    %v2325 = vsel %vm1498, %v2043, %v2202
    %v2326 = vsel %vm1498, %v2046, %v2204
    %v2327 = vsel %vm1498, %v2049, %v2206
    %v2328 = vsel %vm1498, %v2052, %v2208
    %v2329 = vsel %vm1498, %v2055, %v2210
    %v2330 = vsel %vm1498, %v2058, %v2212
    %v2331 = vsel %vm1498, %v2061, %v2214
    %v2332 = vsel %vm1498, %v2064, %v2216
    %v2333 = vsel %vm1498, %v2067, %v2218
    %v2334 = vsel %vm1498, %v2070, %v2220
    %v2335 = vsel %vm1498, %v2073, %v2222
    %v2336 = vsel %vm1498, %v2076, %v2224
    %v2337 = vsel %vm1498, %v2079, %v2226
    %v2338 = vsel %vm1498, %v2082, %v2228
    %v2339 = vsel %vm1498, %v2085, %v2230
    %v2340 = vsel %vm1498, %v2088, %v2232
    %v2341 = vsel %vm1498, %v1998, %v2250
    %v2342 = vsel %vm1498, %v2001, %v2252
    %v2343 = vsel %vm1498, %v2004, %v2254
    %v2344 = vsel %vm1498, %v2007, %v2256
    %v2345 = vsel %vm1498, %v2010, %v2258
    %v2346 = vsel %vm1498, %v2013, %v2260
    %v2347 = vsel %vm1498, %v2016, %v2262
    %v2348 = vsel %vm1498, %v2111, %v2264
    %v2349 = vsel %vm1498, %v2022, %v2266
    %v2350 = vsel %vm1498, %v2025, %v2268
    %v2351 = vsel %vm1498, %v2028, %v2270
    %v2352 = vsel %vm1498, %v2031, %v2272
    %v2353 = vsel %vm1498, %v2034, %v2274
    %v2354 = vsel %vm1498, %v2037, %v2276
    %v2355 = vsel %vm1498, %v2040, %v2278
    %v2356 = vsel %vm1498, %v2114, %v2280
    %v2357 = vsel %vm1498, %v1937, %v2298
    %v2358 = vsel %vm1498, %v1939, %v2300
    %v2359 = vsel %vm1498, %v1957, %v2302
    %v2360 = vsel %vm1498, %v1959, %v2304
    %v2361 = vld [vmem:[%s5] sm:$0xff]
    %v2362 = vld [vmem:[%s5 + $0x8] sm:$0xff]
    %v2363 = vld [vmem:[%s5 + $0x10] sm:$0xff]
    %v2364 = vld [vmem:[%s5 + $0x18] sm:$0xff]
    %v2365 = vld [vmem:[%s5 + $0x20] sm:$0xff]
    %v2366 = vld [vmem:[%s5 + $0x28] sm:$0xff]
    %v2367 = vld [vmem:[%s5 + $0x30] sm:$0xff]
    %v2368 = vld [vmem:[%s5 + $0x38] sm:$0xff]
    %v2369 = vld [vmem:[%s5 + $0x40] sm:$0xff]
    %v2370 = vld [vmem:[%s5 + $0x48] sm:$0xff]
    %v2371 = vld [vmem:[%s5 + $0x50] sm:$0xff]
    %v2372 = vld [vmem:[%s5 + $0x58] sm:$0xff]
    %v2373 = vld [vmem:[%s5 + $0x60] sm:$0xff]
    %v2374 = vld [vmem:[%s5 + $0x68] sm:$0xff]
    %v2375 = vld [vmem:[%s5 + $0x70] sm:$0xff]
    %v2376 = vld [vmem:[%s5 + $0x78] sm:$0xff]
    %v2377 = vld [vmem:[%s5 + $0x80] sm:$0xff]
    %v2378 = vld [vmem:[%s5 + $0x88] sm:$0xff]
    %v2379 = vld [vmem:[%s5 + $0x90] sm:$0xff]
    %v2380 = vld [vmem:[%s5 + $0x98] sm:$0xff]
    %v2381 = vld [vmem:[%s5 + $0xa0] sm:$0xff]
    %v2382 = vld [vmem:[%s5 + $0xa8] sm:$0xff]
    %v2383 = vld [vmem:[%s5 + $0xb0] sm:$0xff]
    %v2384 = vld [vmem:[%s5 + $0xb8] sm:$0xff]
    %v2385 = vld [vmem:[%s5 + $0xc0] sm:$0xff]
    %v2386 = vld [vmem:[%s5 + $0xc8] sm:$0xff]
    %v2387 = vld [vmem:[%s5 + $0xd0] sm:$0xff]
    %v2388 = vld [vmem:[%s5 + $0xd8] sm:$0xff]
    %v2389 = vld [vmem:[%s5 + $0xe0] sm:$0xff]
    %v2390 = vld [vmem:[%s5 + $0xe8] sm:$0xff]
    %v2391 = vld [vmem:[%s5 + $0xf0] sm:$0xff]
    %v2392 = vld [vmem:[%s5 + $0xf8] sm:$0xff]
    %v2393 = vld [vmem:[%s5 + $0x100] sm:$0xff]
    %v2394 = vld [vmem:[%s5 + $0x108] sm:$0xff]
    %v2395 = vld [vmem:[%s5 + $0x110] sm:$0xff]
    %v2396 = vld [vmem:[%s5 + $0x118] sm:$0xff]
    %v2397 = vld [vmem:[%s5 + $0x120] sm:$0xff]
    %v2398 = vld [vmem:[%s5 + $0x128] sm:$0xff]
    %v2399 = vld [vmem:[%s5 + $0x130] sm:$0xff]
    %v2400 = vld [vmem:[%s5 + $0x138] sm:$0xff]
    %v2401 = vld [vmem:[%s5 + $0x140] sm:$0xff]
    %v2402 = vld [vmem:[%s5 + $0x148] sm:$0xff]
    %v2403 = vld [vmem:[%s5 + $0x150] sm:$0xff]
    %v2404 = vld [vmem:[%s5 + $0x158] sm:$0xff]
    %v2405 = vld [vmem:[%s5 + $0x160] sm:$0xff]
    %v2406 = vld [vmem:[%s5 + $0x168] sm:$0xff]
    %v2407 = vld [vmem:[%s5 + $0x170] sm:$0xff]
    %v2408 = vld [vmem:[%s5 + $0x178] sm:$0xff]
    %v2409 = vld [vmem:[%s5 + $0x180] sm:$0xff]
    %v2410 = vld [vmem:[%s5 + $0x188] sm:$0xff]
    %v2411 = vld [vmem:[%s5 + $0x190] sm:$0xff]
    %v2412 = vld [vmem:[%s5 + $0x198] sm:$0xff]
    %v2413 = vld [vmem:[%s5 + $0x1a0] sm:$0xff]
    %v2414 = vld [vmem:[%s5 + $0x1a8] sm:$0xff]
    %v2415 = vld [vmem:[%s5 + $0x1b0] sm:$0xff]
    %v2416 = vld [vmem:[%s5 + $0x1b8] sm:$0xff]
    %v2417 = vld [vmem:[%s5 + $0x1c0] sm:$0xff]
    %v2418 = vld [vmem:[%s5 + $0x1c8] sm:$0xff]
    %v2419 = vld [vmem:[%s5 + $0x1d0] sm:$0xff]
    %v2420 = vld [vmem:[%s5 + $0x1d8] sm:$0xff]
    %v2421 = vld [vmem:[%s5 + $0x1e0] sm:$0xff]
    %v2422 = vld [vmem:[%s5 + $0x1e8] sm:$0xff]
    %v2423 = vld [vmem:[%s5 + $0x1f0] sm:$0xff]
    %v2424 = vld [vmem:[%s5 + $0x1f8] sm:$0xff]
    %v2425 = vld [vmem:[%s5 + $0x200] sm:$0xff]
    %v2426 = vld [vmem:[%s5 + $0x208] sm:$0xff]
    %v2427 = vld [vmem:[%s5 + $0x210] sm:$0xff]
    %v2428 = vld [vmem:[%s5 + $0x218] sm:$0xff]
    %v2429 = vld [vmem:[%s5 + $0x220] sm:$0xff]
    %v2430 = vld [vmem:[%s5 + $0x228] sm:$0xff]
    %v2431 = vld [vmem:[%s5 + $0x230] sm:$0xff]
    %v2432 = vld [vmem:[%s5 + $0x238] sm:$0xff]
    %v2433 = vld [vmem:[%s6] sm:$0x1]
    %v2435 = vperm.slane %v2433, 0
    %v2437 = vsel %vm1498, %v2049, 0
    %v2439 = vsel %vm1498, %v2052, 0
    %v2441 = vsel %vm1498, %v2055, 0
    %v2443 = vsel %vm1498, %v2058, 0
    %v2445 = vsel %vm1498, %v2061, 0
    %v2447 = vsel %vm1498, %v2064, 0
    %v2449 = vsel %vm1498, %v2133, 0
    %v2451 = vsel %vm1498, %v2149, 0
    %v2453 = vsel %vm1498, %v2073, 0
    %v2455 = vsel %vm1498, %v2076, 0
    %v2457 = vsel %vm1498, %v2079, 0
    %v2459 = vsel %vm1498, %v2082, 0
    %v2461 = vsel %vm1498, %v2085, 0
    %v2463 = vsel %vm1498, %v2088, 0
    %v2465 = vsel %vm1498, %v2136, 0
    %v2467 = vsel %vm1498, %v2152, 0
    %2469 = vmatpush.msra.mxu0 %v2376
    %2470 = vmatpush.msra.mxu0 %v2375
    %2471 = vmatpush.msra.mxu0 %v2374
    %2472 = vmatpush.msra.mxu0 %v2373
    %2473 = vmatpush.msra.mxu0 %v2372
    %2474 = vmatpush.msra.mxu0 %v2371
    %2475 = vmatpush.msra.mxu0 %v2370
    %2476 = vmatpush.msra.mxu0 %v2369
    %2477 = vmatpush.msra.mxu0 %v2368
    %2478 = vmatpush.msra.mxu0 %v2367
    %2479 = vmatpush.msra.mxu0 %v2366
    %2480 = vmatpush.msra.mxu0 %v2365
    %2481 = vmatpush.msra.mxu0 %v2364
    %2482 = vmatpush.msra.mxu0 %v2363
    %2483 = vmatpush.msra.mxu0 %v2362
    %2484 = vmatpush.msra.mxu0 %v2361
    %2485 = vmatmul.f32.gmra.mxu0 %v2309
    %v2486 = vpop.f32.mrf.mxu0
    %v2487 = vadd.f32 %v2435, %v2486
    %2488 = vmatmul.f32.gmra.mxu0 %v2310
    %v2489 = vpop.f32.mrf.mxu0
    %v2490 = vadd.f32 %v2435, %v2489
    %2491 = vmatmul.f32.gmra.mxu0 %v2311
    %v2492 = vpop.f32.mrf.mxu0
    %v2493 = vadd.f32 %v2435, %v2492
    %2494 = vmatmul.f32.gmra.mxu0 %v2312
    %v2495 = vpop.f32.mrf.mxu0
    %v2496 = vadd.f32 %v2435, %v2495
    %2497 = vmatmul.f32.gmra.mxu0 %v2313
    %v2498 = vpop.f32.mrf.mxu0
    %v2499 = vadd.f32 %v2435, %v2498
    %2500 = vmatmul.f32.gmra.mxu0 %v2314
    %v2501 = vpop.f32.mrf.mxu0
    %v2502 = vadd.f32 %v2435, %v2501
    %2503 = vmatmul.f32.gmra.mxu0 %v2315
    %v2504 = vpop.f32.mrf.mxu0
    %v2505 = vadd.f32 %v2435, %v2504
    %2506 = vmatmul.f32.gmra.mxu0 %v2316
    %v2507 = vpop.f32.mrf.mxu0
    %v2508 = vadd.f32 %v2435, %v2507
    %2509 = vmatmul.f32.gmra.mxu0 %v2317
    %v2510 = vpop.f32.mrf.mxu0
    %v2511 = vadd.f32 %v2435, %v2510
    %2512 = vmatmul.f32.gmra.mxu0 %v2318
    %v2513 = vpop.f32.mrf.mxu0
    %v2514 = vadd.f32 %v2435, %v2513
    %2515 = vmatmul.f32.gmra.mxu0 %v2319
    %v2516 = vpop.f32.mrf.mxu0
    %v2517 = vadd.f32 %v2435, %v2516
    %2518 = vmatmul.f32.gmra.mxu0 %v2320
    %v2519 = vpop.f32.mrf.mxu0
    %v2520 = vadd.f32 %v2435, %v2519
    %2521 = vmatmul.f32.gmra.mxu0 %v2321
    %v2522 = vpop.f32.mrf.mxu0
    %v2523 = vadd.f32 %v2435, %v2522
    %2524 = vmatmul.f32.gmra.mxu0 %v2322
    %v2525 = vpop.f32.mrf.mxu0
    %v2526 = vadd.f32 %v2435, %v2525
    %2527 = vmatmul.f32.gmra.mxu0 %v2323
    %v2528 = vpop.f32.mrf.mxu0
    %v2529 = vadd.f32 %v2435, %v2528
    %2530 = vmatmul.f32.gmra.mxu0 %v2324
    %v2531 = vpop.f32.mrf.mxu0
    %v2532 = vadd.f32 %v2435, %v2531
    %2533 = vdwg.mxu0
    %2534 = vmatpush.msra.mxu0 %v2392
    %2535 = vmatpush.msra.mxu0 %v2391
    %2536 = vmatpush.msra.mxu0 %v2390
    %2537 = vmatpush.msra.mxu0 %v2389
    %2538 = vmatpush.msra.mxu0 %v2388
    %2539 = vmatpush.msra.mxu0 %v2387
    %2540 = vmatpush.msra.mxu0 %v2386
    %2541 = vmatpush.msra.mxu0 %v2385
    %2542 = vmatpush.msra.mxu0 %v2384
    %2543 = vmatpush.msra.mxu0 %v2383
    %2544 = vmatpush.msra.mxu0 %v2382
    %2545 = vmatpush.msra.mxu0 %v2381
    %2546 = vmatpush.msra.mxu0 %v2380
    %2547 = vmatpush.msra.mxu0 %v2379
    %2548 = vmatpush.msra.mxu0 %v2378
    %2549 = vmatpush.msra.mxu0 %v2377
    %2550 = vmatmul.f32.gmra.mxu0 %v2325
    %v2551 = vpop.f32.mrf.mxu0
    %v2552 = vadd.f32 %v2487, %v2551
    %2553 = vmatmul.f32.gmra.mxu0 %v2326
    %v2554 = vpop.f32.mrf.mxu0
    %v2555 = vadd.f32 %v2490, %v2554
    %2556 = vmatmul.f32.gmra.mxu0 %v2327
    %v2557 = vpop.f32.mrf.mxu0
    %v2558 = vadd.f32 %v2493, %v2557
    %2559 = vmatmul.f32.gmra.mxu0 %v2328
    %v2560 = vpop.f32.mrf.mxu0
    %v2561 = vadd.f32 %v2496, %v2560
    %2562 = vmatmul.f32.gmra.mxu0 %v2329
    %v2563 = vpop.f32.mrf.mxu0
    %v2564 = vadd.f32 %v2499, %v2563
    %2565 = vmatmul.f32.gmra.mxu0 %v2330
    %v2566 = vpop.f32.mrf.mxu0
    %v2567 = vadd.f32 %v2502, %v2566
    %2568 = vmatmul.f32.gmra.mxu0 %v2331
    %v2569 = vpop.f32.mrf.mxu0
    %v2570 = vadd.f32 %v2505, %v2569
    %2571 = vmatmul.f32.gmra.mxu0 %v2332
    %v2572 = vpop.f32.mrf.mxu0
    %v2573 = vadd.f32 %v2508, %v2572
    %2574 = vmatmul.f32.gmra.mxu0 %v2333
    %v2575 = vpop.f32.mrf.mxu0
    %v2576 = vadd.f32 %v2511, %v2575
    %2577 = vmatmul.f32.gmra.mxu0 %v2334
    %v2578 = vpop.f32.mrf.mxu0
    %v2579 = vadd.f32 %v2514, %v2578
    %2580 = vmatmul.f32.gmra.mxu0 %v2335
    %v2581 = vpop.f32.mrf.mxu0
    %v2582 = vadd.f32 %v2517, %v2581
    %2583 = vmatmul.f32.gmra.mxu0 %v2336
    %v2584 = vpop.f32.mrf.mxu0
    %v2585 = vadd.f32 %v2520, %v2584
    %2586 = vmatmul.f32.gmra.mxu0 %v2337
    %v2587 = vpop.f32.mrf.mxu0
    %v2588 = vadd.f32 %v2523, %v2587
    %2589 = vmatmul.f32.gmra.mxu0 %v2338
    %v2590 = vpop.f32.mrf.mxu0
    %v2591 = vadd.f32 %v2526, %v2590
    %2592 = vmatmul.f32.gmra.mxu0 %v2339
    %v2593 = vpop.f32.mrf.mxu0
    %v2594 = vadd.f32 %v2529, %v2593
    %2595 = vmatmul.f32.gmra.mxu0 %v2340
    %v2596 = vpop.f32.mrf.mxu0
    %v2597 = vadd.f32 %v2532, %v2596
    %2598 = vdwg.mxu0
    %2599 = vmatpush.msra.mxu0 %v2408
    %2600 = vmatpush.msra.mxu0 %v2407
    %2601 = vmatpush.msra.mxu0 %v2406
    %2602 = vmatpush.msra.mxu0 %v2405
    %2603 = vmatpush.msra.mxu0 %v2404
    %2604 = vmatpush.msra.mxu0 %v2403
    %2605 = vmatpush.msra.mxu0 %v2402
    %2606 = vmatpush.msra.mxu0 %v2401
    %2607 = vmatpush.msra.mxu0 %v2400
    %2608 = vmatpush.msra.mxu0 %v2399
    %2609 = vmatpush.msra.mxu0 %v2398
    %2610 = vmatpush.msra.mxu0 %v2397
    %2611 = vmatpush.msra.mxu0 %v2396
    %2612 = vmatpush.msra.mxu0 %v2395
    %2613 = vmatpush.msra.mxu0 %v2394
    %2614 = vmatpush.msra.mxu0 %v2393
    %2615 = vmatmul.f32.gmra.mxu0 %v2341
    %v2616 = vpop.f32.mrf.mxu0
    %v2617 = vadd.f32 %v2552, %v2616
    %2618 = vmatmul.f32.gmra.mxu0 %v2342
    %v2619 = vpop.f32.mrf.mxu0
    %v2620 = vadd.f32 %v2555, %v2619
    %2621 = vmatmul.f32.gmra.mxu0 %v2343
    %v2622 = vpop.f32.mrf.mxu0
    %v2623 = vadd.f32 %v2558, %v2622
    %2624 = vmatmul.f32.gmra.mxu0 %v2344
    %v2625 = vpop.f32.mrf.mxu0
    %v2626 = vadd.f32 %v2561, %v2625
    %2627 = vmatmul.f32.gmra.mxu0 %v2345
    %v2628 = vpop.f32.mrf.mxu0
    %v2629 = vadd.f32 %v2564, %v2628
    %2630 = vmatmul.f32.gmra.mxu0 %v2346
    %v2631 = vpop.f32.mrf.mxu0
    %v2632 = vadd.f32 %v2567, %v2631
    %2633 = vmatmul.f32.gmra.mxu0 %v2347
    %v2634 = vpop.f32.mrf.mxu0
    %v2635 = vadd.f32 %v2570, %v2634
    %2636 = vmatmul.f32.gmra.mxu0 %v2348
    %v2637 = vpop.f32.mrf.mxu0
    %v2638 = vadd.f32 %v2573, %v2637
    %2639 = vmatmul.f32.gmra.mxu0 %v2349
    %v2640 = vpop.f32.mrf.mxu0
    %v2641 = vadd.f32 %v2576, %v2640
    %2642 = vmatmul.f32.gmra.mxu0 %v2350
    %v2643 = vpop.f32.mrf.mxu0
    %v2644 = vadd.f32 %v2579, %v2643
    %2645 = vmatmul.f32.gmra.mxu0 %v2351
    %v2646 = vpop.f32.mrf.mxu0
    %v2647 = vadd.f32 %v2582, %v2646
    %2648 = vmatmul.f32.gmra.mxu0 %v2352
    %v2649 = vpop.f32.mrf.mxu0
    %v2650 = vadd.f32 %v2585, %v2649
    %2651 = vmatmul.f32.gmra.mxu0 %v2353
    %v2652 = vpop.f32.mrf.mxu0
    %v2653 = vadd.f32 %v2588, %v2652
    %2654 = vmatmul.f32.gmra.mxu0 %v2354
    %v2655 = vpop.f32.mrf.mxu0
    %v2656 = vadd.f32 %v2591, %v2655
    %2657 = vmatmul.f32.gmra.mxu0 %v2355
    %v2658 = vpop.f32.mrf.mxu0
    %v2659 = vadd.f32 %v2594, %v2658
    %2660 = vmatmul.f32.gmra.mxu0 %v2356
    %v2661 = vpop.f32.mrf.mxu0
    %v2662 = vadd.f32 %v2597, %v2661
    %2663 = vdwg.mxu0
    %2664 = vmatpush.msra.mxu0 %v2424
    %2665 = vmatpush.msra.mxu0 %v2423
    %2666 = vmatpush.msra.mxu0 %v2422
    %2667 = vmatpush.msra.mxu0 %v2421
    %2668 = vmatpush.msra.mxu0 %v2420
    %2669 = vmatpush.msra.mxu0 %v2419
    %2670 = vmatpush.msra.mxu0 %v2418
    %2671 = vmatpush.msra.mxu0 %v2417
    %2672 = vmatpush.msra.mxu0 %v2416
    %2673 = vmatpush.msra.mxu0 %v2415
    %2674 = vmatpush.msra.mxu0 %v2414
    %2675 = vmatpush.msra.mxu0 %v2413
    %2676 = vmatpush.msra.mxu0 %v2412
    %2677 = vmatpush.msra.mxu0 %v2411
    %2678 = vmatpush.msra.mxu0 %v2410
    %2679 = vmatpush.msra.mxu0 %v2409
    %2680 = vmatmul.f32.gmra.mxu0 %v2311
    %v2681 = vpop.f32.mrf.mxu0
    %v2682 = vadd.f32 %v2617, %v2681
    %2683 = vmatmul.f32.gmra.mxu0 %v2312
    %v2684 = vpop.f32.mrf.mxu0
    %v2685 = vadd.f32 %v2620, %v2684
    %2686 = vmatmul.f32.gmra.mxu0 %v2313
    %v2687 = vpop.f32.mrf.mxu0
    %v2688 = vadd.f32 %v2623, %v2687
    %2689 = vmatmul.f32.gmra.mxu0 %v2314
    %v2690 = vpop.f32.mrf.mxu0
    %v2691 = vadd.f32 %v2626, %v2690
    %2692 = vmatmul.f32.gmra.mxu0 %v2315
    %v2693 = vpop.f32.mrf.mxu0
    %v2694 = vadd.f32 %v2629, %v2693
    %2695 = vmatmul.f32.gmra.mxu0 %v2316
    %v2696 = vpop.f32.mrf.mxu0
    %v2697 = vadd.f32 %v2632, %v2696
    %2698 = vmatmul.f32.gmra.mxu0 %v2357
    %v2699 = vpop.f32.mrf.mxu0
    %v2700 = vadd.f32 %v2635, %v2699
    %2701 = vmatmul.f32.gmra.mxu0 %v2358
    %v2702 = vpop.f32.mrf.mxu0
    %v2703 = vadd.f32 %v2638, %v2702
    %2704 = vmatmul.f32.gmra.mxu0 %v2319
    %v2705 = vpop.f32.mrf.mxu0
    %v2706 = vadd.f32 %v2641, %v2705
    %2707 = vmatmul.f32.gmra.mxu0 %v2320
    %v2708 = vpop.f32.mrf.mxu0
    %v2709 = vadd.f32 %v2644, %v2708
    %2710 = vmatmul.f32.gmra.mxu0 %v2321
    %v2711 = vpop.f32.mrf.mxu0
    %v2712 = vadd.f32 %v2647, %v2711
    %2713 = vmatmul.f32.gmra.mxu0 %v2322
    %v2714 = vpop.f32.mrf.mxu0
    %v2715 = vadd.f32 %v2650, %v2714
    %2716 = vmatmul.f32.gmra.mxu0 %v2323
    %v2717 = vpop.f32.mrf.mxu0
    %v2718 = vadd.f32 %v2653, %v2717
    %2719 = vmatmul.f32.gmra.mxu0 %v2324
    %v2720 = vpop.f32.mrf.mxu0
    %v2721 = vadd.f32 %v2656, %v2720
    %2722 = vmatmul.f32.gmra.mxu0 %v2359
    %v2723 = vpop.f32.mrf.mxu0
    %v2724 = vadd.f32 %v2659, %v2723
    %2725 = vmatmul.f32.gmra.mxu0 %v2360
    %v2726 = vpop.f32.mrf.mxu0
    %v2727 = vadd.f32 %v2662, %v2726
    %2728 = vdwg.mxu0
    %2729 = vmatpush.msra.mxu0 0.0
    %2730 = vmatpush.msra.mxu0 0.0
    %2731 = vmatpush.msra.mxu0 0.0
    %2732 = vmatpush.msra.mxu0 0.0
    %2733 = vmatpush.msra.mxu0 0.0
    %2734 = vmatpush.msra.mxu0 0.0
    %2735 = vmatpush.msra.mxu0 0.0
    %2736 = vmatpush.msra.mxu0 0.0
    %2737 = vmatpush.msra.mxu0 %v2432
    %2738 = vmatpush.msra.mxu0 %v2431
    %2739 = vmatpush.msra.mxu0 %v2430
    %2740 = vmatpush.msra.mxu0 %v2429
    %2741 = vmatpush.msra.mxu0 %v2428
    %2742 = vmatpush.msra.mxu0 %v2427
    %2743 = vmatpush.msra.mxu0 %v2426
    %2744 = vmatpush.msra.mxu0 %v2425
    %2745 = vmatmul.f32.gmra.mxu0 %v2437
    %v2746 = vpop.f32.mrf.mxu0
    %v2747 = vadd.f32 %v2682, %v2746
    %2748 = vmatmul.f32.gmra.mxu0 %v2439
    %v2749 = vpop.f32.mrf.mxu0
    %v2750 = vadd.f32 %v2685, %v2749
    %2751 = vmatmul.f32.gmra.mxu0 %v2441
    %v2752 = vpop.f32.mrf.mxu0
    %v2753 = vadd.f32 %v2688, %v2752
    %2754 = vmatmul.f32.gmra.mxu0 %v2443
    %v2755 = vpop.f32.mrf.mxu0
    %v2756 = vadd.f32 %v2691, %v2755
    %2757 = vmatmul.f32.gmra.mxu0 %v2445
    %v2758 = vpop.f32.mrf.mxu0
    %v2759 = vadd.f32 %v2694, %v2758
    %2760 = vmatmul.f32.gmra.mxu0 %v2447
    %v2761 = vpop.f32.mrf.mxu0
    %v2762 = vadd.f32 %v2697, %v2761
    %2763 = vmatmul.f32.gmra.mxu0 %v2449
    %v2764 = vpop.f32.mrf.mxu0
    %v2765 = vadd.f32 %v2700, %v2764
    %2766 = vmatmul.f32.gmra.mxu0 %v2451
    %v2767 = vpop.f32.mrf.mxu0
    %v2768 = vadd.f32 %v2703, %v2767
    %2769 = vmatmul.f32.gmra.mxu0 %v2453
    %v2770 = vpop.f32.mrf.mxu0
    %v2771 = vadd.f32 %v2706, %v2770
    %2772 = vmatmul.f32.gmra.mxu0 %v2455
    %v2773 = vpop.f32.mrf.mxu0
    %v2774 = vadd.f32 %v2709, %v2773
    %2775 = vmatmul.f32.gmra.mxu0 %v2457
    %v2776 = vpop.f32.mrf.mxu0
    %v2777 = vadd.f32 %v2712, %v2776
    %2778 = vmatmul.f32.gmra.mxu0 %v2459
    %v2779 = vpop.f32.mrf.mxu0
    %v2780 = vadd.f32 %v2715, %v2779
    %2781 = vmatmul.f32.gmra.mxu0 %v2461
    %v2782 = vpop.f32.mrf.mxu0
    %v2783 = vadd.f32 %v2718, %v2782
    %2784 = vmatmul.f32.gmra.mxu0 %v2463
    %v2785 = vpop.f32.mrf.mxu0
    %v2786 = vadd.f32 %v2721, %v2785
    %2787 = vmatmul.f32.gmra.mxu0 %v2465
    %v2788 = vpop.f32.mrf.mxu0
    %v2789 = vadd.f32 %v2724, %v2788
    %2790 = vmatmul.f32.gmra.mxu0 %v2467
    %v2791 = vpop.f32.mrf.mxu0
    %v2792 = vadd.f32 %v2727, %v2791
    %2793 = vdwg.mxu0
    %v2794 = vmax.f32 %v2747, 0.0
    %v2795 = vmax.f32 %v2750, 0.0
    %v2796 = vmax.f32 %v2753, 0.0
    %v2797 = vmax.f32 %v2756, 0.0
    %v2798 = vmax.f32 %v2759, 0.0
    %v2799 = vmax.f32 %v2762, 0.0
    %v2800 = vmax.f32 %v2765, 0.0
    %v2801 = vmax.f32 %v2768, 0.0
    %v2802 = vmax.f32 %v2771, 0.0
    %v2803 = vmax.f32 %v2774, 0.0
    %v2804 = vmax.f32 %v2777, 0.0
    %v2805 = vmax.f32 %v2780, 0.0
    %v2806 = vmax.f32 %v2783, 0.0
    %v2807 = vmax.f32 %v2786, 0.0
    %v2808 = vmax.f32 %v2789, 0.0
    %v2809 = vmax.f32 %v2792, 0.0
    %v2810 = vld [vmem:[%s7] sm:$0x3f]
    %v2811 = vld [vmem:[%s8] sm:$0x3f]
    %2813 = vset.pattern.permute.xlu0 0
    %2814 = vperm.xlu0 %2813, %v2811
    %v2815 = vpop.permute.xlu0 %2814
    %2817 = vmatpush.xpose.msra.mxu0 %v2809
    %2818 = vmatpush.xpose.msra.mxu0 %v2808
    %2819 = vmatpush.xpose.msra.mxu0 %v2807
    %2820 = vmatpush.xpose.msra.mxu0 %v2806
    %2821 = vmatpush.xpose.msra.mxu0 %v2805
    %2822 = vmatpush.xpose.msra.mxu0 %v2804
    %2823 = vmatpush.xpose.msra.mxu0 %v2803
    %2824 = vmatpush.xpose.msra.mxu0 %v2802
    %2825 = vmatpush.xpose.msra.mxu0 %v2801
    %2826 = vmatpush.xpose.msra.mxu0 %v2800
    %2827 = vmatpush.xpose.msra.mxu0 %v2799
    %2828 = vmatpush.xpose.msra.mxu0 %v2798
    %2829 = vmatpush.xpose.msra.mxu0 %v2797
    %2830 = vmatpush.xpose.msra.mxu0 %v2796
    %2831 = vmatpush.xpose.msra.mxu0 %v2795
    %2832 = vmatpush.xpose.msra.mxu0 %v2794
    %2833 = vmatmul.f32.gmra.mxu0 %v2810
    %v2834 = vpop.f32.mrf.mxu0
    %v2835 = vadd.f32 %v2815, %v2834
    %2836 = vdwg.mxu0
    %v2837 = vmax.f32 %v2835, 0.0
    %v2838 = vld [vmem:[%s9] sm:$0xff]
    %v2839 = vld [vmem:[%s9 + $0x8] sm:$0xff]
    %v2840 = vld [vmem:[%s9 + $0x10] sm:$0xff]
    %v2841 = vld [vmem:[%s9 + $0x18] sm:$0xff]
    %v2842 = vld [vmem:[%s9 + $0x20] sm:$0xff]
    %v2843 = vld [vmem:[%s9 + $0x28] sm:$0xff]
    %v2844 = vld [vmem:[%s9 + $0x30] sm:$0xff]
    %v2845 = vld [vmem:[%s9 + $0x38] sm:$0xff]
    %v2846 = vld [vmem:[%s9 + $0x40] sm:$0xff]
    %v2847 = vld [vmem:[%s9 + $0x48] sm:$0xff]
    %v2848 = vld [vmem:[%s9 + $0x50] sm:$0xff]
    %v2849 = vld [vmem:[%s9 + $0x58] sm:$0xff]
    %v2850 = vld [vmem:[%s9 + $0x60] sm:$0xff]
    %v2851 = vld [vmem:[%s9 + $0x68] sm:$0xff]
    %v2852 = vld [vmem:[%s9 + $0x70] sm:$0xff]
    %v2853 = vld [vmem:[%s9 + $0x78] sm:$0xff]
    %v2855 = vsel %vm1498, %v2837, 0
    %2857 = vmatpush.msra.mxu0 0.0
    %2858 = vmatpush.msra.mxu0 0.0
    %2859 = vmatpush.msra.mxu0 0.0
    %2860 = vmatpush.msra.mxu0 0.0
    %2861 = vmatpush.msra.mxu0 0.0
    %2862 = vmatpush.msra.mxu0 0.0
    %2863 = vmatpush.msra.mxu0 0.0
    %2864 = vmatpush.msra.mxu0 0.0
    %2865 = vmatpush.msra.mxu0 %v2852
    %2866 = vmatpush.msra.mxu0 %v2850
    %2867 = vmatpush.msra.mxu0 %v2848
    %2868 = vmatpush.msra.mxu0 %v2846
    %2869 = vmatpush.msra.mxu0 %v2844
    %2870 = vmatpush.msra.mxu0 %v2842
    %2871 = vmatpush.msra.mxu0 %v2840
    %2872 = vmatpush.msra.mxu0 %v2838
    %2873 = vmatmul.f32.gmra.mxu0 %v2855
    %v2874 = vpop.f32.mrf.mxu0
    %v2875 = vadd.f32 0.0, %v2874
    %2876 = vdwg.mxu0
    %2877 = vmatpush.msra.mxu0 0.0
    %2878 = vmatpush.msra.mxu0 0.0
    %2879 = vmatpush.msra.mxu0 0.0
    %2880 = vmatpush.msra.mxu0 0.0
    %2881 = vmatpush.msra.mxu0 0.0
    %2882 = vmatpush.msra.mxu0 0.0
    %2883 = vmatpush.msra.mxu0 0.0
    %2884 = vmatpush.msra.mxu0 0.0
    %2885 = vmatpush.msra.mxu0 %v2853
    %2886 = vmatpush.msra.mxu0 %v2851
    %2887 = vmatpush.msra.mxu0 %v2849
    %2888 = vmatpush.msra.mxu0 %v2847
    %2889 = vmatpush.msra.mxu0 %v2845
    %2890 = vmatpush.msra.mxu0 %v2843
    %2891 = vmatpush.msra.mxu0 %v2841
    %2892 = vmatpush.msra.mxu0 %v2839
    %2893 = vmatmul.f32.gmra.mxu0 %v2855
    %v2894 = vpop.f32.mrf.mxu0
    %v2895 = vadd.f32 0.0, %v2894
    %2896 = vdwg.mxu0
    %v2897 = vld [vmem:[%s10] sm:$0x1]
    %v2898 = vadd.f32 %v2897, %v2875
    %2900 = vst [vmem:[#allocation1] sm:$0xff] %v2875
    %s2901 = scalar_lea.vmem [#allocation1], 1
    %v2902 = vld [vmem:[%s2901] ss:$9 sm:$0xff]
    %2903 = vrot.lane.b32.xlu0 %v2902, 64
    %v2904 = vpop.permute.xlu0 %2903
    %v2906 = vadd.f32 %v2898, %v2904
    %2908 = vst [vmem:[#allocation1] sm:$0xff] %v2895
    %s2909 = scalar_lea.vmem [#allocation1], 2
    %v2910 = vld [vmem:[%s2909] ss:$9 sm:$0xff]
    %v2912 = vadd.f32 %v2906, %v2910
    %2913 = vst [vmem:[#allocation1] sm:$0xff] %v2895
    %s2914 = scalar_lea.vmem [#allocation1], 3
    %v2915 = vld [vmem:[%s2914] ss:$9 sm:$0xff]
    %2916 = vrot.lane.b32.xlu0 %v2915, 64
    %v2917 = vpop.permute.xlu0 %2916
    %v2919 = vadd.f32 %v2912, %v2917
    %vm2920 = vcmask 516096
    %v2921 = vsel %vm2920, %v2919, -inf
    %2922 = vmax.xlane.f32.xlu0 %v2921
    %v2923 = vpop.xlane.xlu0 %2922
    %v2924 = vsub.f32 %v2919, %v2923
    %v2925 = vmul.f32 %v2924, 1.442695
    %v2926 = vpow.pop %v2925
    %v2927 = vsel %vm2920, %v2926, 0.0
    %2928 = vadd.xlane.f32.xlu0 %v2927
    %v2929 = vpop.xlane.xlu0 %2928
    %v2930 = vrcp.pop %v2929
    %v2931 = vmul.f32 %v2926, %v2930
    %2932 = vst.msk [vmem:[#allocation5] sm:$0x1] %vm2920, %v2931
    %v2933 = vld [vmem:[%s11] sm:$0xff]
    %v2934 = vld [vmem:[%s11 + $0x8] sm:$0xff]
    %v2935 = vld [vmem:[%s11 + $0x10] sm:$0xff]
    %v2936 = vld [vmem:[%s11 + $0x18] sm:$0xff]
    %v2937 = vld [vmem:[%s11 + $0x20] sm:$0xff]
    %v2938 = vld [vmem:[%s11 + $0x28] sm:$0xff]
    %v2939 = vld [vmem:[%s11 + $0x30] sm:$0xff]
    %v2940 = vld [vmem:[%s11 + $0x38] sm:$0xff]
    %v2941 = vrot.slane %v2837, 4
    %v2942 = vsel %vm1498, %v2941, 0
    %2944 = vmatpush.msra.mxu0 0.0
    %2945 = vmatpush.msra.mxu0 0.0
    %2946 = vmatpush.msra.mxu0 0.0
    %2947 = vmatpush.msra.mxu0 0.0
    %2948 = vmatpush.msra.mxu0 0.0
    %2949 = vmatpush.msra.mxu0 0.0
    %2950 = vmatpush.msra.mxu0 0.0
    %2951 = vmatpush.msra.mxu0 0.0
    %2952 = vmatpush.msra.mxu0 %v2940
    %2953 = vmatpush.msra.mxu0 %v2939
    %2954 = vmatpush.msra.mxu0 %v2938
    %2955 = vmatpush.msra.mxu0 %v2937
    %2956 = vmatpush.msra.mxu0 %v2936
    %2957 = vmatpush.msra.mxu0 %v2935
    %2958 = vmatpush.msra.mxu0 %v2934
    %2959 = vmatpush.msra.mxu0 %v2933
    %2960 = vmatmul.f32.gmra.mxu0 %v2942
    %v2961 = vpop.f32.mrf.mxu0
    %v2962 = vadd.f32 0.0, %v2961
    %2963 = vdwg.mxu0
    %v2965 = vrot.slane %v2962, 1
    %2966 = vrot.lane.b32.xlu0 %v2965, 64
    %v2967 = vpop.permute.xlu0 %2966
    %v2969 = vadd.f32 %v2962, %v2967
    %v2970 = vld [vmem:[%s12] sm:$0x1]
    %v2971 = vadd.f32 %v2969, %v2970
    %v2972 = vmax.f32 %v2971, 0.0
    %v2973 = vld [vmem:[%s13] sm:$0x1]
    %v2974 = vmul.f32 %v2972, %v2973
    %v2975 = vsel %vm2920, %v2974, 0.0
    %2976 = vadd.xlane.f32.xlu0 %v2975
    %v2977 = vpop.xlane.xlu0 %2976
    %v2978 = vld [vmem:[#allocation4] sm:$0x1]
    %v2979 = vadd.f32 %v2977, %v2978
    %v2980 = vtanh.pop %v2979
    %vm2981 = vcmask 0
    %2982 = vst.msk [vmem:[%s16] sm:$0x1] %vm2981, %v2980
    %v2983 = vld [vmem:[%s9] sm:$0xff]
    %v2984 = vld [vmem:[%s9 + $0x8] sm:$0xff]
    %v2985 = vld [vmem:[%s9 + $0x10] sm:$0xff]
    %v2986 = vld [vmem:[%s9 + $0x18] sm:$0xff]
    %v2987 = vld [vmem:[%s9 + $0x20] sm:$0xff]
    %v2988 = vld [vmem:[%s9 + $0x28] sm:$0xff]
    %v2989 = vld [vmem:[%s9 + $0x30] sm:$0xff]
    %v2990 = vld [vmem:[%s9 + $0x38] sm:$0xff]
    %v2991 = vld [vmem:[%s9 + $0x40] sm:$0xff]
    %v2992 = vld [vmem:[%s9 + $0x48] sm:$0xff]
    %v2993 = vld [vmem:[%s9 + $0x50] sm:$0xff]
    %v2994 = vld [vmem:[%s9 + $0x58] sm:$0xff]
    %v2995 = vld [vmem:[%s9 + $0x60] sm:$0xff]
    %v2996 = vld [vmem:[%s9 + $0x68] sm:$0xff]
    %v2997 = vld [vmem:[%s9 + $0x70] sm:$0xff]
    %v2998 = vld [vmem:[%s9 + $0x78] sm:$0xff]
    %2999 = vrot.lane.b32.xlu0 %v2837, 64
    %v3000 = vpop.permute.xlu0 %2999
    %v3001 = vsel %vm1498, %v3000, 0
    %3003 = vmatpush.msra.mxu0 0.0
    %3004 = vmatpush.msra.mxu0 0.0
    %3005 = vmatpush.msra.mxu0 0.0
    %3006 = vmatpush.msra.mxu0 0.0
    %3007 = vmatpush.msra.mxu0 0.0
    %3008 = vmatpush.msra.mxu0 0.0
    %3009 = vmatpush.msra.mxu0 0.0
    %3010 = vmatpush.msra.mxu0 0.0
    %3011 = vmatpush.msra.mxu0 %v2997
    %3012 = vmatpush.msra.mxu0 %v2995
    %3013 = vmatpush.msra.mxu0 %v2993
    %3014 = vmatpush.msra.mxu0 %v2991
    %3015 = vmatpush.msra.mxu0 %v2989
    %3016 = vmatpush.msra.mxu0 %v2987
    %3017 = vmatpush.msra.mxu0 %v2985
    %3018 = vmatpush.msra.mxu0 %v2983
    %3019 = vmatmul.f32.gmra.mxu0 %v3001
    %v3020 = vpop.f32.mrf.mxu0
    %v3021 = vadd.f32 0.0, %v3020
    %3022 = vdwg.mxu0
    %3023 = vmatpush.msra.mxu0 0.0
    %3024 = vmatpush.msra.mxu0 0.0
    %3025 = vmatpush.msra.mxu0 0.0
    %3026 = vmatpush.msra.mxu0 0.0
    %3027 = vmatpush.msra.mxu0 0.0
    %3028 = vmatpush.msra.mxu0 0.0
    %3029 = vmatpush.msra.mxu0 0.0
    %3030 = vmatpush.msra.mxu0 0.0
    %3031 = vmatpush.msra.mxu0 %v2998
    %3032 = vmatpush.msra.mxu0 %v2996
    %3033 = vmatpush.msra.mxu0 %v2994
    %3034 = vmatpush.msra.mxu0 %v2992
    %3035 = vmatpush.msra.mxu0 %v2990
    %3036 = vmatpush.msra.mxu0 %v2988
    %3037 = vmatpush.msra.mxu0 %v2986
    %3038 = vmatpush.msra.mxu0 %v2984
    %3039 = vmatmul.f32.gmra.mxu0 %v3001
    %v3040 = vpop.f32.mrf.mxu0
    %v3041 = vadd.f32 0.0, %v3040
    %3042 = vdwg.mxu0
    %v3043 = vld [vmem:[%s10] sm:$0x1]
    %v3044 = vadd.f32 %v3043, %v3021
    %3046 = vst [vmem:[#allocation1] sm:$0xff] %v3021
    %s3047 = scalar_lea.vmem [#allocation1], 1
    %v3048 = vld [vmem:[%s3047] ss:$9 sm:$0xff]
    %3049 = vrot.lane.b32.xlu0 %v3048, 64
    %v3050 = vpop.permute.xlu0 %3049
    %v3052 = vadd.f32 %v3044, %v3050
    %3054 = vst [vmem:[#allocation1] sm:$0xff] %v3041
    %s3055 = scalar_lea.vmem [#allocation1], 2
    %v3056 = vld [vmem:[%s3055] ss:$9 sm:$0xff]
    %v3058 = vadd.f32 %v3052, %v3056
    %3059 = vst [vmem:[#allocation1] sm:$0xff] %v3041
    %s3060 = scalar_lea.vmem [#allocation1], 3
    %v3061 = vld [vmem:[%s3060] ss:$9 sm:$0xff]
    %3062 = vrot.lane.b32.xlu0 %v3061, 64
    %v3063 = vpop.permute.xlu0 %3062
    %v3065 = vadd.f32 %v3058, %v3063
    %v3066 = vsel %vm2920, %v3065, -inf
    %3067 = vmax.xlane.f32.xlu0 %v3066
    %v3068 = vpop.xlane.xlu0 %3067
    %v3069 = vsub.f32 %v3065, %v3068
    %v3070 = vmul.f32 %v3069, 1.442695
    %v3071 = vpow.pop %v3070
    %v3072 = vsel %vm2920, %v3071, 0.0
    %3073 = vadd.xlane.f32.xlu0 %v3072
    %v3074 = vpop.xlane.xlu0 %3073
    %v3075 = vrcp.pop %v3074
    %v3076 = vmul.f32 %v3071, %v3075
    %3077 = vst.msk [vmem:[#allocation5 + $0x1] sm:$0x1] %vm2920, %v3076
    %v3078 = vld [vmem:[%s11] sm:$0xff]
    %v3079 = vld [vmem:[%s11 + $0x8] sm:$0xff]
    %v3080 = vld [vmem:[%s11 + $0x10] sm:$0xff]
    %v3081 = vld [vmem:[%s11 + $0x18] sm:$0xff]
    %v3082 = vld [vmem:[%s11 + $0x20] sm:$0xff]
    %v3083 = vld [vmem:[%s11 + $0x28] sm:$0xff]
    %v3084 = vld [vmem:[%s11 + $0x30] sm:$0xff]
    %v3085 = vld [vmem:[%s11 + $0x38] sm:$0xff]
    %3086 = vrot.lane.b32.xlu0 %v2941, 64
    %v3087 = vpop.permute.xlu0 %3086
    %v3088 = vsel %vm1498, %v3087, 0
    %3090 = vmatpush.msra.mxu0 0.0
    %3091 = vmatpush.msra.mxu0 0.0
    %3092 = vmatpush.msra.mxu0 0.0
    %3093 = vmatpush.msra.mxu0 0.0
    %3094 = vmatpush.msra.mxu0 0.0
    %3095 = vmatpush.msra.mxu0 0.0
    %3096 = vmatpush.msra.mxu0 0.0
    %3097 = vmatpush.msra.mxu0 0.0
    %3098 = vmatpush.msra.mxu0 %v3085
    %3099 = vmatpush.msra.mxu0 %v3084
    %3100 = vmatpush.msra.mxu0 %v3083
    %3101 = vmatpush.msra.mxu0 %v3082
    %3102 = vmatpush.msra.mxu0 %v3081
    %3103 = vmatpush.msra.mxu0 %v3080
    %3104 = vmatpush.msra.mxu0 %v3079
    %3105 = vmatpush.msra.mxu0 %v3078
    %3106 = vmatmul.f32.gmra.mxu0 %v3088
    %v3107 = vpop.f32.mrf.mxu0
    %v3108 = vadd.f32 0.0, %v3107
    %3109 = vdwg.mxu0
    %v3111 = vrot.slane %v3108, 1
    %3112 = vrot.lane.b32.xlu0 %v3111, 64
    %v3113 = vpop.permute.xlu0 %3112
    %v3115 = vadd.f32 %v3108, %v3113
    %v3116 = vld [vmem:[%s12] sm:$0x1]
    %v3117 = vadd.f32 %v3115, %v3116
    %v3118 = vmax.f32 %v3117, 0.0
    %v3119 = vld [vmem:[%s13] sm:$0x1]
    %v3120 = vmul.f32 %v3118, %v3119
    %v3121 = vsel %vm2920, %v3120, 0.0
    %3122 = vadd.xlane.f32.xlu0 %v3121
    %v3123 = vpop.xlane.xlu0 %3122
    %v3124 = vld [vmem:[#allocation4] sm:$0x1]
    %v3125 = vadd.f32 %v3123, %v3124
    %v3126 = vtanh.pop %v3125
    %3127 = vst.msk [vmem:[%s16 + $0x1] sm:$0x1] %vm2981, %v3126
    // Predicated region
    $region62: #{policy_value_forward.1} parent=1 // pred_check
      _
    $region63: #{policy_value_forward.1} parent=1 // pred_check_branch
      %3129 = sbr.rel (0) target = $region65
    $region64: #{policy_value_forward.1} parent=1 // pred_region
      %3131 = vsyncadd [#allocation6], 0
      %s3133 = sshll.u32 [#allocation5], 4
      %s3134 = int_to_ptr.vmem [resolvable:$true] %s3133
      %s3135 = sshll.u32 %s15, 4
      %s3136 = int_to_ptr.hbm [resolvable:$true] %s3135
      %3138 = dma.vmem_to_hbm [thread:$0]  %s3134, 32, %s3136, [#allocation6]
    $region65: #{policy_value_forward.1} parent=1 // pred_fallthru
      _
    // Predicated region
    $region66: #{policy_value_forward.1} parent=1 // pred_check
      _
    $region67: #{policy_value_forward.1} parent=1 // pred_check_branch
      %3140 = sbr.rel (0) target = $region69
    $region68: #{policy_value_forward.1} parent=1 // pred_region
      _
    $region69: #{policy_value_forward.1} parent=1 // pred_fallthru
      _
    // Predicated region
    $region70: #{policy_value_forward.1} parent=1 // pred_check
      _
    $region71: #{policy_value_forward.1} parent=1 // pred_check_branch
      %3142 = sbr.rel (0) target = $region73
    $region72: #{policy_value_forward.1} parent=1 // pred_region
      %3144 = dma.done [#allocation6], 32
    $region73: #{policy_value_forward.1} parent=1 // pred_fallthru
      _
    // Predicated region
    $region74: #{policy_value_forward.1} parent=1 // pred_check
      _
    $region75: #{policy_value_forward.1} parent=1 // pred_check_branch
      %3146 = sbr.rel (0) target = $region77
    $region76: #{policy_value_forward.1} parent=1 // pred_region
      _
    $region77: #{policy_value_forward.1} parent=1 // pred_fallthru
      _
    %3147 = vsyncpa [#allocation6], 1

</llo_original>
